<compile_context>
chip_gen: v7x
topology: tpu7x:2x2x1
jax: 0.10.0
libtpu: 0.0.40
codegen_flags: <defaults>
</compile_context>

<pallas_src>
import functools

import jax
import jax.numpy as jnp
from jax.experimental import pallas as pl
from jax.experimental.pallas import tpu as pltpu


# ----------------------------------------------------------------------------
# helpers
# ----------------------------------------------------------------------------
def _spatial_tile(S, target=8192):
    """Largest multiple of 128 that divides S (capped at `target`).

    Falls back to a full-extent block when S is not a multiple of 128.
    TODO(synk): pad S (or W) to a multiple of 128 in the wrapper and crop, so
    production sizes that are only 32-divisible keep pipelined, lane-dense
    blocks instead of one whole-tensor VMEM block (review item; v7x risk).
    """
    if S % 128 != 0:
        return S
    t = min(target, S)
    t -= t % 128
    while S % t:
        t -= 128
    return t


def _row_tile(H, target=256):
    """Output-row block for the bilinear resize (multiple of 16, bf16-safe)."""
    if H % 16 != 0:
        return H
    t = max(min(target, H) - (min(target, H) % 16), 16)
    while H % t:
        t -= 16
    return t


def _interp_matrix(out_size, in_size):
    """Row-interpolation matrix for bilinear, align_corners=True."""
    if out_size == 1:
        src = jnp.zeros((1,), jnp.float32)
    else:
        src = jnp.arange(out_size, dtype=jnp.float32) * (in_size - 1) / (out_size - 1)
    i0 = jnp.clip(jnp.floor(src).astype(jnp.int32), 0, in_size - 1)
    i1 = jnp.minimum(i0 + 1, in_size - 1)
    frac = src - i0.astype(jnp.float32)
    rows = jnp.arange(out_size)
    mat = jnp.zeros((out_size, in_size), jnp.float32)
    mat = mat.at[rows, i0].add(1.0 - frac)
    mat = mat.at[rows, i1].add(frac)
    return mat


def _finalize_stats(psum, psumsq, total_elems):
    """Combine per-tile (sum, sum-of-squares) partials -> mean, unbiased std."""
    total = jnp.sum(psum)
    mean = total / total_elems
    var = (jnp.sum(psumsq) - total_elems * mean * mean) / (total_elems - 1)
    return mean, jnp.sqrt(jnp.maximum(var, 0.0))


# ----------------------------------------------------------------------------
# Kernel 1: 1x1 conv (+ folded affine) + ReLU writing into a channel-slice of
#           a larger output buffer, with fused per-tile statistics
# ----------------------------------------------------------------------------
def _conv1x1_relu_stats_kernel(x_ref, wT_ref, b_ref, o_ref, ps_ref, pss_ref):
    # x_ref : (1, C, tS)   wT_ref: (Cf, C)   b_ref: (Cf, 1)
    # o_ref : (1, Cf, tS)  ps/pss: (1, 1, 1, 128) per-tile partial stats
    x = x_ref[0]                      # (C, tS)
    wT = wT_ref[...]                  # (Cf, C)
    C = x.shape[0]
    # C is tiny (RGB): per-channel broadcast FMAs on the VPU.
    # TODO(synk): for a real backbone with large C/Cf switch to a K-tiled
    # jnp.dot (bf16 operands, f32 VMEM accumulator) so the MXU is used.
    acc = wT[:, 0:1] * x[0:1, :]
    for c in range(1, C):
        acc = acc + wT[:, c:c + 1] * x[c:c + 1, :]
    y = jnp.maximum(acc + b_ref[...], 0.0)          # (Cf, tS)
    o_ref[0] = y

    # fused per-tile statistics (sum + sum of squares): single pass, tiny store.
    ps_ref[...] = jnp.full(ps_ref.shape, jnp.sum(y), dtype=jnp.float32)
    pss_ref[...] = jnp.full(pss_ref.shape, jnp.sum(y * y), dtype=jnp.float32)


def conv1x1_relu_into(x_ncs, wT, b, *, out_channels_total, out_channel_block,
                      tile_target=8192):
    """x_ncs: (N, C, S).  Writes features into channel-block `out_channel_block`
    of a (N, out_channels_total, S) buffer.  Returns (buffer, stats)."""
    N, C, S = x_ncs.shape
    Cf = wT.shape[0]
    assert Cf % 8 == 0 and out_channels_total % Cf == 0
    tS = _spatial_tile(S, tile_target)
    nS = S // tS
    out, ps, pss = pl.pallas_call(
        _conv1x1_relu_stats_kernel,
        grid=(N, nS),
        out_shape=(
            jax.ShapeDtypeStruct((N, out_channels_total, S), jnp.float32),
            jax.ShapeDtypeStruct((N, nS, 1, 128), jnp.float32),
            jax.ShapeDtypeStruct((N, nS, 1, 128), jnp.float32),
        ),
        in_specs=[
            pl.BlockSpec((1, C, tS), lambda n, s: (n, 0, s)),
            pl.BlockSpec((Cf, C), lambda n, s: (0, 0)),
            pl.BlockSpec((Cf, 1), lambda n, s: (0, 0)),
        ],
        out_specs=(
            pl.BlockSpec((1, Cf, tS), lambda n, s: (n, out_channel_block, s)),
            pl.BlockSpec((1, 1, 1, 128), lambda n, s: (n, s, 0, 0)),
            pl.BlockSpec((1, 1, 1, 128), lambda n, s: (n, s, 0, 0)),
        ),
        compiler_params=pltpu.CompilerParams(
            dimension_semantics=("parallel", "parallel")),
    )(x_ncs, wT, b.reshape(Cf, 1))
    return out, (ps[..., 0, 0], pss[..., 0, 0], N * Cf * S)


# ----------------------------------------------------------------------------
# Kernel 2: bilinear resize (align_corners=True): Rh_blk @ (D @ Rw^T), bf16
#           MXU operands, row-tiled over out_h, fused per-block statistics.
# ----------------------------------------------------------------------------
def _bilinear_stats_kernel(rh_ref, rwT_ref, d_ref, o_ref, ps_ref, pss_ref, *,
                           planes):
    # rh_ref: (tH, h_in) bf16   rwT_ref: (w_in, W) bf16   d_ref: (B, h_in, w_in) f32
    # o_ref : (B, tH, W) f32
    _, h_in, w_in = d_ref.shape
    rh = rh_ref[...]
    rwT = rwT_ref[...]
    # width interpolation as ONE collapsed 2-D matmul over the whole plane block
    # (no broadcast_to of the interp matrix, one MXU weight push).
    d2 = d_ref[...].reshape(planes * h_in, w_in).astype(jnp.bfloat16)
    t = jnp.dot(d2, rwT, preferred_element_type=jnp.float32)   # (B*h_in, W) f32

    ts = jnp.zeros((), jnp.float32)
    tss = jnp.zeros((), jnp.float32)
    for b_i in range(planes):
        t_b = t[b_i * h_in:(b_i + 1) * h_in].astype(jnp.bfloat16)   # (h_in, W)
        plane = jnp.dot(rh, t_b, preferred_element_type=jnp.float32)  # (tH, W)
        o_ref[b_i] = plane
        ts = ts + jnp.sum(plane)
        tss = tss + jnp.sum(plane * plane)
    ps_ref[...] = jnp.full(ps_ref.shape, ts, dtype=jnp.float32)
    pss_ref[...] = jnp.full(pss_ref.shape, tss, dtype=jnp.float32)


def bilinear_resize_with_stats(d_nchw, out_h, out_w, *, plane_block=8,
                               row_block=256):
    N, Cf, h_in, w_in = d_nchw.shape
    P = N * Cf
    B = min(P, plane_block)
    while P % B:
        B -= 1
    nP = P // B
    tH = _row_tile(out_h, row_block)
    nR = out_h // tH
    # TODO(synk): exploit bilinear band-sparsity (each output row needs <=2
    # input rows): scalar-prefetch the input-row band per row block instead of
    # feeding the full (B, h_in, w_in) block and dense Rh (review item).
    rh = _interp_matrix(out_h, h_in).astype(jnp.bfloat16)               # (H, h_in)
    rwT = jnp.transpose(_interp_matrix(out_w, w_in)).astype(jnp.bfloat16)  # (w_in, W)
    d = d_nchw.reshape(P, h_in, w_in)
    out, ps, pss = pl.pallas_call(
        functools.partial(_bilinear_stats_kernel, planes=B),
        grid=(nP, nR),
        out_shape=(
            jax.ShapeDtypeStruct((P, out_h, out_w), jnp.float32),
            jax.ShapeDtypeStruct((nP, nR, 1, 128), jnp.float32),
            jax.ShapeDtypeStruct((nP, nR, 1, 128), jnp.float32),
        ),
        in_specs=[
            pl.BlockSpec((tH, h_in), lambda p, r: (r, 0)),
            pl.BlockSpec((w_in, out_w), lambda p, r: (0, 0)),
            pl.BlockSpec((B, h_in, w_in), lambda p, r: (p, 0, 0)),
        ],
        out_specs=(
            pl.BlockSpec((B, tH, out_w), lambda p, r: (p, r, 0)),
            pl.BlockSpec((1, 1, 1, 128), lambda p, r: (p, r, 0, 0)),
            pl.BlockSpec((1, 1, 1, 128), lambda p, r: (p, r, 0, 0)),
        ),
        compiler_params=pltpu.CompilerParams(
            dimension_semantics=("parallel", "parallel")),
    )(rh, rwT, d)
    return (out.reshape(N, Cf, out_h, out_w),
            (ps[..., 0, 0], pss[..., 0, 0], P * out_h * out_w))


# ----------------------------------------------------------------------------
# Kernel 3: _standardize (precomputed scale/bias) written ONLY into the depth
#           half of the combined buffer; backbone half preserved via aliasing.
# ----------------------------------------------------------------------------
def _standardize_half_kernel(sb_ref, d_ref, comb_ref, o_ref):
    del comb_ref  # aliased with the output; backbone half left untouched
    o_ref[0] = d_ref[0] * sb_ref[0, 0] + sb_ref[0, 1]


def standardize_into_combined(combined, d_ncs, scale, bias, *, tile_target=4096):
    N, two_cf, S = combined.shape
    Cf = two_cf // 2
    tS = _spatial_tile(S, tile_target)   # v7x-friendly cap (64 MiB VMEM)
    nS = S // tS
    sb = jnp.stack([scale, bias]).reshape(1, 2).astype(jnp.float32)
    return pl.pallas_call(
        _standardize_half_kernel,
        grid=(N, nS),
        out_shape=jax.ShapeDtypeStruct((N, two_cf, S), jnp.float32),
        in_specs=[
            pl.BlockSpec((1, 2), lambda n, s: (0, 0),
                         memory_space=pltpu.MemorySpace.SMEM),
            pl.BlockSpec((1, Cf, tS), lambda n, s: (n, 0, s)),
            pl.BlockSpec(memory_space=pl.ANY),   # combined: aliased, not DMA'd
        ],
        out_specs=pl.BlockSpec((1, Cf, tS), lambda n, s: (n, 1, s)),
        input_output_aliases={2: 0},
        compiler_params=pltpu.CompilerParams(
            dimension_semantics=("parallel", "parallel")),
    )(sb, d_ncs, combined)


# ----------------------------------------------------------------------------
# Forward pass (the compute-relevant part of RCNN3D_combined_features.forward)
# ----------------------------------------------------------------------------
def rcnn3d_combined_features_forward(x, params):
    """x: (N, C, H, W) float32 image batch (already same-size / padded)."""
    N, C, H, W = x.shape
    S = H * W
    Cf = params["w_backbone"].shape[1]

    pixel_mean = params["pixel_mean"].reshape(C)
    pixel_std = params["pixel_std"].reshape(C)

    # backbone stem: fold (x - mean) / std into the 1x1-conv weights/bias and
    # write the features straight into channels [0:Cf] of the combined buffer.
    inv_std = 1.0 / pixel_std
    w_bb = params["w_backbone"] * inv_std[:, None]                       # (C, Cf)
    b_bb = params["b_backbone"] - (pixel_mean * inv_std) @ params["w_backbone"]
    combined, feat_stats = conv1x1_relu_into(
        x.reshape(N, C, S), jnp.transpose(w_bb), b_bb,
        out_channels_total=2 * Cf, out_channel_block=0)       # (N, 2Cf, S)

    # TODO(synk): proposal_generator(images, features, gt_instances) is an
    # external registry module; not translated.

    # depth stem: fold the BGR channel flip and /255 into the weights;
    # synthetic stem runs at half spatial resolution.
    # TODO(synk): fold the stride-2 subsample into the conv BlockSpec (even-row
    # index_map / strided ds) instead of materializing x_half (review item;
    # ~1-2% of total HBM traffic at real Cf).
    w_d = params["w_depth"][::-1, :] * (1.0 / 255.0)
    x_half = x[:, :, ::2, ::2]
    h2, w2 = x_half.shape[2], x_half.shape[3]
    d_feat, _ = conv1x1_relu_into(
        x_half.reshape(N, C, h2 * w2), jnp.transpose(w_d), params["b_depth"],
        out_channels_total=Cf, out_channel_block=0)           # (N, Cf, S/4)

    # cat_depth_features: bilinear (align_corners=True) with fused stats
    d_res, d_stats = bilinear_resize_with_stats(
        d_feat.reshape(N, Cf, h2, w2), H, W)                  # (N, Cf, H, W)

    ym, ys = _finalize_stats(*feat_stats)     # image-feature mean / std
    xm, xs = _finalize_stats(*d_stats)        # depth-feature  mean / std
    scale = ys / (xs + 1e-12)                 # eps: guard constant depth feats
    bias = ym - xm * scale

    # standardize the depth half in place inside the combined buffer
    combined = standardize_into_combined(
        combined, d_res.reshape(N, Cf, S), scale, bias)
    # TODO(synk): roi_heads / loss dicts are external registry modules; the
    # combined per-level feature map (the tensor they consume) is returned.
    return combined.reshape(N, 2 * Cf, H, W)


# ----------------------------------------------------------------------------
# Pure-JAX reference (for correctness check only)
# ----------------------------------------------------------------------------
def _reference_forward(x, params):
    N, C, H, W = x.shape
    hp = jax.lax.Precision.HIGHEST
    images = (x - params["pixel_mean"]) / params["pixel_std"]
    feats = jnp.maximum(
        jnp.einsum("nchw,cf->nfhw", images, params["w_backbone"], precision=hp)
        + params["b_backbone"][None, :, None, None], 0.0)
    d_in = (x[:, ::-1, :, :] / 255.0)[:, :, ::2, ::2]
    d_feat = jnp.maximum(
        jnp.einsum("nchw,cf->nfhw", d_in, params["w_depth"], precision=hp)
        + params["b_depth"][None, :, None, None], 0.0)
    rh = _interp_matrix(H, d_feat.shape[2])
    rw = _interp_matrix(W, d_feat.shape[3])
    d_res = jnp.einsum("hk,nckw,vw->nchv", rh, d_feat, rw, precision=hp)
    ym, ys = feats.mean(), feats.std(ddof=1)
    xm, xs = d_res.mean(), d_res.std(ddof=1)
    d_std = (d_res - xm) * (ys / xs) + ym
    return jnp.concatenate([feats, d_std], axis=1)


# ----------------------------------------------------------------------------
# Driver
# ----------------------------------------------------------------------------
def make_params(key, c_in, c_feat):
    k1, k2, k3, k4 = jax.random.split(key, 4)
    pixel_mean = jnp.array([103.53, 116.28, 123.675], jnp.float32)[:c_in]
    pixel_std = jnp.array([57.375, 57.12, 58.395], jnp.float32)[:c_in]
    return {
        "pixel_mean": pixel_mean.reshape(1, c_in, 1, 1),
        "pixel_std": pixel_std.reshape(1, c_in, 1, 1),
        "w_backbone": jax.random.normal(k1, (c_in, c_feat), jnp.float32) * 0.1,
        "b_backbone": jax.random.normal(k2, (c_feat,), jnp.float32) * 0.01,
        "w_depth": jax.random.normal(k3, (c_in, c_feat), jnp.float32) * 0.1,
        "b_depth": jax.random.normal(k4, (c_feat,), jnp.float32) * 0.01,
    }


if __name__ == "__main__":
    N, C, H, W = 2, 3, 16, 16
    C_FEAT = 32

    key = jax.random.PRNGKey(0)
    k_img, k_par = jax.random.split(key)
    x = jax.random.uniform(k_img, (N, C, H, W), jnp.float32, 0.0, 255.0)
    params = make_params(k_par, C, C_FEAT)

    out = jax.jit(rcnn3d_combined_features_forward)(x, params)
    out = jax.block_until_ready(out)

    assert out.shape == (N, 2 * C_FEAT, H, W), out.shape
    assert bool(jnp.all(jnp.isfinite(out)))

    ref = _reference_forward(x, params)
    max_err = float(jnp.max(jnp.abs(out - ref)))
    # 2e-2: the resize matmuls use bf16 operands (f32 accumulate) per the
    # performance review; everything else is f32.
    assert max_err < 2e-2, f"max abs error vs reference: {max_err}"

    print("KERNEL_OK")
</pallas_src>

<mosaic_0001>
module attributes {stable_mosaic.version = 11 : i64} {
  func.func private @main(%arg0: i32) attributes {dimension_semantics = [#tpu.dimension_semantics<core_parallel>], iteration_bounds = array<i64: 2>, tpu.core_type = #tpu.core_type<sc_scalar_subcore>, window_params = []} {
    return
  }
}

module attributes {stable_mosaic.version = 11 : i64} {
  func.func private @main(%arg0: i32) attributes {dimension_semantics = [#tpu.dimension_semantics<core_parallel>], iteration_bounds = array<i64: 2>, tpu.core_type = #tpu.core_type<sc_scalar_subcore>, window_params = []} {
    return
  }
}

module attributes {stable_mosaic.version = 11 : i64} {
  func.func @_conv1x1_relu_stats_kernel(%arg0: i32, %arg1: i32, %arg2: memref<1x3x64xf32, #tpu.memory_space<vmem>>, %arg3: memref<32x3xf32, #tpu.memory_space<vmem>>, %arg4: memref<32x1xf32, #tpu.memory_space<vmem>>, %arg5: memref<1x32x64xf32, #tpu.memory_space<vmem>>, %arg6: memref<1x1x1x128xf32, #tpu.memory_space<vmem>>, %arg7: memref<1x1x1x128xf32, #tpu.memory_space<vmem>>) attributes {dimension_semantics = [#tpu.dimension_semantics<parallel>, #tpu.dimension_semantics<parallel>], iteration_bounds = array<i64: 2, 1>, scalar_prefetch = 0 : i64, scratch_operands = 0 : i64, tpu.core_type = #tpu.core_type<tc>, window_params = [{transform_indices = @transform_0, window_bounds = array<i64: 1, 3, 64>}, {pipeline_mode = #tpu.pipeline_mode<synchronous>, transform_indices = @transform_1, window_bounds = array<i64: 32, 3>}, {pipeline_mode = #tpu.pipeline_mode<synchronous>, transform_indices = @transform_2, window_bounds = array<i64: 32, 1>}, {transform_indices = @transform_3, window_bounds = array<i64: 1, 32, 64>}, {transform_indices = @transform_4, window_bounds = array<i64: 1, 1, 1, 128>}, {transform_indices = @transform_5, window_bounds = array<i64: 1, 1, 1, 128>}]} {
    %c0 = arith.constant 0 : index
    %c0_0 = arith.constant 0 : index
    %c0_1 = arith.constant 0 : index
    %0 = vector.load %arg2[%c0, %c0_0, %c0_1] : memref<1x3x64xf32, #tpu.memory_space<vmem>>, vector<1x3x64xf32>
    %1 = vector.shape_cast %0 : vector<1x3x64xf32> to vector<3x64xf32>
    %c0_2 = arith.constant 0 : index
    %c0_3 = arith.constant 0 : index
    %2 = vector.load %arg3[%c0_2, %c0_3] : memref<32x3xf32, #tpu.memory_space<vmem>>, vector<32x3xf32>
    %3 = vector.extract_strided_slice %2 {offsets = [0, 0], sizes = [32, 1], strides = [1, 1]} : vector<32x3xf32> to vector<32x1xf32>
    %4 = vector.extract_strided_slice %1 {offsets = [0, 0], sizes = [1, 64], strides = [1, 1]} : vector<3x64xf32> to vector<1x64xf32>
    %5 = vector.broadcast %3 : vector<32x1xf32> to vector<32x64xf32>
    %6 = vector.broadcast %4 : vector<1x64xf32> to vector<32x64xf32>
    %7 = arith.mulf %5, %6 : vector<32x64xf32>
    %8 = vector.extract_strided_slice %2 {offsets = [0, 1], sizes = [32, 1], strides = [1, 1]} : vector<32x3xf32> to vector<32x1xf32>
    %9 = vector.extract_strided_slice %1 {offsets = [1, 0], sizes = [1, 64], strides = [1, 1]} : vector<3x64xf32> to vector<1x64xf32>
    %10 = vector.broadcast %8 : vector<32x1xf32> to vector<32x64xf32>
    %11 = vector.broadcast %9 : vector<1x64xf32> to vector<32x64xf32>
    %12 = arith.mulf %10, %11 : vector<32x64xf32>
    %13 = arith.addf %7, %12 : vector<32x64xf32>
    %14 = vector.extract_strided_slice %2 {offsets = [0, 2], sizes = [32, 1], strides = [1, 1]} : vector<32x3xf32> to vector<32x1xf32>
    %15 = vector.extract_strided_slice %1 {offsets = [2, 0], sizes = [1, 64], strides = [1, 1]} : vector<3x64xf32> to vector<1x64xf32>
    %16 = vector.broadcast %14 : vector<32x1xf32> to vector<32x64xf32>
    %17 = vector.broadcast %15 : vector<1x64xf32> to vector<32x64xf32>
    %18 = arith.mulf %16, %17 : vector<32x64xf32>
    %19 = arith.addf %13, %18 : vector<32x64xf32>
    %c0_4 = arith.constant 0 : index
    %c0_5 = arith.constant 0 : index
    %20 = vector.load %arg4[%c0_4, %c0_5] : memref<32x1xf32, #tpu.memory_space<vmem>>, vector<32x1xf32>
    %21 = vector.broadcast %20 : vector<32x1xf32> to vector<32x64xf32>
    %22 = arith.addf %19, %21 : vector<32x64xf32>
    %cst = arith.constant 0.000000e+00 : f32
    %23 = vector.broadcast %cst : f32 to vector<32x64xf32>
    %24 = arith.maximumf %22, %23 : vector<32x64xf32>
    %c0_6 = arith.constant 0 : index
    %c0_7 = arith.constant 0 : index
    %c0_8 = arith.constant 0 : index
    %25 = vector.load %arg5[%c0_6, %c0_7, %c0_8] : memref<1x32x64xf32, #tpu.memory_space<vmem>>, vector<1x32x64xf32>
    %26 = vector.shape_cast %25 : vector<1x32x64xf32> to vector<32x64xf32>
    %27 = vector.shape_cast %24 : vector<32x64xf32> to vector<1x32x64xf32>
    tpu.vector_store %arg5[%c0_6, %c0_7, %c0_8], %27 {strides = array<i32>} : memref<1x32x64xf32, #tpu.memory_space<vmem>>, vector<1x32x64xf32>,
    %28 = vector.shape_cast %24 : vector<32x64xf32> to vector<1x32x64xf32>
    %cst_9 = arith.constant dense<0.000000e+00> : vector<1xf32>
    %29 = vector.multi_reduction <add>, %28, %cst_9 [1, 2] : vector<1x32x64xf32> to vector<1xf32>
    %30 = vector.shape_cast %29 : vector<1xf32> to vector<1x1x1xf32>
    %31 = vector.extract %30[0, 0, 0] : f32 from vector<1x1x1xf32>
    %32 = vector.broadcast %31 : f32 to vector<1x1x1x128xf32>
    %c0_10 = arith.constant 0 : index
    %c0_11 = arith.constant 0 : index
    %c0_12 = arith.constant 0 : index
    %c0_13 = arith.constant 0 : index
    %33 = vector.load %arg6[%c0_10, %c0_11, %c0_12, %c0_13] : memref<1x1x1x128xf32, #tpu.memory_space<vmem>>, vector<1x1x1x128xf32>
    tpu.vector_store %arg6[%c0_10, %c0_11, %c0_12, %c0_13], %32 {strides = array<i32>} : memref<1x1x1x128xf32, #tpu.memory_space<vmem>>, vector<1x1x1x128xf32>,
    %34 = arith.mulf %24, %24 : vector<32x64xf32>
    %35 = vector.shape_cast %34 : vector<32x64xf32> to vector<1x32x64xf32>
    %cst_14 = arith.constant dense<0.000000e+00> : vector<1xf32>
    %36 = vector.multi_reduction <add>, %35, %cst_14 [1, 2] : vector<1x32x64xf32> to vector<1xf32>
    %37 = vector.shape_cast %36 : vector<1xf32> to vector<1x1x1xf32>
    %38 = vector.extract %37[0, 0, 0] : f32 from vector<1x1x1xf32>
    %39 = vector.broadcast %38 : f32 to vector<1x1x1x128xf32>
    %c0_15 = arith.constant 0 : index
    %c0_16 = arith.constant 0 : index
    %c0_17 = arith.constant 0 : index
    %c0_18 = arith.constant 0 : index
    %40 = vector.load %arg7[%c0_15, %c0_16, %c0_17, %c0_18] : memref<1x1x1x128xf32, #tpu.memory_space<vmem>>, vector<1x1x1x128xf32>
    tpu.vector_store %arg7[%c0_15, %c0_16, %c0_17, %c0_18], %39 {strides = array<i32>} : memref<1x1x1x128xf32, #tpu.memory_space<vmem>>, vector<1x1x1x128xf32>,
    return
  }
  func.func @transform_0(%arg0: i32, %arg1: i32) -> (i32, i32, i32) {
    %c0_i32 = arith.constant 0 : i32
    %c0_i32_0 = arith.constant 0 : i32
    return %arg0, %c0_i32, %arg1 : i32, i32, i32
  }
  func.func @transform_1(%arg0: i32, %arg1: i32) -> (i32, i32) {
    %c0_i32 = arith.constant 0 : i32
    %c0_i32_0 = arith.constant 0 : i32
    %c0_i32_1 = arith.constant 0 : i32
    return %c0_i32, %c0_i32_0 : i32, i32
  }
  func.func @transform_2(%arg0: i32, %arg1: i32) -> (i32, i32) {
    %c0_i32 = arith.constant 0 : i32
    %c0_i32_0 = arith.constant 0 : i32
    %c0_i32_1 = arith.constant 0 : i32
    return %c0_i32, %c0_i32_0 : i32, i32
  }
  func.func @transform_3(%arg0: i32, %arg1: i32) -> (i32, i32, i32) {
    %c0_i32 = arith.constant 0 : i32
    %c0_i32_0 = arith.constant 0 : i32
    return %arg0, %c0_i32, %arg1 : i32, i32, i32
  }
  func.func @transform_4(%arg0: i32, %arg1: i32) -> (i32, i32, i32, i32) {
    %c0_i32 = arith.constant 0 : i32
    %c0_i32_0 = arith.constant 0 : i32
    %c0_i32_1 = arith.constant 0 : i32
    return %arg0, %arg1, %c0_i32, %c0_i32_0 : i32, i32, i32, i32
  }
  func.func @transform_5(%arg0: i32, %arg1: i32) -> (i32, i32, i32, i32) {
    %c0_i32 = arith.constant 0 : i32
    %c0_i32_0 = arith.constant 0 : i32
    %c0_i32_1 = arith.constant 0 : i32
    return %arg0, %arg1, %c0_i32, %c0_i32_0 : i32, i32, i32, i32
  }
}

module attributes {stable_mosaic.version = 11 : i64} {
  func.func @_conv1x1_relu_stats_kernel(%arg0: i32, %arg1: i32, %arg2: memref<1x3x256xf32, #tpu.memory_space<vmem>>, %arg3: memref<32x3xf32, #tpu.memory_space<vmem>>, %arg4: memref<32x1xf32, #tpu.memory_space<vmem>>, %arg5: memref<1x32x256xf32, #tpu.memory_space<vmem>>, %arg6: memref<1x1x1x128xf32, #tpu.memory_space<vmem>>, %arg7: memref<1x1x1x128xf32, #tpu.memory_space<vmem>>) attributes {dimension_semantics = [#tpu.dimension_semantics<parallel>, #tpu.dimension_semantics<parallel>], iteration_bounds = array<i64: 2, 1>, scalar_prefetch = 0 : i64, scratch_operands = 0 : i64, tpu.core_type = #tpu.core_type<tc>, window_params = [{transform_indices = @transform_0, window_bounds = array<i64: 1, 3, 256>}, {pipeline_mode = #tpu.pipeline_mode<synchronous>, transform_indices = @transform_1, window_bounds = array<i64: 32, 3>}, {pipeline_mode = #tpu.pipeline_mode<synchronous>, transform_indices = @transform_2, window_bounds = array<i64: 32, 1>}, {transform_indices = @transform_3, window_bounds = array<i64: 1, 32, 256>}, {transform_indices = @transform_4, window_bounds = array<i64: 1, 1, 1, 128>}, {transform_indices = @transform_5, window_bounds = array<i64: 1, 1, 1, 128>}]} {
    %c0 = arith.constant 0 : index
    %c0_0 = arith.constant 0 : index
    %c0_1 = arith.constant 0 : index
    %0 = vector.load %arg2[%c0, %c0_0, %c0_1] : memref<1x3x256xf32, #tpu.memory_space<vmem>>, vector<1x3x256xf32>
    %1 = vector.shape_cast %0 : vector<1x3x256xf32> to vector<3x256xf32>
    %c0_2 = arith.constant 0 : index
    %c0_3 = arith.constant 0 : index
    %2 = vector.load %arg3[%c0_2, %c0_3] : memref<32x3xf32, #tpu.memory_space<vmem>>, vector<32x3xf32>
    %3 = vector.extract_strided_slice %2 {offsets = [0, 0], sizes = [32, 1], strides = [1, 1]} : vector<32x3xf32> to vector<32x1xf32>
    %4 = vector.extract_strided_slice %1 {offsets = [0, 0], sizes = [1, 256], strides = [1, 1]} : vector<3x256xf32> to vector<1x256xf32>
    %5 = vector.broadcast %3 : vector<32x1xf32> to vector<32x256xf32>
    %6 = vector.broadcast %4 : vector<1x256xf32> to vector<32x256xf32>
    %7 = arith.mulf %5, %6 : vector<32x256xf32>
    %8 = vector.extract_strided_slice %2 {offsets = [0, 1], sizes = [32, 1], strides = [1, 1]} : vector<32x3xf32> to vector<32x1xf32>
    %9 = vector.extract_strided_slice %1 {offsets = [1, 0], sizes = [1, 256], strides = [1, 1]} : vector<3x256xf32> to vector<1x256xf32>
    %10 = vector.broadcast %8 : vector<32x1xf32> to vector<32x256xf32>
    %11 = vector.broadcast %9 : vector<1x256xf32> to vector<32x256xf32>
    %12 = arith.mulf %10, %11 : vector<32x256xf32>
    %13 = arith.addf %7, %12 : vector<32x256xf32>
    %14 = vector.extract_strided_slice %2 {offsets = [0, 2], sizes = [32, 1], strides = [1, 1]} : vector<32x3xf32> to vector<32x1xf32>
    %15 = vector.extract_strided_slice %1 {offsets = [2, 0], sizes = [1, 256], strides = [1, 1]} : vector<3x256xf32> to vector<1x256xf32>
    %16 = vector.broadcast %14 : vector<32x1xf32> to vector<32x256xf32>
    %17 = vector.broadcast %15 : vector<1x256xf32> to vector<32x256xf32>
    %18 = arith.mulf %16, %17 : vector<32x256xf32>
    %19 = arith.addf %13, %18 : vector<32x256xf32>
    %c0_4 = arith.constant 0 : index
    %c0_5 = arith.constant 0 : index
    %20 = vector.load %arg4[%c0_4, %c0_5] : memref<32x1xf32, #tpu.memory_space<vmem>>, vector<32x1xf32>
    %21 = vector.broadcast %20 : vector<32x1xf32> to vector<32x256xf32>
    %22 = arith.addf %19, %21 : vector<32x256xf32>
    %cst = arith.constant 0.000000e+00 : f32
    %23 = vector.broadcast %cst : f32 to vector<32x256xf32>
    %24 = arith.maximumf %22, %23 : vector<32x256xf32>
    %c0_6 = arith.constant 0 : index
    %c0_7 = arith.constant 0 : index
    %c0_8 = arith.constant 0 : index
    %25 = vector.load %arg5[%c0_6, %c0_7, %c0_8] : memref<1x32x256xf32, #tpu.memory_space<vmem>>, vector<1x32x256xf32>
    %26 = vector.shape_cast %25 : vector<1x32x256xf32> to vector<32x256xf32>
    %27 = vector.shape_cast %24 : vector<32x256xf32> to vector<1x32x256xf32>
    tpu.vector_store %arg5[%c0_6, %c0_7, %c0_8], %27 {strides = array<i32>} : memref<1x32x256xf32, #tpu.memory_space<vmem>>, vector<1x32x256xf32>,
    %28 = vector.shape_cast %24 : vector<32x256xf32> to vector<1x32x256xf32>
    %cst_9 = arith.constant dense<0.000000e+00> : vector<1xf32>
    %29 = vector.multi_reduction <add>, %28, %cst_9 [1, 2] : vector<1x32x256xf32> to vector<1xf32>
    %30 = vector.shape_cast %29 : vector<1xf32> to vector<1x1x1xf32>
    %31 = vector.extract %30[0, 0, 0] : f32 from vector<1x1x1xf32>
    %32 = vector.broadcast %31 : f32 to vector<1x1x1x128xf32>
    %c0_10 = arith.constant 0 : index
    %c0_11 = arith.constant 0 : index
    %c0_12 = arith.constant 0 : index
    %c0_13 = arith.constant 0 : index
    %33 = vector.load %arg6[%c0_10, %c0_11, %c0_12, %c0_13] : memref<1x1x1x128xf32, #tpu.memory_space<vmem>>, vector<1x1x1x128xf32>
    tpu.vector_store %arg6[%c0_10, %c0_11, %c0_12, %c0_13], %32 {strides = array<i32>} : memref<1x1x1x128xf32, #tpu.memory_space<vmem>>, vector<1x1x1x128xf32>,
    %34 = arith.mulf %24, %24 : vector<32x256xf32>
    %35 = vector.shape_cast %34 : vector<32x256xf32> to vector<1x32x256xf32>
    %cst_14 = arith.constant dense<0.000000e+00> : vector<1xf32>
    %36 = vector.multi_reduction <add>, %35, %cst_14 [1, 2] : vector<1x32x256xf32> to vector<1xf32>
    %37 = vector.shape_cast %36 : vector<1xf32> to vector<1x1x1xf32>
    %38 = vector.extract %37[0, 0, 0] : f32 from vector<1x1x1xf32>
    %39 = vector.broadcast %38 : f32 to vector<1x1x1x128xf32>
    %c0_15 = arith.constant 0 : index
    %c0_16 = arith.constant 0 : index
    %c0_17 = arith.constant 0 : index
    %c0_18 = arith.constant 0 : index
    %40 = vector.load %arg7[%c0_15, %c0_16, %c0_17, %c0_18] : memref<1x1x1x128xf32, #tpu.memory_space<vmem>>, vector<1x1x1x128xf32>
    tpu.vector_store %arg7[%c0_15, %c0_16, %c0_17, %c0_18], %39 {strides = array<i32>} : memref<1x1x1x128xf32, #tpu.memory_space<vmem>>, vector<1x1x1x128xf32>,
    return
  }
  func.func @transform_0(%arg0: i32, %arg1: i32) -> (i32, i32, i32) {
    %c0_i32 = arith.constant 0 : i32
    %c0_i32_0 = arith.constant 0 : i32
    return %arg0, %c0_i32, %arg1 : i32, i32, i32
  }
  func.func @transform_1(%arg0: i32, %arg1: i32) -> (i32, i32) {
    %c0_i32 = arith.constant 0 : i32
    %c0_i32_0 = arith.constant 0 : i32
    %c0_i32_1 = arith.constant 0 : i32
    return %c0_i32, %c0_i32_0 : i32, i32
  }
  func.func @transform_2(%arg0: i32, %arg1: i32) -> (i32, i32) {
    %c0_i32 = arith.constant 0 : i32
    %c0_i32_0 = arith.constant 0 : i32
    %c0_i32_1 = arith.constant 0 : i32
    return %c0_i32, %c0_i32_0 : i32, i32
  }
  func.func @transform_3(%arg0: i32, %arg1: i32) -> (i32, i32, i32) {
    %c0_i32 = arith.constant 0 : i32
    %c0_i32_0 = arith.constant 0 : i32
    return %arg0, %c0_i32, %arg1 : i32, i32, i32
  }
  func.func @transform_4(%arg0: i32, %arg1: i32) -> (i32, i32, i32, i32) {
    %c0_i32 = arith.constant 0 : i32
    %c0_i32_0 = arith.constant 0 : i32
    %c0_i32_1 = arith.constant 0 : i32
    return %arg0, %arg1, %c0_i32, %c0_i32_0 : i32, i32, i32, i32
  }
  func.func @transform_5(%arg0: i32, %arg1: i32) -> (i32, i32, i32, i32) {
    %c0_i32 = arith.constant 0 : i32
    %c0_i32_0 = arith.constant 0 : i32
    %c0_i32_1 = arith.constant 0 : i32
    return %arg0, %arg1, %c0_i32, %c0_i32_0 : i32, i32, i32, i32
  }
}

module attributes {stable_mosaic.version = 11 : i64} {
  func.func @_bilinear_stats_kernel(%arg0: i32, %arg1: i32, %arg2: memref<16x8xbf16, #tpu.memory_space<vmem>>, %arg3: memref<8x16xbf16, #tpu.memory_space<vmem>>, %arg4: memref<8x8x8xf32, #tpu.memory_space<vmem>>, %arg5: memref<8x16x16xf32, #tpu.memory_space<vmem>>, %arg6: memref<1x1x1x128xf32, #tpu.memory_space<vmem>>, %arg7: memref<1x1x1x128xf32, #tpu.memory_space<vmem>>) attributes {dimension_semantics = [#tpu.dimension_semantics<parallel>, #tpu.dimension_semantics<parallel>], iteration_bounds = array<i64: 8, 1>, scalar_prefetch = 0 : i64, scratch_operands = 0 : i64, tpu.core_type = #tpu.core_type<tc>, window_params = [{transform_indices = @transform_0, window_bounds = array<i64: 16, 8>}, {pipeline_mode = #tpu.pipeline_mode<synchronous>, transform_indices = @transform_1, window_bounds = array<i64: 8, 16>}, {transform_indices = @transform_2, window_bounds = array<i64: 8, 8, 8>}, {transform_indices = @transform_3, window_bounds = array<i64: 8, 16, 16>}, {transform_indices = @transform_4, window_bounds = array<i64: 1, 1, 1, 128>}, {transform_indices = @transform_5, window_bounds = array<i64: 1, 1, 1, 128>}]} {
    %c0 = arith.constant 0 : index
    %c0_0 = arith.constant 0 : index
    %0 = vector.load %arg2[%c0, %c0_0] : memref<16x8xbf16, #tpu.memory_space<vmem>>, vector<16x8xbf16>
    %c0_1 = arith.constant 0 : index
    %c0_2 = arith.constant 0 : index
    %1 = vector.load %arg3[%c0_1, %c0_2] : memref<8x16xbf16, #tpu.memory_space<vmem>>, vector<8x16xbf16>
    %c0_3 = arith.constant 0 : index
    %c0_4 = arith.constant 0 : index
    %c0_5 = arith.constant 0 : index
    %2 = vector.load %arg4[%c0_3, %c0_4, %c0_5] : memref<8x8x8xf32, #tpu.memory_space<vmem>>, vector<8x8x8xf32>
    %3 = vector.shape_cast %2 : vector<8x8x8xf32> to vector<64x8xf32>
    %4 = arith.truncf %3 : vector<64x8xf32> to vector<64x8xbf16>
    %cst = arith.constant dense<0.000000e+00> : vector<64x16xf32>
    %5 = tpu.matmul %4, %1, %cst {dimension_numbers = #tpu.dot_dimension_numbers<[1], [0], [0], [1], [0, 0, 1, 1], [], []>} : vector<64x8xbf16>, vector<8x16xbf16>, vector<64x16xf32> -> vector<64x16xf32>
    %6 = vector.extract_strided_slice %5 {offsets = [0, 0], sizes = [8, 16], strides = [1, 1]} : vector<64x16xf32> to vector<8x16xf32>
    %7 = arith.truncf %6 : vector<8x16xf32> to vector<8x16xbf16>
    %cst_6 = arith.constant dense<0.000000e+00> : vector<16x16xf32>
    %8 = tpu.matmul %0, %7, %cst_6 {dimension_numbers = #tpu.dot_dimension_numbers<[1], [0], [0], [1], [0, 0, 1, 1], [], []>} : vector<16x8xbf16>, vector<8x16xbf16>, vector<16x16xf32> -> vector<16x16xf32>
    %c0_7 = arith.constant 0 : index
    %c0_8 = arith.constant 0 : index
    %c0_9 = arith.constant 0 : index
    %9 = vector.load %arg5[%c0_7, %c0_8, %c0_9] : memref<8x16x16xf32, #tpu.memory_space<vmem>>, vector<1x16x16xf32>
    %10 = vector.shape_cast %9 : vector<1x16x16xf32> to vector<16x16xf32>
    %11 = vector.shape_cast %8 : vector<16x16xf32> to vector<1x16x16xf32>
    tpu.vector_store %arg5[%c0_7, %c0_8, %c0_9], %11 {strides = array<i32>} : memref<8x16x16xf32, #tpu.memory_space<vmem>>, vector<1x16x16xf32>,
    %12 = vector.shape_cast %8 : vector<16x16xf32> to vector<1x16x16xf32>
    %cst_10 = arith.constant dense<0.000000e+00> : vector<1xf32>
    %13 = vector.multi_reduction <add>, %12, %cst_10 [1, 2] : vector<1x16x16xf32> to vector<1xf32>
    %14 = vector.shape_cast %13 : vector<1xf32> to vector<1x1x1xf32>
    %15 = vector.extract %14[0, 0, 0] : f32 from vector<1x1x1xf32>
    %cst_11 = arith.constant 0.000000e+00 : f32
    %16 = arith.addf %cst_11, %15 : f32
    %17 = arith.mulf %8, %8 : vector<16x16xf32>
    %18 = vector.shape_cast %17 : vector<16x16xf32> to vector<1x16x16xf32>
    %cst_12 = arith.constant dense<0.000000e+00> : vector<1xf32>
    %19 = vector.multi_reduction <add>, %18, %cst_12 [1, 2] : vector<1x16x16xf32> to vector<1xf32>
    %20 = vector.shape_cast %19 : vector<1xf32> to vector<1x1x1xf32>
    %21 = vector.extract %20[0, 0, 0] : f32 from vector<1x1x1xf32>
    %cst_13 = arith.constant 0.000000e+00 : f32
    %22 = arith.addf %cst_13, %21 : f32
    %23 = vector.extract_strided_slice %5 {offsets = [8, 0], sizes = [8, 16], strides = [1, 1]} : vector<64x16xf32> to vector<8x16xf32>
    %24 = arith.truncf %23 : vector<8x16xf32> to vector<8x16xbf16>
    %cst_14 = arith.constant dense<0.000000e+00> : vector<16x16xf32>
    %25 = tpu.matmul %0, %24, %cst_14 {dimension_numbers = #tpu.dot_dimension_numbers<[1], [0], [0], [1], [0, 0, 1, 1], [], []>} : vector<16x8xbf16>, vector<8x16xbf16>, vector<16x16xf32> -> vector<16x16xf32>
    %c1 = arith.constant 1 : index
    %c0_15 = arith.constant 0 : index
    %c0_16 = arith.constant 0 : index
    %26 = vector.load %arg5[%c1, %c0_15, %c0_16] : memref<8x16x16xf32, #tpu.memory_space<vmem>>, vector<1x16x16xf32>
    %27 = vector.shape_cast %26 : vector<1x16x16xf32> to vector<16x16xf32>
    %28 = vector.shape_cast %25 : vector<16x16xf32> to vector<1x16x16xf32>
    tpu.vector_store %arg5[%c1, %c0_15, %c0_16], %28 {strides = array<i32>} : memref<8x16x16xf32, #tpu.memory_space<vmem>>, vector<1x16x16xf32>,
    %29 = vector.shape_cast %25 : vector<16x16xf32> to vector<1x16x16xf32>
    %cst_17 = arith.constant dense<0.000000e+00> : vector<1xf32>
    %30 = vector.multi_reduction <add>, %29, %cst_17 [1, 2] : vector<1x16x16xf32> to vector<1xf32>
    %31 = vector.shape_cast %30 : vector<1xf32> to vector<1x1x1xf32>
    %32 = vector.extract %31[0, 0, 0] : f32 from vector<1x1x1xf32>
    %33 = arith.addf %16, %32 : f32
    %34 = arith.mulf %25, %25 : vector<16x16xf32>
    %35 = vector.shape_cast %34 : vector<16x16xf32> to vector<1x16x16xf32>
    %cst_18 = arith.constant dense<0.000000e+00> : vector<1xf32>
    %36 = vector.multi_reduction <add>, %35, %cst_18 [1, 2] : vector<1x16x16xf32> to vector<1xf32>
    %37 = vector.shape_cast %36 : vector<1xf32> to vector<1x1x1xf32>
    %38 = vector.extract %37[0, 0, 0] : f32 from vector<1x1x1xf32>
    %39 = arith.addf %22, %38 : f32
    %40 = vector.extract_strided_slice %5 {offsets = [16, 0], sizes = [8, 16], strides = [1, 1]} : vector<64x16xf32> to vector<8x16xf32>
    %41 = arith.truncf %40 : vector<8x16xf32> to vector<8x16xbf16>
    %cst_19 = arith.constant dense<0.000000e+00> : vector<16x16xf32>
    %42 = tpu.matmul %0, %41, %cst_19 {dimension_numbers = #tpu.dot_dimension_numbers<[1], [0], [0], [1], [0, 0, 1, 1], [], []>} : vector<16x8xbf16>, vector<8x16xbf16>, vector<16x16xf32> -> vector<16x16xf32>
    %c2 = arith.constant 2 : index
    %c0_20 = arith.constant 0 : index
    %c0_21 = arith.constant 0 : index
    %43 = vector.load %arg5[%c2, %c0_20, %c0_21] : memref<8x16x16xf32, #tpu.memory_space<vmem>>, vector<1x16x16xf32>
    %44 = vector.shape_cast %43 : vector<1x16x16xf32> to vector<16x16xf32>
    %45 = vector.shape_cast %42 : vector<16x16xf32> to vector<1x16x16xf32>
    tpu.vector_store %arg5[%c2, %c0_20, %c0_21], %45 {strides = array<i32>} : memref<8x16x16xf32, #tpu.memory_space<vmem>>, vector<1x16x16xf32>,
    %46 = vector.shape_cast %42 : vector<16x16xf32> to vector<1x16x16xf32>
    %cst_22 = arith.constant dense<0.000000e+00> : vector<1xf32>
    %47 = vector.multi_reduction <add>, %46, %cst_22 [1, 2] : vector<1x16x16xf32> to vector<1xf32>
    %48 = vector.shape_cast %47 : vector<1xf32> to vector<1x1x1xf32>
    %49 = vector.extract %48[0, 0, 0] : f32 from vector<1x1x1xf32>
    %50 = arith.addf %33, %49 : f32
    %51 = arith.mulf %42, %42 : vector<16x16xf32>
    %52 = vector.shape_cast %51 : vector<16x16xf32> to vector<1x16x16xf32>
    %cst_23 = arith.constant dense<0.000000e+00> : vector<1xf32>
    %53 = vector.multi_reduction <add>, %52, %cst_23 [1, 2] : vector<1x16x16xf32> to vector<1xf32>
    %54 = vector.shape_cast %53 : vector<1xf32> to vector<1x1x1xf32>
    %55 = vector.extract %54[0, 0, 0] : f32 from vector<1x1x1xf32>
    %56 = arith.addf %39, %55 : f32
    %57 = vector.extract_strided_slice %5 {offsets = [24, 0], sizes = [8, 16], strides = [1, 1]} : vector<64x16xf32> to vector<8x16xf32>
    %58 = arith.truncf %57 : vector<8x16xf32> to vector<8x16xbf16>
    %cst_24 = arith.constant dense<0.000000e+00> : vector<16x16xf32>
    %59 = tpu.matmul %0, %58, %cst_24 {dimension_numbers = #tpu.dot_dimension_numbers<[1], [0], [0], [1], [0, 0, 1, 1], [], []>} : vector<16x8xbf16>, vector<8x16xbf16>, vector<16x16xf32> -> vector<16x16xf32>
    %c3 = arith.constant 3 : index
    %c0_25 = arith.constant 0 : index
    %c0_26 = arith.constant 0 : index
    %60 = vector.load %arg5[%c3, %c0_25, %c0_26] : memref<8x16x16xf32, #tpu.memory_space<vmem>>, vector<1x16x16xf32>
    %61 = vector.shape_cast %60 : vector<1x16x16xf32> to vector<16x16xf32>
    %62 = vector.shape_cast %59 : vector<16x16xf32> to vector<1x16x16xf32>
    tpu.vector_store %arg5[%c3, %c0_25, %c0_26], %62 {strides = array<i32>} : memref<8x16x16xf32, #tpu.memory_space<vmem>>, vector<1x16x16xf32>,
    %63 = vector.shape_cast %59 : vector<16x16xf32> to vector<1x16x16xf32>
    %cst_27 = arith.constant dense<0.000000e+00> : vector<1xf32>
    %64 = vector.multi_reduction <add>, %63, %cst_27 [1, 2] : vector<1x16x16xf32> to vector<1xf32>
    %65 = vector.shape_cast %64 : vector<1xf32> to vector<1x1x1xf32>
    %66 = vector.extract %65[0, 0, 0] : f32 from vector<1x1x1xf32>
    %67 = arith.addf %50, %66 : f32
    %68 = arith.mulf %59, %59 : vector<16x16xf32>
    %69 = vector.shape_cast %68 : vector<16x16xf32> to vector<1x16x16xf32>
    %cst_28 = arith.constant dense<0.000000e+00> : vector<1xf32>
    %70 = vector.multi_reduction <add>, %69, %cst_28 [1, 2] : vector<1x16x16xf32> to vector<1xf32>
    %71 = vector.shape_cast %70 : vector<1xf32> to vector<1x1x1xf32>
    %72 = vector.extract %71[0, 0, 0] : f32 from vector<1x1x1xf32>
    %73 = arith.addf %56, %72 : f32
    %74 = vector.extract_strided_slice %5 {offsets = [32, 0], sizes = [8, 16], strides = [1, 1]} : vector<64x16xf32> to vector<8x16xf32>
    %75 = arith.truncf %74 : vector<8x16xf32> to vector<8x16xbf16>
    %cst_29 = arith.constant dense<0.000000e+00> : vector<16x16xf32>
    %76 = tpu.matmul %0, %75, %cst_29 {dimension_numbers = #tpu.dot_dimension_numbers<[1], [0], [0], [1], [0, 0, 1, 1], [], []>} : vector<16x8xbf16>, vector<8x16xbf16>, vector<16x16xf32> -> vector<16x16xf32>
    %c4 = arith.constant 4 : index
    %c0_30 = arith.constant 0 : index
    %c0_31 = arith.constant 0 : index
    %77 = vector.load %arg5[%c4, %c0_30, %c0_31] : memref<8x16x16xf32, #tpu.memory_space<vmem>>, vector<1x16x16xf32>
    %78 = vector.shape_cast %77 : vector<1x16x16xf32> to vector<16x16xf32>
    %79 = vector.shape_cast %76 : vector<16x16xf32> to vector<1x16x16xf32>
    tpu.vector_store %arg5[%c4, %c0_30, %c0_31], %79 {strides = array<i32>} : memref<8x16x16xf32, #tpu.memory_space<vmem>>, vector<1x16x16xf32>,
    %80 = vector.shape_cast %76 : vector<16x16xf32> to vector<1x16x16xf32>
    %cst_32 = arith.constant dense<0.000000e+00> : vector<1xf32>
    %81 = vector.multi_reduction <add>, %80, %cst_32 [1, 2] : vector<1x16x16xf32> to vector<1xf32>
    %82 = vector.shape_cast %81 : vector<1xf32> to vector<1x1x1xf32>
    %83 = vector.extract %82[0, 0, 0] : f32 from vector<1x1x1xf32>
    %84 = arith.addf %67, %83 : f32
    %85 = arith.mulf %76, %76 : vector<16x16xf32>
    %86 = vector.shape_cast %85 : vector<16x16xf32> to vector<1x16x16xf32>
    %cst_33 = arith.constant dense<0.000000e+00> : vector<1xf32>
    %87 = vector.multi_reduction <add>, %86, %cst_33 [1, 2] : vector<1x16x16xf32> to vector<1xf32>
    %88 = vector.shape_cast %87 : vector<1xf32> to vector<1x1x1xf32>
    %89 = vector.extract %88[0, 0, 0] : f32 from vector<1x1x1xf32>
    %90 = arith.addf %73, %89 : f32
    %91 = vector.extract_strided_slice %5 {offsets = [40, 0], sizes = [8, 16], strides = [1, 1]} : vector<64x16xf32> to vector<8x16xf32>
    %92 = arith.truncf %91 : vector<8x16xf32> to vector<8x16xbf16>
    %cst_34 = arith.constant dense<0.000000e+00> : vector<16x16xf32>
    %93 = tpu.matmul %0, %92, %cst_34 {dimension_numbers = #tpu.dot_dimension_numbers<[1], [0], [0], [1], [0, 0, 1, 1], [], []>} : vector<16x8xbf16>, vector<8x16xbf16>, vector<16x16xf32> -> vector<16x16xf32>
    %c5 = arith.constant 5 : index
    %c0_35 = arith.constant 0 : index
    %c0_36 = arith.constant 0 : index
    %94 = vector.load %arg5[%c5, %c0_35, %c0_36] : memref<8x16x16xf32, #tpu.memory_space<vmem>>, vector<1x16x16xf32>
    %95 = vector.shape_cast %94 : vector<1x16x16xf32> to vector<16x16xf32>
    %96 = vector.shape_cast %93 : vector<16x16xf32> to vector<1x16x16xf32>
    tpu.vector_store %arg5[%c5, %c0_35, %c0_36], %96 {strides = array<i32>} : memref<8x16x16xf32, #tpu.memory_space<vmem>>, vector<1x16x16xf32>,
    %97 = vector.shape_cast %93 : vector<16x16xf32> to vector<1x16x16xf32>
    %cst_37 = arith.constant dense<0.000000e+00> : vector<1xf32>
    %98 = vector.multi_reduction <add>, %97, %cst_37 [1, 2] : vector<1x16x16xf32> to vector<1xf32>
    %99 = vector.shape_cast %98 : vector<1xf32> to vector<1x1x1xf32>
    %100 = vector.extract %99[0, 0, 0] : f32 from vector<1x1x1xf32>
    %101 = arith.addf %84, %100 : f32
    %102 = arith.mulf %93, %93 : vector<16x16xf32>
    %103 = vector.shape_cast %102 : vector<16x16xf32> to vector<1x16x16xf32>
    %cst_38 = arith.constant dense<0.000000e+00> : vector<1xf32>
    %104 = vector.multi_reduction <add>, %103, %cst_38 [1, 2] : vector<1x16x16xf32> to vector<1xf32>
    %105 = vector.shape_cast %104 : vector<1xf32> to vector<1x1x1xf32>
    %106 = vector.extract %105[0, 0, 0] : f32 from vector<1x1x1xf32>
    %107 = arith.addf %90, %106 : f32
    %108 = vector.extract_strided_slice %5 {offsets = [48, 0], sizes = [8, 16], strides = [1, 1]} : vector<64x16xf32> to vector<8x16xf32>
    %109 = arith.truncf %108 : vector<8x16xf32> to vector<8x16xbf16>
    %cst_39 = arith.constant dense<0.000000e+00> : vector<16x16xf32>
    %110 = tpu.matmul %0, %109, %cst_39 {dimension_numbers = #tpu.dot_dimension_numbers<[1], [0], [0], [1], [0, 0, 1, 1], [], []>} : vector<16x8xbf16>, vector<8x16xbf16>, vector<16x16xf32> -> vector<16x16xf32>
    %c6 = arith.constant 6 : index
    %c0_40 = arith.constant 0 : index
    %c0_41 = arith.constant 0 : index
    %111 = vector.load %arg5[%c6, %c0_40, %c0_41] : memref<8x16x16xf32, #tpu.memory_space<vmem>>, vector<1x16x16xf32>
    %112 = vector.shape_cast %111 : vector<1x16x16xf32> to vector<16x16xf32>
    %113 = vector.shape_cast %110 : vector<16x16xf32> to vector<1x16x16xf32>
    tpu.vector_store %arg5[%c6, %c0_40, %c0_41], %113 {strides = array<i32>} : memref<8x16x16xf32, #tpu.memory_space<vmem>>, vector<1x16x16xf32>,
    %114 = vector.shape_cast %110 : vector<16x16xf32> to vector<1x16x16xf32>
    %cst_42 = arith.constant dense<0.000000e+00> : vector<1xf32>
    %115 = vector.multi_reduction <add>, %114, %cst_42 [1, 2] : vector<1x16x16xf32> to vector<1xf32>
    %116 = vector.shape_cast %115 : vector<1xf32> to vector<1x1x1xf32>
    %117 = vector.extract %116[0, 0, 0] : f32 from vector<1x1x1xf32>
    %118 = arith.addf %101, %117 : f32
    %119 = arith.mulf %110, %110 : vector<16x16xf32>
    %120 = vector.shape_cast %119 : vector<16x16xf32> to vector<1x16x16xf32>
    %cst_43 = arith.constant dense<0.000000e+00> : vector<1xf32>
    %121 = vector.multi_reduction <add>, %120, %cst_43 [1, 2] : vector<1x16x16xf32> to vector<1xf32>
    %122 = vector.shape_cast %121 : vector<1xf32> to vector<1x1x1xf32>
    %123 = vector.extract %122[0, 0, 0] : f32 from vector<1x1x1xf32>
    %124 = arith.addf %107, %123 : f32
    %125 = vector.extract_strided_slice %5 {offsets = [56, 0], sizes = [8, 16], strides = [1, 1]} : vector<64x16xf32> to vector<8x16xf32>
    %126 = arith.truncf %125 : vector<8x16xf32> to vector<8x16xbf16>
    %cst_44 = arith.constant dense<0.000000e+00> : vector<16x16xf32>
    %127 = tpu.matmul %0, %126, %cst_44 {dimension_numbers = #tpu.dot_dimension_numbers<[1], [0], [0], [1], [0, 0, 1, 1], [], []>} : vector<16x8xbf16>, vector<8x16xbf16>, vector<16x16xf32> -> vector<16x16xf32>
    %c7 = arith.constant 7 : index
    %c0_45 = arith.constant 0 : index
    %c0_46 = arith.constant 0 : index
    %128 = vector.load %arg5[%c7, %c0_45, %c0_46] : memref<8x16x16xf32, #tpu.memory_space<vmem>>, vector<1x16x16xf32>
    %129 = vector.shape_cast %128 : vector<1x16x16xf32> to vector<16x16xf32>
    %130 = vector.shape_cast %127 : vector<16x16xf32> to vector<1x16x16xf32>
    tpu.vector_store %arg5[%c7, %c0_45, %c0_46], %130 {strides = array<i32>} : memref<8x16x16xf32, #tpu.memory_space<vmem>>, vector<1x16x16xf32>,
    %131 = vector.shape_cast %127 : vector<16x16xf32> to vector<1x16x16xf32>
    %cst_47 = arith.constant dense<0.000000e+00> : vector<1xf32>
    %132 = vector.multi_reduction <add>, %131, %cst_47 [1, 2] : vector<1x16x16xf32> to vector<1xf32>
    %133 = vector.shape_cast %132 : vector<1xf32> to vector<1x1x1xf32>
    %134 = vector.extract %133[0, 0, 0] : f32 from vector<1x1x1xf32>
    %135 = arith.addf %118, %134 : f32
    %136 = arith.mulf %127, %127 : vector<16x16xf32>
    %137 = vector.shape_cast %136 : vector<16x16xf32> to vector<1x16x16xf32>
    %cst_48 = arith.constant dense<0.000000e+00> : vector<1xf32>
    %138 = vector.multi_reduction <add>, %137, %cst_48 [1, 2] : vector<1x16x16xf32> to vector<1xf32>
    %139 = vector.shape_cast %138 : vector<1xf32> to vector<1x1x1xf32>
    %140 = vector.extract %139[0, 0, 0] : f32 from vector<1x1x1xf32>
    %141 = arith.addf %124, %140 : f32
    %142 = vector.broadcast %135 : f32 to vector<1x1x1x128xf32>
    %c0_49 = arith.constant 0 : index
    %c0_50 = arith.constant 0 : index
    %c0_51 = arith.constant 0 : index
    %c0_52 = arith.constant 0 : index
    %143 = vector.load %arg6[%c0_49, %c0_50, %c0_51, %c0_52] : memref<1x1x1x128xf32, #tpu.memory_space<vmem>>, vector<1x1x1x128xf32>
    tpu.vector_store %arg6[%c0_49, %c0_50, %c0_51, %c0_52], %142 {strides = array<i32>} : memref<1x1x1x128xf32, #tpu.memory_space<vmem>>, vector<1x1x1x128xf32>,
    %144 = vector.broadcast %141 : f32 to vector<1x1x1x128xf32>
    %c0_53 = arith.constant 0 : index
    %c0_54 = arith.constant 0 : index
    %c0_55 = arith.constant 0 : index
    %c0_56 = arith.constant 0 : index
    %145 = vector.load %arg7[%c0_53, %c0_54, %c0_55, %c0_56] : memref<1x1x1x128xf32, #tpu.memory_space<vmem>>, vector<1x1x1x128xf32>
    tpu.vector_store %arg7[%c0_53, %c0_54, %c0_55, %c0_56], %144 {strides = array<i32>} : memref<1x1x1x128xf32, #tpu.memory_space<vmem>>, vector<1x1x1x128xf32>,
    return
  }
  func.func @transform_0(%arg0: i32, %arg1: i32) -> (i32, i32) {
    %c0_i32 = arith.constant 0 : i32
    %c0_i32_0 = arith.constant 0 : i32
    return %arg1, %c0_i32 : i32, i32
  }
  func.func @transform_1(%arg0: i32, %arg1: i32) -> (i32, i32) {
    %c0_i32 = arith.constant 0 : i32
    %c0_i32_0 = arith.constant 0 : i32
    %c0_i32_1 = arith.constant 0 : i32
    return %c0_i32, %c0_i32_0 : i32, i32
  }
  func.func @transform_2(%arg0: i32, %arg1: i32) -> (i32, i32, i32) {
    %c0_i32 = arith.constant 0 : i32
    %c0_i32_0 = arith.constant 0 : i32
    %c0_i32_1 = arith.constant 0 : i32
    return %arg0, %c0_i32, %c0_i32_0 : i32, i32, i32
  }
  func.func @transform_3(%arg0: i32, %arg1: i32) -> (i32, i32, i32) {
    %c0_i32 = arith.constant 0 : i32
    %c0_i32_0 = arith.constant 0 : i32
    return %arg0, %arg1, %c0_i32 : i32, i32, i32
  }
  func.func @transform_4(%arg0: i32, %arg1: i32) -> (i32, i32, i32, i32) {
    %c0_i32 = arith.constant 0 : i32
    %c0_i32_0 = arith.constant 0 : i32
    %c0_i32_1 = arith.constant 0 : i32
    return %arg0, %arg1, %c0_i32, %c0_i32_0 : i32, i32, i32, i32
  }
  func.func @transform_5(%arg0: i32, %arg1: i32) -> (i32, i32, i32, i32) {
    %c0_i32 = arith.constant 0 : i32
    %c0_i32_0 = arith.constant 0 : i32
    %c0_i32_1 = arith.constant 0 : i32
    return %arg0, %arg1, %c0_i32, %c0_i32_0 : i32, i32, i32, i32
  }
}

module attributes {stable_mosaic.version = 11 : i64} {
  func.func @_standardize_half_kernel(%arg0: i32, %arg1: i32, %arg2: memref<1x2xf32, #tpu.memory_space<smem>>, %arg3: memref<1x32x256xf32, #tpu.memory_space<vmem>>, %arg4: memref<2x64x256xf32, #tpu.memory_space<any>>, %arg5: memref<1x32x256xf32, #tpu.memory_space<vmem>>) attributes {dimension_semantics = [#tpu.dimension_semantics<parallel>, #tpu.dimension_semantics<parallel>], iteration_bounds = array<i64: 2, 1>, scalar_prefetch = 0 : i64, scratch_operands = 0 : i64, tpu.core_type = #tpu.core_type<tc>, window_params = [{transform_indices = @transform_0, window_bounds = array<i64: 1, 2>}, {transform_indices = @transform_1, window_bounds = array<i64: 1, 32, 256>}, {}, {transform_indices = @transform_3, window_bounds = array<i64: 1, 32, 256>}]} {
    %c0 = arith.constant 0 : index
    %c0_0 = arith.constant 0 : index
    %c0_1 = arith.constant 0 : index
    %0 = vector.load %arg3[%c0, %c0_0, %c0_1] : memref<1x32x256xf32, #tpu.memory_space<vmem>>, vector<1x32x256xf32>
    %1 = vector.shape_cast %0 : vector<1x32x256xf32> to vector<32x256xf32>
    %c0_2 = arith.constant 0 : index
    %c0_3 = arith.constant 0 : index
    %2 = memref.load %arg2[%c0_2, %c0_3] : memref<1x2xf32, #tpu.memory_space<smem>>
    %3 = vector.broadcast %2 : f32 to vector<32x256xf32>
    %4 = arith.mulf %1, %3 : vector<32x256xf32>
    %c0_4 = arith.constant 0 : index
    %c1 = arith.constant 1 : index
    %5 = memref.load %arg2[%c0_4, %c1] : memref<1x2xf32, #tpu.memory_space<smem>>
    %6 = vector.broadcast %5 : f32 to vector<32x256xf32>
    %7 = arith.addf %4, %6 : vector<32x256xf32>
    %c0_5 = arith.constant 0 : index
    %c0_6 = arith.constant 0 : index
    %c0_7 = arith.constant 0 : index
    %8 = vector.load %arg5[%c0_5, %c0_6, %c0_7] : memref<1x32x256xf32, #tpu.memory_space<vmem>>, vector<1x32x256xf32>
    %9 = vector.shape_cast %8 : vector<1x32x256xf32> to vector<32x256xf32>
    %10 = vector.shape_cast %7 : vector<32x256xf32> to vector<1x32x256xf32>
    tpu.vector_store %arg5[%c0_5, %c0_6, %c0_7], %10 {strides = array<i32>} : memref<1x32x256xf32, #tpu.memory_space<vmem>>, vector<1x32x256xf32>,
    return
  }
  func.func @transform_0(%arg0: i32, %arg1: i32) -> (i32, i32) {
    %c0_i32 = arith.constant 0 : i32
    %c0_i32_0 = arith.constant 0 : i32
    %c0_i32_1 = arith.constant 0 : i32
    return %c0_i32, %c0_i32_0 : i32, i32
  }
  func.func @transform_1(%arg0: i32, %arg1: i32) -> (i32, i32, i32) {
    %c0_i32 = arith.constant 0 : i32
    %c0_i32_0 = arith.constant 0 : i32
    return %arg0, %c0_i32, %arg1 : i32, i32, i32
  }
  func.func @transform_3(%arg0: i32, %arg1: i32) -> (i32, i32, i32) {
    %c1_i32 = arith.constant 1 : i32
    %c0_i32 = arith.constant 0 : i32
    return %arg0, %c1_i32, %arg1 : i32, i32, i32
  }
}

</mosaic_0001>

<llo_original>
// kernel: rcnn3d_combined_features_forward.5
$region0: #{rcnn3d_combined_features_forward.5}
  #allocation0 [shape = 'u32[]', space=smem, size = 0x4, offset = 0x4, fixed_abs, tag = 'smem constant byte address 0x4 - core index']
  #allocation1 [shape = 'u32[144,128]{1,0:T(1,128)}', space=vmem, size = 0x12000, scoped, tag = 'internal scratch']
  %s0 = inlined_call_operand.vmem [shape: f32[2,3,64], index: 0, kind: input, shape index: {}]
  %s1 = inlined_call_operand.vmem [shape: f32[32,3], index: 1, kind: input, shape index: {}]
  %s2 = inlined_call_operand.vmem [shape: f32[32,1], index: 2, kind: input, shape index: {}]
  %s3 = inlined_call_operand.vmem [shape: f32[2,32,64], index: 3, kind: output, shape index: {0}]
  %s4 = inlined_call_operand.hbm [shape: f32[2,1,1,128], index: 4, kind: output, shape index: {1}]
  %s5 = inlined_call_operand.hbm [shape: f32[2,1,1,128], index: 5, kind: output, shape index: {2}]
  %6 = xla_tuple %s3, %s4, %s5
  %s7 = sld [smem:[#allocation0]]
  $region61: #{rcnn3d_combined_features_forward.5} parent=0
    _
  %s9 = ssub.s32 1, %s7
  %s10 = scalar_select 0, %s9, %s7
  $region1: #{rcnn3d_combined_features_forward.5} parent=0
    #allocation2 [shape = 'u8[1024]{0}', space=vmem, size = 0x400, scoped, tag = 'output window, operand 1']
    #allocation3 [shape = 's32[2]{0}', space=sflag, size = 0x8, scoped, tag = 'scoped memory for rcnn3d_combined_features_forward.5']
    #allocation4 [shape = 'u8[1024]{0}', space=vmem, size = 0x400, scoped, tag = 'output window, operand 2']
    #allocation5 [shape = 's32[2]{0}', space=sflag, size = 0x8, scoped, tag = 'scoped memory for rcnn3d_combined_features_forward.5']
    %11 = vsyncpa [#allocation3], 0
    %s12 = scalar_lea.sflag [#allocation3], 1
    %13 = vsyncpa %s12, 0
    %14 = vsyncpa [#allocation5], 0
    %s15 = scalar_lea.sflag [#allocation5], 1
    %16 = vsyncpa %s15, 0
    loop: start=0, step=1, limit=4
    $region2: #{rcnn3d_combined_features_forward.5} parent=1 // loop_pre_header
      _
    $region3: #{rcnn3d_combined_features_forward.5} parent=1 // loop_header
      %s18 = sphi 0, %s22
      %p19 = scmp.ge.s32.totalorder %s18, 4
      %s25 = sphi 0, %s37
      %s26 = sphi 0, %s33
      %s27 = sphi 0, %s25
      %s28 = sphi 0, %s26
      %s29 = sphi 0, %s27
      %s30 = sphi 0, %s28
      %s42 = sphi 0, %s44
      %s45 = sphi 0, %s42
      %s46 = sphi 0, %s45
      %s62 = sphi 0, %s46
      %s66 = sphi 0, %s66
      %s68 = sphi 0, %s66
      %s69 = sphi 0, %s68
      %s83 = sphi 0, %s69
      %s87 = sphi 0, %s87
      %s89 = sphi 0, %s87
      %s90 = sphi 0, %s89
      %s104 = sphi 0, %s90
      %s112 = sphi 0, %s114
      %s115 = sphi 0, %s112
      %s116 = sphi 0, %s115
      %s132 = sphi 0, %s116
      %s140 = sphi 0, %s142
      %s143 = sphi 0, %s140
      %s144 = sphi 0, %s143
      %s160 = sphi 0, %s144
      %s168 = sphi 0, %s170
      %s171 = sphi 0, %s168
      %s172 = sphi 0, %s171
      %s188 = sphi 0, %s172
    $region4: #{rcnn3d_combined_features_forward.5} parent=1 // loop_header_branch
      %21 = sbr.rel (%p19) target = $region8
    $region5: #{rcnn3d_combined_features_forward.5} parent=1 // loop_body
      %s23 = ssub.s32 %s18, 1
      %s24 = ssub.s32 %s18, 2
      %s31 = sadd.s32 1, %s26
      %p32 = scmp.ge.s32.totalorder %s31, 1
      %s33 = scalar_select %p32, 0, %s31
      %s34 = sadd.s32 1, %s25
      %s35 = scalar_select %p32, %s34, %s25
      %p36 = scmp.ge.s32.totalorder %s35, 2
      %s37 = scalar_select %p36, 0, %s35
      %s38 = ssub.s32 %s25, %s37
      %s39 = ssub.s32 %s26, %s33
      %s40 = sor.u32 %s38, %s39
      %p41 = scmp.eq.s32.totalorder %s40, 0
      %s43 = sadd.s32 %s42, 1
      %s44 = scalar_select %p41, %s42, %s43
      %p47 = pneg %p41
      %p48 = scmp.eq.s32.totalorder %s18, 1
      %p49 = por %p47, %p48
      %p50 = scmp.ne.s32.totalorder %s42, %s45
      %p51 = scmp.eq.s32.totalorder %s18, 0
      %p52 = por %p50, %p51
      %p53 = scmp.ne.s32.totalorder %s42, %s45
      %p54 = scmp.eq.s32.totalorder %s23, 1
      %p55 = por %p53, %p54
      %p56 = scmp.ne.s32.totalorder %s45, %s46
      %p57 = scmp.eq.s32.totalorder %s23, 0
      %p58 = por %p56, %p57
      %p59 = scmp.ne.s32.totalorder %s45, %s46
      %p60 = scmp.eq.s32.totalorder %s24, 1
      %p61 = por %p59, %p60
      %p63 = scmp.ne.s32.totalorder %s46, %s62
      %p64 = scmp.eq.s32.totalorder %s24, 0
      %p65 = por %p63, %p64
      %s67 = sadd.s32 %s66, 1
      %p70 = scmp.eq.s32.totalorder %s18, 1
      %p71 = scmp.ne.s32.totalorder %s66, %s68
      %p72 = scmp.eq.s32.totalorder %s18, 0
      %p73 = por %p71, %p72
      %p74 = scmp.ne.s32.totalorder %s66, %s68
      %p75 = scmp.eq.s32.totalorder %s23, 1
      %p76 = por %p74, %p75
      %p77 = scmp.ne.s32.totalorder %s68, %s69
      %p78 = scmp.eq.s32.totalorder %s23, 0
      %p79 = por %p77, %p78
      %p80 = scmp.ne.s32.totalorder %s68, %s69
      %p81 = scmp.eq.s32.totalorder %s24, 1
      %p82 = por %p80, %p81
      %p84 = scmp.ne.s32.totalorder %s69, %s83
      %p85 = scmp.eq.s32.totalorder %s24, 0
      %p86 = por %p84, %p85
      %s88 = sadd.s32 %s87, 1
      %p91 = scmp.eq.s32.totalorder %s18, 1
      %p92 = scmp.ne.s32.totalorder %s87, %s89
      %p93 = scmp.eq.s32.totalorder %s18, 0
      %p94 = por %p92, %p93
      %p95 = scmp.ne.s32.totalorder %s87, %s89
      %p96 = scmp.eq.s32.totalorder %s23, 1
      %p97 = por %p95, %p96
      %p98 = scmp.ne.s32.totalorder %s89, %s90
      %p99 = scmp.eq.s32.totalorder %s23, 0
      %p100 = por %p98, %p99
      %p101 = scmp.ne.s32.totalorder %s89, %s90
      %p102 = scmp.eq.s32.totalorder %s24, 1
      %p103 = por %p101, %p102
      %p105 = scmp.ne.s32.totalorder %s90, %s104
      %p106 = scmp.eq.s32.totalorder %s24, 0
      %p107 = por %p105, %p106
      %s108 = ssub.s32 %s25, %s37
      %s109 = ssub.s32 %s26, %s33
      %s110 = sor.u32 %s108, %s109
      %p111 = scmp.eq.s32.totalorder %s110, 0
      %s113 = sadd.s32 %s112, 1
      %s114 = scalar_select %p111, %s112, %s113
      %p117 = pneg %p111
      %p118 = scmp.eq.s32.totalorder %s18, 1
      %p119 = por %p117, %p118
      %p120 = scmp.ne.s32.totalorder %s112, %s115
      %p121 = scmp.eq.s32.totalorder %s18, 0
      %p122 = por %p120, %p121
      %p123 = scmp.ne.s32.totalorder %s112, %s115
      %p124 = scmp.eq.s32.totalorder %s23, 1
      %p125 = por %p123, %p124
      %p126 = scmp.ne.s32.totalorder %s115, %s116
      %p127 = scmp.eq.s32.totalorder %s23, 0
      %p128 = por %p126, %p127
      %p129 = scmp.ne.s32.totalorder %s115, %s116
      %p130 = scmp.eq.s32.totalorder %s24, 1
      %p131 = por %p129, %p130
      %p133 = scmp.ne.s32.totalorder %s116, %s132
      %p134 = scmp.eq.s32.totalorder %s24, 0
      %p135 = por %p133, %p134
      %s136 = ssub.s32 %s25, %s37
      %s137 = ssub.s32 %s26, %s33
      %s138 = sor.u32 %s136, %s137
      %p139 = scmp.eq.s32.totalorder %s138, 0
      %s141 = sadd.s32 %s140, 1
      %s142 = scalar_select %p139, %s140, %s141
      %p145 = pneg %p139
      %p146 = scmp.eq.s32.totalorder %s18, 1
      %p147 = por %p145, %p146
      %p148 = scmp.ne.s32.totalorder %s140, %s143
      %p149 = scmp.eq.s32.totalorder %s18, 0
      %p150 = por %p148, %p149
      %p151 = scmp.ne.s32.totalorder %s140, %s143
      %p152 = scmp.eq.s32.totalorder %s23, 1
      %p153 = por %p151, %p152
      %p154 = scmp.ne.s32.totalorder %s143, %s144
      %p155 = scmp.eq.s32.totalorder %s23, 0
      %p156 = por %p154, %p155
      %p157 = scmp.ne.s32.totalorder %s143, %s144
      %p158 = scmp.eq.s32.totalorder %s24, 1
      %p159 = por %p157, %p158
      %p161 = scmp.ne.s32.totalorder %s144, %s160
      %p162 = scmp.eq.s32.totalorder %s24, 0
      %p163 = por %p161, %p162
      %s164 = ssub.s32 %s25, %s37
      %s165 = ssub.s32 %s26, %s33
      %s166 = sor.u32 %s164, %s165
      %p167 = scmp.eq.s32.totalorder %s166, 0
      %s169 = sadd.s32 %s168, 1
      %s170 = scalar_select %p167, %s168, %s169
      %p173 = pneg %p167
      %p174 = scmp.eq.s32.totalorder %s18, 1
      %p175 = por %p173, %p174
      %p176 = scmp.ne.s32.totalorder %s168, %s171
      %p177 = scmp.eq.s32.totalorder %s18, 0
      %p178 = por %p176, %p177
      %p179 = scmp.ne.s32.totalorder %s168, %s171
      %p180 = scmp.eq.s32.totalorder %s23, 1
      %p181 = por %p179, %p180
      %p182 = scmp.ne.s32.totalorder %s171, %s172
      %p183 = scmp.eq.s32.totalorder %s23, 0
      %p184 = por %p182, %p183
      %p185 = scmp.ne.s32.totalorder %s171, %s172
      %p186 = scmp.eq.s32.totalorder %s24, 1
      %p187 = por %p185, %p186
      %p189 = scmp.ne.s32.totalorder %s172, %s188
      %p190 = scmp.eq.s32.totalorder %s24, 0
      %p191 = por %p189, %p190
      %p192 = scmp.le.s32.totalorder 1, %s18
      %p193 = scmp.lt.s32.totalorder %s18, 3
      %p194 = pnand %p192, %p193
      %p195 = pneg %p194
      // Predicated region
      $region9: #{rcnn3d_combined_features_forward.5} parent=5 // pred_check
        _
      $region10: #{rcnn3d_combined_features_forward.5} parent=5 // pred_check_branch
        %197 = sbr.rel (%p194) target = $region12
      $region11: #{rcnn3d_combined_features_forward.5} parent=5 // pred_region
        %s198 = ssub.s32 %s18, 1
        // Predicated region
        $region13: #{rcnn3d_combined_features_forward.5} parent=11 // pred_check
          %p199 = pneg %p79
        $region14: #{rcnn3d_combined_features_forward.5} parent=11 // pred_check_branch
          %201 = sbr.rel (%p199) target = $region16
        $region15: #{rcnn3d_combined_features_forward.5} parent=11 // pred_region
          _
        $region16: #{rcnn3d_combined_features_forward.5} parent=11 // pred_fallthru
          _
        // Predicated region
        $region17: #{rcnn3d_combined_features_forward.5} parent=11 // pred_check
          %p202 = pneg %p100
        $region18: #{rcnn3d_combined_features_forward.5} parent=11 // pred_check_branch
          %204 = sbr.rel (%p202) target = $region20
        $region19: #{rcnn3d_combined_features_forward.5} parent=11 // pred_region
          _
        $region20: #{rcnn3d_combined_features_forward.5} parent=11 // pred_fallthru
          _
      $region12: #{rcnn3d_combined_features_forward.5} parent=5 // pred_fallthru
        _
      %p205 = scmp.lt.s32.totalorder %s18, 2
      // Predicated region
      $region21: #{rcnn3d_combined_features_forward.5} parent=5 // pred_check
        %p206 = pneg %p205
      $region22: #{rcnn3d_combined_features_forward.5} parent=5 // pred_check_branch
        %208 = sbr.rel (%p206) target = $region24
      $region23: #{rcnn3d_combined_features_forward.5} parent=5 // pred_region
        // Predicated region
        $region25: #{rcnn3d_combined_features_forward.5} parent=23 // pred_check
          %p209 = pneg %p52
        $region26: #{rcnn3d_combined_features_forward.5} parent=23 // pred_check_branch
          %211 = sbr.rel (%p209) target = $region28
        $region27: #{rcnn3d_combined_features_forward.5} parent=23 // pred_region
          %p212 = scmp.lt.s32.totalorder %s25, 1
          %s213 = scalar_select %p212, %s25, 1
          %p214 = scmp.lt.s32.totalorder %s26, 0
          %s215 = scalar_select %p214, %s26, 0
          %s216 = sadd.s32 %s215, %s213
          %s217 = smul.addr %s216, 4
          %s218 = scalar_lea.vmem %s0, %s217
        $region28: #{rcnn3d_combined_features_forward.5} parent=23 // pred_fallthru
          _
      $region24: #{rcnn3d_combined_features_forward.5} parent=5 // pred_fallthru
        _
      %p219 = scmp.le.s32.totalorder 1, %s18
      %p220 = scmp.lt.s32.totalorder %s18, 3
      %p221 = pnand %p219, %p220
      %p222 = pneg %p221
      // Predicated region
      $region29: #{rcnn3d_combined_features_forward.5} parent=5 // pred_check
        _
      $region30: #{rcnn3d_combined_features_forward.5} parent=5 // pred_check_branch
        %224 = sbr.rel (%p221) target = $region32
      $region31: #{rcnn3d_combined_features_forward.5} parent=5 // pred_region
        %s225 = ssub.s32 %s18, 1
        %p226 = scmp.lt.s32.totalorder %s27, 1
        %s227 = scalar_select %p226, %s27, 1
        %p228 = scmp.lt.s32.totalorder %s28, 0
        %s229 = scalar_select %p228, %s28, 0
        %s230 = sadd.s32 %s229, %s227
        %s231 = smul.addr %s230, 4
        %s232 = scalar_lea.vmem %s0, %s231
        %p233 = pneg %p58
        %p234 = pneg %p55
        %p235 = pneg %p79
        %p236 = pneg %p76
        %p237 = pneg %p100
        %p238 = pneg %p97
        %p239 = pneg %p128
        %p240 = pneg %p125
        %p241 = scmp.lt.s32.totalorder %s27, 1
        %s242 = scalar_select %p241, %s27, 1
        %p243 = scmp.lt.s32.totalorder %s28, 0
        %s244 = scalar_select %p243, %s28, 0
        %s245 = smul.addr %s242, 4
        %s246 = sadd.s32 %s244, %s245
        %s247 = smul.addr %s246, 8
        %s248 = scalar_lea.vmem %s3, %s247
        %p249 = pneg %p156
        %p250 = pneg %p153
        %s251 = sand.u32 %s143, 1
        %s252 = scalar_lea.sflag [#allocation3], %s251
        %s253 = sand.u32 %s143, 1
        %s254 = scalar_lea.vmem [#allocation2], %s253
        %p255 = pneg %p184
        %p256 = pneg %p181
        %s257 = sand.u32 %s171, 1
        %s258 = scalar_lea.sflag [#allocation5], %s257
        %s259 = sand.u32 %s171, 1
        %s260 = scalar_lea.vmem [#allocation4], %s259
        %p261 = scmp.lt.s32.totalorder %s27, 1
        %s262 = scalar_select %p261, %s27, 1
        %p263 = scmp.lt.s32.totalorder %s28, 0
        %s264 = scalar_select %p263, %s28, 0
        %s265 = sadd.s32 %s264, %s262
        %s266 = smul.addr %s265, 4
        %s267 = scalar_lea.vmem %s0, %s266
        %p268 = scmp.lt.s32.totalorder %s27, 1
        %s269 = scalar_select %p268, %s27, 1
        %p270 = scmp.lt.s32.totalorder %s28, 0
        %s271 = scalar_select %p270, %s28, 0
        %s272 = smul.addr %s269, 4
        %s273 = sadd.s32 %s271, %s272
        %s274 = smul.addr %s273, 8
        %s275 = scalar_lea.vmem %s3, %s274
        %v276 = vld [vmem:[%s267] sm:$0x7]
        %v277 = vld [vmem:[%s1] sm:$0xff]
        %v278 = vld [vmem:[%s1 + $0x8] sm:$0xff]
        %v279 = vld [vmem:[%s1 + $0x10] sm:$0xff]
        %v280 = vld [vmem:[%s1 + $0x18] sm:$0xff]
        %282 = vset.pattern.permute.xlu0 0
        %283 = vperm.xlu0 %282, %v277
        %v284 = vpop.permute.xlu0 %283
        %287 = vset.pattern.permute.xlu0 0
        %288 = vperm.xlu0 %287, %v278
        %v289 = vpop.permute.xlu0 %288
        %292 = vset.pattern.permute.xlu0 0
        %293 = vperm.xlu0 %292, %v279
        %v294 = vpop.permute.xlu0 %293
        %297 = vset.pattern.permute.xlu0 0
        %298 = vperm.xlu0 %297, %v280
        %v299 = vpop.permute.xlu0 %298
        %v301 = vlaneseq
        %v302 = vshrl.u32 %v301, 7
        %v303 = vsub.s32 0, %v302
        %v304 = vrot.slane %v276, %v303
        %v305 = vmul.f32 %v284, %v304
        %v306 = vmul.f32 %v289, %v304
        %v307 = vmul.f32 %v294, %v304
        %v308 = vmul.f32 %v299, %v304
        %309 = vset.pattern.permute.xlu0 1
        %310 = vperm.xlu0 %309, %v277
        %v311 = vpop.permute.xlu0 %310
        %313 = vset.pattern.permute.xlu0 1
        %314 = vperm.xlu0 %313, %v278
        %v315 = vpop.permute.xlu0 %314
        %317 = vset.pattern.permute.xlu0 1
        %318 = vperm.xlu0 %317, %v279
        %v319 = vpop.permute.xlu0 %318
        %321 = vset.pattern.permute.xlu0 1
        %322 = vperm.xlu0 %321, %v280
        %v323 = vpop.permute.xlu0 %322
        %v325 = vlaneseq
        %v326 = vshrl.u32 %v325, 7
        %v327 = vsub.s32 1, %v326
        %v328 = vrot.slane %v276, %v327
        %v329 = vmul.f32 %v311, %v328
        %v330 = vmul.f32 %v315, %v328
        %v331 = vmul.f32 %v319, %v328
        %v332 = vmul.f32 %v323, %v328
        %v333 = vadd.f32 %v305, %v329
        %v334 = vadd.f32 %v306, %v330
        %v335 = vadd.f32 %v307, %v331
        %v336 = vadd.f32 %v308, %v332
        %337 = vset.pattern.permute.xlu0 2
        %338 = vperm.xlu0 %337, %v277
        %v339 = vpop.permute.xlu0 %338
        %341 = vset.pattern.permute.xlu0 2
        %342 = vperm.xlu0 %341, %v278
        %v343 = vpop.permute.xlu0 %342
        %345 = vset.pattern.permute.xlu0 2
        %346 = vperm.xlu0 %345, %v279
        %v347 = vpop.permute.xlu0 %346
        %349 = vset.pattern.permute.xlu0 2
        %350 = vperm.xlu0 %349, %v280
        %v351 = vpop.permute.xlu0 %350
        %v353 = vlaneseq
        %v354 = vshrl.u32 %v353, 7
        %v355 = vsub.s32 2, %v354
        %v356 = vrot.slane %v276, %v355
        %v357 = vmul.f32 %v339, %v356
        %v358 = vmul.f32 %v343, %v356
        %v359 = vmul.f32 %v347, %v356
        %v360 = vmul.f32 %v351, %v356
        %v361 = vadd.f32 %v333, %v357
        %v362 = vadd.f32 %v334, %v358
        %v363 = vadd.f32 %v335, %v359
        %v364 = vadd.f32 %v336, %v360
        %v365 = vld [vmem:[%s2] sm:$0xff]
        %v366 = vld [vmem:[%s2 + $0x8] sm:$0xff]
        %v367 = vld [vmem:[%s2 + $0x10] sm:$0xff]
        %v368 = vld [vmem:[%s2 + $0x18] sm:$0xff]
        %370 = vset.pattern.permute.xlu0 0
        %371 = vperm.xlu0 %370, %v365
        %v372 = vpop.permute.xlu0 %371
        %375 = vset.pattern.permute.xlu0 0
        %376 = vperm.xlu0 %375, %v366
        %v377 = vpop.permute.xlu0 %376
        %380 = vset.pattern.permute.xlu0 0
        %381 = vperm.xlu0 %380, %v367
        %v382 = vpop.permute.xlu0 %381
        %385 = vset.pattern.permute.xlu0 0
        %386 = vperm.xlu0 %385, %v368
        %v387 = vpop.permute.xlu0 %386
        %v389 = vadd.f32 %v361, %v372
        %v390 = vadd.f32 %v362, %v377
        %v391 = vadd.f32 %v363, %v382
        %v392 = vadd.f32 %v364, %v387
        %v393 = vmax.f32 %v389, 0.0
        %v394 = vmax.f32 %v390, 0.0
        %v395 = vmax.f32 %v391, 0.0
        %v396 = vmax.f32 %v392, 0.0
        %vm397 = vcmask 523264
        %398 = vst.msk [vmem:[%s275] sm:$0xff] %vm397, %v393
        %399 = vst.msk [vmem:[%s275 + $0x8] sm:$0xff] %vm397, %v394
        %400 = vst.msk [vmem:[%s275 + $0x10] sm:$0xff] %vm397, %v395
        %401 = vst.msk [vmem:[%s275 + $0x18] sm:$0xff] %vm397, %v396
        %v402 = vsel %vm397, %v393, 0.0
        %v403 = vsel %vm397, %v394, 0.0
        %v404 = vadd.f32 %v402, %v403
        %v405 = vsel %vm397, %v395, 0.0
        %v406 = vadd.f32 %v404, %v405
        %v407 = vsel %vm397, %v396, 0.0
        %v408 = vadd.f32 %v406, %v407
        %409 = vadd.xlane.f32.xlu0 %v408
        %v410 = vpop.xlane.xlu0 %409
        %v411 = vrot.slane %v410, 4
        %v412 = vadd.f32 %v410, %v411
        %v413 = vrot.slane %v412, 2
        %v414 = vadd.f32 %v412, %v413
        %v415 = vrot.slane %v414, 1
        %v416 = vadd.f32 %v414, %v415
        %s417 = vtos %v416
        %v418 = vstv %s417
        %419 = vst [vmem:[%s254] sm:$0x1] %v418
        %v420 = vmul.f32 %v393, %v393
        %v421 = vmul.f32 %v394, %v394
        %v422 = vmul.f32 %v395, %v395
        %v423 = vmul.f32 %v396, %v396
        %v424 = vsel %vm397, %v420, 0.0
        %v425 = vsel %vm397, %v421, 0.0
        %v426 = vadd.f32 %v424, %v425
        %v427 = vsel %vm397, %v422, 0.0
        %v428 = vadd.f32 %v426, %v427
        %v429 = vsel %vm397, %v423, 0.0
        %v430 = vadd.f32 %v428, %v429
        %431 = vadd.xlane.f32.xlu0 %v430
        %v432 = vpop.xlane.xlu0 %431
        %v433 = vrot.slane %v432, 4
        %v434 = vadd.f32 %v432, %v433
        %v435 = vrot.slane %v434, 2
        %v436 = vadd.f32 %v434, %v435
        %v437 = vrot.slane %v436, 1
        %v438 = vadd.f32 %v436, %v437
        %s439 = vtos %v438
        %v440 = vstv %s439
        %441 = vst [vmem:[%s260] sm:$0x1] %v440
        %p442 = scmp.lt.s32.totalorder %s27, 1
        %s443 = scalar_select %p442, %s27, 1
        %p444 = scmp.lt.s32.totalorder %s28, 0
        %s445 = scalar_select %p444, %s28, 0
        %s446 = smul.addr %s443, 4
        %s447 = sadd.s32 %s445, %s446
        %s448 = smul.addr %s447, 8
        %s449 = scalar_lea.vmem %s3, %s448
        %s450 = sand.u32 %s143, 1
        %s451 = scalar_lea.sflag [#allocation3], %s450
        %s452 = sand.u32 %s143, 1
        %s453 = scalar_lea.vmem [#allocation2], %s452
        %s454 = sand.u32 %s171, 1
        %s455 = scalar_lea.sflag [#allocation5], %s454
        %s456 = sand.u32 %s171, 1
        %s457 = scalar_lea.vmem [#allocation4], %s456
        // Predicated region
        $region33: #{rcnn3d_combined_features_forward.5} parent=31 // pred_check
          %p458 = pneg %p125
        $region34: #{rcnn3d_combined_features_forward.5} parent=31 // pred_check_branch
          %460 = sbr.rel (%p458) target = $region36
        $region35: #{rcnn3d_combined_features_forward.5} parent=31 // pred_region
          _
        $region36: #{rcnn3d_combined_features_forward.5} parent=31 // pred_fallthru
          _
        // Predicated region
        $region37: #{rcnn3d_combined_features_forward.5} parent=31 // pred_check
          %p461 = pneg %p153
        $region38: #{rcnn3d_combined_features_forward.5} parent=31 // pred_check_branch
          %463 = sbr.rel (%p461) target = $region40
        $region39: #{rcnn3d_combined_features_forward.5} parent=31 // pred_region
          %s465 = ssub.s32 16, 16
          %466 = vsyncadd %s451, %s465
          %s467 = sadd.s32 %s28, %s27
          %s468 = smul.addr %s467, 16
          %s469 = scalar_lea.hbm %s4, %s468
          %s471 = sshll.u32 %s453, 4
          %s472 = int_to_ptr.vmem [resolvable:$true] %s471
          %474 = dma.vmem_to_hbm [thread:$0]  %s472, 16, %s469, %s451
        $region40: #{rcnn3d_combined_features_forward.5} parent=31 // pred_fallthru
          _
        // Predicated region
        $region41: #{rcnn3d_combined_features_forward.5} parent=31 // pred_check
          %p475 = pneg %p181
        $region42: #{rcnn3d_combined_features_forward.5} parent=31 // pred_check_branch
          %477 = sbr.rel (%p475) target = $region44
        $region43: #{rcnn3d_combined_features_forward.5} parent=31 // pred_region
          %s479 = ssub.s32 16, 16
          %480 = vsyncadd %s455, %s479
          %s481 = sadd.s32 %s28, %s27
          %s482 = smul.addr %s481, 16
          %s483 = scalar_lea.hbm %s5, %s482
          %s485 = sshll.u32 %s457, 4
          %s486 = int_to_ptr.vmem [resolvable:$true] %s485
          %488 = dma.vmem_to_hbm [thread:$0]  %s486, 16, %s483, %s455
        $region44: #{rcnn3d_combined_features_forward.5} parent=31 // pred_fallthru
          _
      $region32: #{rcnn3d_combined_features_forward.5} parent=5 // pred_fallthru
        _
      %p489 = scmp.le.s32.totalorder 2, %s18
      // Predicated region
      $region45: #{rcnn3d_combined_features_forward.5} parent=5 // pred_check
        %p490 = pneg %p489
      $region46: #{rcnn3d_combined_features_forward.5} parent=5 // pred_check_branch
        %492 = sbr.rel (%p490) target = $region48
      $region47: #{rcnn3d_combined_features_forward.5} parent=5 // pred_region
        %s493 = ssub.s32 %s18, 2
        // Predicated region
        $region49: #{rcnn3d_combined_features_forward.5} parent=47 // pred_check
          %p494 = pneg %p131
        $region50: #{rcnn3d_combined_features_forward.5} parent=47 // pred_check_branch
          %496 = sbr.rel (%p494) target = $region52
        $region51: #{rcnn3d_combined_features_forward.5} parent=47 // pred_region
          %p497 = scmp.lt.s32.totalorder %s29, 1
          %s498 = scalar_select %p497, %s29, 1
          %p499 = scmp.lt.s32.totalorder %s30, 0
          %s500 = scalar_select %p499, %s30, 0
          %s501 = smul.addr %s498, 4
          %s502 = sadd.s32 %s500, %s501
          %s503 = smul.addr %s502, 8
          %s504 = scalar_lea.vmem %s3, %s503
        $region52: #{rcnn3d_combined_features_forward.5} parent=47 // pred_fallthru
          _
        // Predicated region
        $region53: #{rcnn3d_combined_features_forward.5} parent=47 // pred_check
          %p505 = pneg %p159
        $region54: #{rcnn3d_combined_features_forward.5} parent=47 // pred_check_branch
          %507 = sbr.rel (%p505) target = $region56
        $region55: #{rcnn3d_combined_features_forward.5} parent=47 // pred_region
          %s508 = sand.u32 %s144, 1
          %s509 = scalar_lea.sflag [#allocation3], %s508
          %s510 = sand.u32 %s144, 1
          %s511 = scalar_lea.vmem [#allocation2], %s510
          %512 = dma.done %s509, 16
        $region56: #{rcnn3d_combined_features_forward.5} parent=47 // pred_fallthru
          _
        // Predicated region
        $region57: #{rcnn3d_combined_features_forward.5} parent=47 // pred_check
          %p513 = pneg %p187
        $region58: #{rcnn3d_combined_features_forward.5} parent=47 // pred_check_branch
          %515 = sbr.rel (%p513) target = $region60
        $region59: #{rcnn3d_combined_features_forward.5} parent=47 // pred_region
          %s516 = sand.u32 %s172, 1
          %s517 = scalar_lea.sflag [#allocation5], %s516
          %s518 = sand.u32 %s172, 1
          %s519 = scalar_lea.vmem [#allocation4], %s518
          %520 = dma.done %s517, 16
        $region60: #{rcnn3d_combined_features_forward.5} parent=47 // pred_fallthru
          _
      $region48: #{rcnn3d_combined_features_forward.5} parent=5 // pred_fallthru
        _
    $region6: #{rcnn3d_combined_features_forward.5} parent=1 // loop_footer
      %s22 = sadd.s32 1, %s18
    $region7: #{rcnn3d_combined_features_forward.5} parent=1 // loop_footer_branch
      %17 = sbr.rel target = $region3
    $region8: #{rcnn3d_combined_features_forward.5} parent=1 // loop_exit
      _
    %521 = vsyncpa [#allocation3], 1
    %s522 = scalar_lea.sflag [#allocation3], 1
    %523 = vsyncpa %s522, 1
    %524 = vsyncpa [#allocation5], 1
    %s525 = scalar_lea.sflag [#allocation5], 1
    %526 = vsyncpa %s525, 1

// kernel: rcnn3d_combined_features_forward.4
$region0: #{rcnn3d_combined_features_forward.4}
  #allocation0 [shape = 'u32[]', space=smem, size = 0x4, offset = 0x4, fixed_abs, tag = 'smem constant byte address 0x4 - core index']
  #allocation1 [shape = 'u32[144,128]{1,0:T(1,128)}', space=vmem, size = 0x12000, scoped, tag = 'internal scratch']
  %s0 = inlined_call_operand.vmem [shape: f32[2,3,256], index: 0, kind: input, shape index: {}]
  %s1 = inlined_call_operand.vmem [shape: f32[32,3], index: 1, kind: input, shape index: {}]
  %s2 = inlined_call_operand.vmem [shape: f32[32,1], index: 2, kind: input, shape index: {}]
  %s3 = inlined_call_operand.vmem [shape: f32[2,64,256], index: 3, kind: output, shape index: {0}]
  %s4 = inlined_call_operand.vmem [shape: f32[2,1,1,128], index: 4, kind: output, shape index: {1}]
  %s5 = inlined_call_operand.vmem [shape: f32[2,1,1,128], index: 5, kind: output, shape index: {2}]
  %6 = xla_tuple %s3, %s4, %s5
  %s7 = sld [smem:[#allocation0]]
  $region61: #{rcnn3d_combined_features_forward.4} parent=0
    _
  %s9 = ssub.s32 1, %s7
  %s10 = scalar_select 0, %s9, %s7
  loop: start=0, step=1, limit=4
  $region2: #{rcnn3d_combined_features_forward.4} parent=0 // loop_pre_header
    _
  $region3: #{rcnn3d_combined_features_forward.4} parent=0 // loop_header
    %s12 = sphi 0, %s16
    %p13 = scmp.ge.s32.totalorder %s12, 4
    %s19 = sphi 0, %s31
    %s20 = sphi 0, %s27
    %s21 = sphi 0, %s19
    %s22 = sphi 0, %s20
    %s23 = sphi 0, %s21
    %s24 = sphi 0, %s22
    %s36 = sphi 0, %s38
    %s39 = sphi 0, %s36
    %s40 = sphi 0, %s39
    %s56 = sphi 0, %s40
    %s60 = sphi 0, %s60
    %s62 = sphi 0, %s60
    %s63 = sphi 0, %s62
    %s77 = sphi 0, %s63
    %s81 = sphi 0, %s81
    %s83 = sphi 0, %s81
    %s84 = sphi 0, %s83
    %s98 = sphi 0, %s84
    %s106 = sphi 0, %s108
    %s109 = sphi 0, %s106
    %s110 = sphi 0, %s109
    %s126 = sphi 0, %s110
    %s134 = sphi 0, %s136
    %s137 = sphi 0, %s134
    %s138 = sphi 0, %s137
    %s154 = sphi 0, %s138
    %s162 = sphi 0, %s164
    %s165 = sphi 0, %s162
    %s166 = sphi 0, %s165
    %s182 = sphi 0, %s166
  $region4: #{rcnn3d_combined_features_forward.4} parent=0 // loop_header_branch
    %15 = sbr.rel (%p13) target = $region8
  $region5: #{rcnn3d_combined_features_forward.4} parent=0 // loop_body
    %s17 = ssub.s32 %s12, 1
    %s18 = ssub.s32 %s12, 2
    %s25 = sadd.s32 1, %s20
    %p26 = scmp.ge.s32.totalorder %s25, 1
    %s27 = scalar_select %p26, 0, %s25
    %s28 = sadd.s32 1, %s19
    %s29 = scalar_select %p26, %s28, %s19
    %p30 = scmp.ge.s32.totalorder %s29, 2
    %s31 = scalar_select %p30, 0, %s29
    %s32 = ssub.s32 %s19, %s31
    %s33 = ssub.s32 %s20, %s27
    %s34 = sor.u32 %s32, %s33
    %p35 = scmp.eq.s32.totalorder %s34, 0
    %s37 = sadd.s32 %s36, 1
    %s38 = scalar_select %p35, %s36, %s37
    %p41 = pneg %p35
    %p42 = scmp.eq.s32.totalorder %s12, 1
    %p43 = por %p41, %p42
    %p44 = scmp.ne.s32.totalorder %s36, %s39
    %p45 = scmp.eq.s32.totalorder %s12, 0
    %p46 = por %p44, %p45
    %p47 = scmp.ne.s32.totalorder %s36, %s39
    %p48 = scmp.eq.s32.totalorder %s17, 1
    %p49 = por %p47, %p48
    %p50 = scmp.ne.s32.totalorder %s39, %s40
    %p51 = scmp.eq.s32.totalorder %s17, 0
    %p52 = por %p50, %p51
    %p53 = scmp.ne.s32.totalorder %s39, %s40
    %p54 = scmp.eq.s32.totalorder %s18, 1
    %p55 = por %p53, %p54
    %p57 = scmp.ne.s32.totalorder %s40, %s56
    %p58 = scmp.eq.s32.totalorder %s18, 0
    %p59 = por %p57, %p58
    %s61 = sadd.s32 %s60, 1
    %p64 = scmp.eq.s32.totalorder %s12, 1
    %p65 = scmp.ne.s32.totalorder %s60, %s62
    %p66 = scmp.eq.s32.totalorder %s12, 0
    %p67 = por %p65, %p66
    %p68 = scmp.ne.s32.totalorder %s60, %s62
    %p69 = scmp.eq.s32.totalorder %s17, 1
    %p70 = por %p68, %p69
    %p71 = scmp.ne.s32.totalorder %s62, %s63
    %p72 = scmp.eq.s32.totalorder %s17, 0
    %p73 = por %p71, %p72
    %p74 = scmp.ne.s32.totalorder %s62, %s63
    %p75 = scmp.eq.s32.totalorder %s18, 1
    %p76 = por %p74, %p75
    %p78 = scmp.ne.s32.totalorder %s63, %s77
    %p79 = scmp.eq.s32.totalorder %s18, 0
    %p80 = por %p78, %p79
    %s82 = sadd.s32 %s81, 1
    %p85 = scmp.eq.s32.totalorder %s12, 1
    %p86 = scmp.ne.s32.totalorder %s81, %s83
    %p87 = scmp.eq.s32.totalorder %s12, 0
    %p88 = por %p86, %p87
    %p89 = scmp.ne.s32.totalorder %s81, %s83
    %p90 = scmp.eq.s32.totalorder %s17, 1
    %p91 = por %p89, %p90
    %p92 = scmp.ne.s32.totalorder %s83, %s84
    %p93 = scmp.eq.s32.totalorder %s17, 0
    %p94 = por %p92, %p93
    %p95 = scmp.ne.s32.totalorder %s83, %s84
    %p96 = scmp.eq.s32.totalorder %s18, 1
    %p97 = por %p95, %p96
    %p99 = scmp.ne.s32.totalorder %s84, %s98
    %p100 = scmp.eq.s32.totalorder %s18, 0
    %p101 = por %p99, %p100
    %s102 = ssub.s32 %s19, %s31
    %s103 = ssub.s32 %s20, %s27
    %s104 = sor.u32 %s102, %s103
    %p105 = scmp.eq.s32.totalorder %s104, 0
    %s107 = sadd.s32 %s106, 1
    %s108 = scalar_select %p105, %s106, %s107
    %p111 = pneg %p105
    %p112 = scmp.eq.s32.totalorder %s12, 1
    %p113 = por %p111, %p112
    %p114 = scmp.ne.s32.totalorder %s106, %s109
    %p115 = scmp.eq.s32.totalorder %s12, 0
    %p116 = por %p114, %p115
    %p117 = scmp.ne.s32.totalorder %s106, %s109
    %p118 = scmp.eq.s32.totalorder %s17, 1
    %p119 = por %p117, %p118
    %p120 = scmp.ne.s32.totalorder %s109, %s110
    %p121 = scmp.eq.s32.totalorder %s17, 0
    %p122 = por %p120, %p121
    %p123 = scmp.ne.s32.totalorder %s109, %s110
    %p124 = scmp.eq.s32.totalorder %s18, 1
    %p125 = por %p123, %p124
    %p127 = scmp.ne.s32.totalorder %s110, %s126
    %p128 = scmp.eq.s32.totalorder %s18, 0
    %p129 = por %p127, %p128
    %s130 = ssub.s32 %s19, %s31
    %s131 = ssub.s32 %s20, %s27
    %s132 = sor.u32 %s130, %s131
    %p133 = scmp.eq.s32.totalorder %s132, 0
    %s135 = sadd.s32 %s134, 1
    %s136 = scalar_select %p133, %s134, %s135
    %p139 = pneg %p133
    %p140 = scmp.eq.s32.totalorder %s12, 1
    %p141 = por %p139, %p140
    %p142 = scmp.ne.s32.totalorder %s134, %s137
    %p143 = scmp.eq.s32.totalorder %s12, 0
    %p144 = por %p142, %p143
    %p145 = scmp.ne.s32.totalorder %s134, %s137
    %p146 = scmp.eq.s32.totalorder %s17, 1
    %p147 = por %p145, %p146
    %p148 = scmp.ne.s32.totalorder %s137, %s138
    %p149 = scmp.eq.s32.totalorder %s17, 0
    %p150 = por %p148, %p149
    %p151 = scmp.ne.s32.totalorder %s137, %s138
    %p152 = scmp.eq.s32.totalorder %s18, 1
    %p153 = por %p151, %p152
    %p155 = scmp.ne.s32.totalorder %s138, %s154
    %p156 = scmp.eq.s32.totalorder %s18, 0
    %p157 = por %p155, %p156
    %s158 = ssub.s32 %s19, %s31
    %s159 = ssub.s32 %s20, %s27
    %s160 = sor.u32 %s158, %s159
    %p161 = scmp.eq.s32.totalorder %s160, 0
    %s163 = sadd.s32 %s162, 1
    %s164 = scalar_select %p161, %s162, %s163
    %p167 = pneg %p161
    %p168 = scmp.eq.s32.totalorder %s12, 1
    %p169 = por %p167, %p168
    %p170 = scmp.ne.s32.totalorder %s162, %s165
    %p171 = scmp.eq.s32.totalorder %s12, 0
    %p172 = por %p170, %p171
    %p173 = scmp.ne.s32.totalorder %s162, %s165
    %p174 = scmp.eq.s32.totalorder %s17, 1
    %p175 = por %p173, %p174
    %p176 = scmp.ne.s32.totalorder %s165, %s166
    %p177 = scmp.eq.s32.totalorder %s17, 0
    %p178 = por %p176, %p177
    %p179 = scmp.ne.s32.totalorder %s165, %s166
    %p180 = scmp.eq.s32.totalorder %s18, 1
    %p181 = por %p179, %p180
    %p183 = scmp.ne.s32.totalorder %s166, %s182
    %p184 = scmp.eq.s32.totalorder %s18, 0
    %p185 = por %p183, %p184
    %p186 = scmp.le.s32.totalorder 1, %s12
    %p187 = scmp.lt.s32.totalorder %s12, 3
    %p188 = pnand %p186, %p187
    %p189 = pneg %p188
    // Predicated region
    $region9: #{rcnn3d_combined_features_forward.4} parent=5 // pred_check
      _
    $region10: #{rcnn3d_combined_features_forward.4} parent=5 // pred_check_branch
      %191 = sbr.rel (%p188) target = $region12
    $region11: #{rcnn3d_combined_features_forward.4} parent=5 // pred_region
      %s192 = ssub.s32 %s12, 1
      // Predicated region
      $region13: #{rcnn3d_combined_features_forward.4} parent=11 // pred_check
        %p193 = pneg %p73
      $region14: #{rcnn3d_combined_features_forward.4} parent=11 // pred_check_branch
        %195 = sbr.rel (%p193) target = $region16
      $region15: #{rcnn3d_combined_features_forward.4} parent=11 // pred_region
        _
      $region16: #{rcnn3d_combined_features_forward.4} parent=11 // pred_fallthru
        _
      // Predicated region
      $region17: #{rcnn3d_combined_features_forward.4} parent=11 // pred_check
        %p196 = pneg %p94
      $region18: #{rcnn3d_combined_features_forward.4} parent=11 // pred_check_branch
        %198 = sbr.rel (%p196) target = $region20
      $region19: #{rcnn3d_combined_features_forward.4} parent=11 // pred_region
        _
      $region20: #{rcnn3d_combined_features_forward.4} parent=11 // pred_fallthru
        _
    $region12: #{rcnn3d_combined_features_forward.4} parent=5 // pred_fallthru
      _
    %p199 = scmp.lt.s32.totalorder %s12, 2
    // Predicated region
    $region21: #{rcnn3d_combined_features_forward.4} parent=5 // pred_check
      %p200 = pneg %p199
    $region22: #{rcnn3d_combined_features_forward.4} parent=5 // pred_check_branch
      %202 = sbr.rel (%p200) target = $region24
    $region23: #{rcnn3d_combined_features_forward.4} parent=5 // pred_region
      // Predicated region
      $region25: #{rcnn3d_combined_features_forward.4} parent=23 // pred_check
        %p203 = pneg %p46
      $region26: #{rcnn3d_combined_features_forward.4} parent=23 // pred_check_branch
        %205 = sbr.rel (%p203) target = $region28
      $region27: #{rcnn3d_combined_features_forward.4} parent=23 // pred_region
        %s206 = smul.u32 2, %s20
        %p207 = scmp.lt.s32.totalorder %s19, 1
        %s208 = scalar_select %p207, %s19, 1
        %p209 = scmp.lt.s32.totalorder %s206, 1
        %s210 = scalar_select %p209, %s206, 1
        %s211 = smul.addr %s208, 2
        %s212 = sadd.s32 %s210, %s211
        %s213 = smul.addr %s212, 4
        %s214 = scalar_lea.vmem %s0, %s213
        %s215 = smul.u32 2, %s20
      $region28: #{rcnn3d_combined_features_forward.4} parent=23 // pred_fallthru
        _
    $region24: #{rcnn3d_combined_features_forward.4} parent=5 // pred_fallthru
      _
    %p216 = scmp.le.s32.totalorder 1, %s12
    %p217 = scmp.lt.s32.totalorder %s12, 3
    %p218 = pnand %p216, %p217
    %p219 = pneg %p218
    // Predicated region
    $region29: #{rcnn3d_combined_features_forward.4} parent=5 // pred_check
      _
    $region30: #{rcnn3d_combined_features_forward.4} parent=5 // pred_check_branch
      %221 = sbr.rel (%p218) target = $region32
    $region31: #{rcnn3d_combined_features_forward.4} parent=5 // pred_region
      %s222 = ssub.s32 %s12, 1
      %s223 = smul.u32 2, %s22
      %p224 = scmp.lt.s32.totalorder %s21, 1
      %s225 = scalar_select %p224, %s21, 1
      %p226 = scmp.lt.s32.totalorder %s223, 1
      %s227 = scalar_select %p226, %s223, 1
      %s228 = smul.addr %s225, 2
      %s229 = sadd.s32 %s227, %s228
      %s230 = smul.addr %s229, 4
      %s231 = scalar_lea.vmem %s0, %s230
      %p232 = pneg %p52
      %p233 = pneg %p49
      %p234 = pneg %p73
      %p235 = pneg %p70
      %p236 = pneg %p94
      %p237 = pneg %p91
      %p238 = pneg %p122
      %p239 = pneg %p119
      %s240 = smul.u32 2, %s22
      %p241 = scmp.lt.s32.totalorder %s21, 1
      %s242 = scalar_select %p241, %s21, 1
      %p243 = scmp.lt.s32.totalorder %s240, 1
      %s244 = scalar_select %p243, %s240, 1
      %s245 = smul.addr %s242, 16
      %s246 = sadd.s32 %s244, %s245
      %s247 = smul.addr %s246, 8
      %s248 = scalar_lea.vmem %s3, %s247
      %p249 = pneg %p150
      %p250 = pneg %p147
      %p251 = scmp.lt.s32.totalorder %s21, 1
      %s252 = scalar_select %p251, %s21, 1
      %p253 = scmp.lt.s32.totalorder %s22, 0
      %s254 = scalar_select %p253, %s22, 0
      %s255 = sadd.s32 %s254, %s252
      %s256 = scalar_lea.vmem %s4, %s255
      %p257 = pneg %p178
      %p258 = pneg %p175
      %p259 = scmp.lt.s32.totalorder %s21, 1
      %s260 = scalar_select %p259, %s21, 1
      %p261 = scmp.lt.s32.totalorder %s22, 0
      %s262 = scalar_select %p261, %s22, 0
      %s263 = sadd.s32 %s262, %s260
      %s264 = scalar_lea.vmem %s5, %s263
      %s265 = smul.u32 2, %s22
      %p266 = scmp.lt.s32.totalorder %s21, 1
      %s267 = scalar_select %p266, %s21, 1
      %p268 = scmp.lt.s32.totalorder %s265, 1
      %s269 = scalar_select %p268, %s265, 1
      %s270 = smul.addr %s267, 2
      %s271 = sadd.s32 %s269, %s270
      %s272 = smul.addr %s271, 4
      %s273 = scalar_lea.vmem %s0, %s272
      %s274 = smul.u32 2, %s22
      %s275 = smul.u32 2, %s22
      %p276 = scmp.lt.s32.totalorder %s21, 1
      %s277 = scalar_select %p276, %s21, 1
      %p278 = scmp.lt.s32.totalorder %s275, 1
      %s279 = scalar_select %p278, %s275, 1
      %s280 = smul.addr %s277, 16
      %s281 = sadd.s32 %s279, %s280
      %s282 = smul.addr %s281, 8
      %s283 = scalar_lea.vmem %s3, %s282
      %s284 = smul.u32 2, %s22
      %p285 = scmp.lt.s32.totalorder %s21, 1
      %s286 = scalar_select %p285, %s21, 1
      %p287 = scmp.lt.s32.totalorder %s22, 0
      %s288 = scalar_select %p287, %s22, 0
      %s289 = sadd.s32 %s288, %s286
      %s290 = scalar_lea.vmem %s4, %s289
      %p291 = scmp.lt.s32.totalorder %s21, 1
      %s292 = scalar_select %p291, %s21, 1
      %p293 = scmp.lt.s32.totalorder %s22, 0
      %s294 = scalar_select %p293, %s22, 0
      %s295 = sadd.s32 %s294, %s292
      %s296 = scalar_lea.vmem %s5, %s295
      %v297 = vld [vmem:[%s273] sm:$0x77]
      %v298 = vld [vmem:[%s1] sm:$0xff]
      %v299 = vld [vmem:[%s1 + $0x8] sm:$0xff]
      %v300 = vld [vmem:[%s1 + $0x10] sm:$0xff]
      %v301 = vld [vmem:[%s1 + $0x18] sm:$0xff]
      %303 = vset.pattern.permute.xlu0 0
      %304 = vperm.xlu0 %303, %v298
      %v305 = vpop.permute.xlu0 %304
      %308 = vset.pattern.permute.xlu0 0
      %309 = vperm.xlu0 %308, %v299
      %v310 = vpop.permute.xlu0 %309
      %313 = vset.pattern.permute.xlu0 0
      %314 = vperm.xlu0 %313, %v300
      %v315 = vpop.permute.xlu0 %314
      %318 = vset.pattern.permute.xlu0 0
      %319 = vperm.xlu0 %318, %v301
      %v320 = vpop.permute.xlu0 %319
      %v323 = vlaneseq
      %v324 = vshrl.u32 %v323, 7
      %v325 = vsub.s32 0, %v324
      %v326 = vrot.slane %v297, %v325
      %v327 = vlaneseq
      %v328 = vshrl.u32 %v327, 7
      %v329 = vsub.s32 4, %v328
      %v330 = vrot.slane %v297, %v329
      %v333 = vlaneseq
      %v334 = vshrl.u32 %v333, 7
      %v335 = vsub.s32 0, %v334
      %v336 = vrot.slane %v326, %v335
      %v337 = vlaneseq
      %v338 = vshrl.u32 %v337, 7
      %v339 = vsub.s32 0, %v338
      %v340 = vrot.slane %v330, %v339
      %v341 = vmul.f32 %v305, %v336
      %v342 = vmul.f32 %v305, %v340
      %v343 = vmul.f32 %v310, %v336
      %v344 = vmul.f32 %v310, %v340
      %v345 = vmul.f32 %v315, %v336
      %v346 = vmul.f32 %v315, %v340
      %v347 = vmul.f32 %v320, %v336
      %v348 = vmul.f32 %v320, %v340
      %349 = vset.pattern.permute.xlu0 1
      %350 = vperm.xlu0 %349, %v298
      %v351 = vpop.permute.xlu0 %350
      %353 = vset.pattern.permute.xlu0 1
      %354 = vperm.xlu0 %353, %v299
      %v355 = vpop.permute.xlu0 %354
      %357 = vset.pattern.permute.xlu0 1
      %358 = vperm.xlu0 %357, %v300
      %v359 = vpop.permute.xlu0 %358
      %361 = vset.pattern.permute.xlu0 1
      %362 = vperm.xlu0 %361, %v301
      %v363 = vpop.permute.xlu0 %362
      %v365 = vlaneseq
      %v366 = vshrl.u32 %v365, 7
      %v367 = vsub.s32 1, %v366
      %v368 = vrot.slane %v297, %v367
      %v369 = vlaneseq
      %v370 = vshrl.u32 %v369, 7
      %v371 = vsub.s32 5, %v370
      %v372 = vrot.slane %v297, %v371
      %v375 = vlaneseq
      %v376 = vshrl.u32 %v375, 7
      %v377 = vsub.s32 1, %v376
      %v378 = vrot.slane %v368, %v377
      %v379 = vlaneseq
      %v380 = vshrl.u32 %v379, 7
      %v381 = vsub.s32 1, %v380
      %v382 = vrot.slane %v372, %v381
      %v383 = vmul.f32 %v351, %v378
      %v384 = vmul.f32 %v351, %v382
      %v385 = vmul.f32 %v355, %v378
      %v386 = vmul.f32 %v355, %v382
      %v387 = vmul.f32 %v359, %v378
      %v388 = vmul.f32 %v359, %v382
      %v389 = vmul.f32 %v363, %v378
      %v390 = vmul.f32 %v363, %v382
      %v391 = vadd.f32 %v341, %v383
      %v392 = vadd.f32 %v342, %v384
      %v393 = vadd.f32 %v343, %v385
      %v394 = vadd.f32 %v344, %v386
      %v395 = vadd.f32 %v345, %v387
      %v396 = vadd.f32 %v346, %v388
      %v397 = vadd.f32 %v347, %v389
      %v398 = vadd.f32 %v348, %v390
      %399 = vset.pattern.permute.xlu0 2
      %400 = vperm.xlu0 %399, %v298
      %v401 = vpop.permute.xlu0 %400
      %403 = vset.pattern.permute.xlu0 2
      %404 = vperm.xlu0 %403, %v299
      %v405 = vpop.permute.xlu0 %404
      %407 = vset.pattern.permute.xlu0 2
      %408 = vperm.xlu0 %407, %v300
      %v409 = vpop.permute.xlu0 %408
      %411 = vset.pattern.permute.xlu0 2
      %412 = vperm.xlu0 %411, %v301
      %v413 = vpop.permute.xlu0 %412
      %v415 = vlaneseq
      %v416 = vshrl.u32 %v415, 7
      %v417 = vsub.s32 2, %v416
      %v418 = vrot.slane %v297, %v417
      %v419 = vlaneseq
      %v420 = vshrl.u32 %v419, 7
      %v421 = vsub.s32 6, %v420
      %v422 = vrot.slane %v297, %v421
      %v425 = vlaneseq
      %v426 = vshrl.u32 %v425, 7
      %v427 = vsub.s32 2, %v426
      %v428 = vrot.slane %v418, %v427
      %v429 = vlaneseq
      %v430 = vshrl.u32 %v429, 7
      %v431 = vsub.s32 2, %v430
      %v432 = vrot.slane %v422, %v431
      %v433 = vmul.f32 %v401, %v428
      %v434 = vmul.f32 %v401, %v432
      %v435 = vmul.f32 %v405, %v428
      %v436 = vmul.f32 %v405, %v432
      %v437 = vmul.f32 %v409, %v428
      %v438 = vmul.f32 %v409, %v432
      %v439 = vmul.f32 %v413, %v428
      %v440 = vmul.f32 %v413, %v432
      %v441 = vadd.f32 %v391, %v433
      %v442 = vadd.f32 %v392, %v434
      %v443 = vadd.f32 %v393, %v435
      %v444 = vadd.f32 %v394, %v436
      %v445 = vadd.f32 %v395, %v437
      %v446 = vadd.f32 %v396, %v438
      %v447 = vadd.f32 %v397, %v439
      %v448 = vadd.f32 %v398, %v440
      %v449 = vld [vmem:[%s2] sm:$0xff]
      %v450 = vld [vmem:[%s2 + $0x8] sm:$0xff]
      %v451 = vld [vmem:[%s2 + $0x10] sm:$0xff]
      %v452 = vld [vmem:[%s2 + $0x18] sm:$0xff]
      %454 = vset.pattern.permute.xlu0 0
      %455 = vperm.xlu0 %454, %v449
      %v456 = vpop.permute.xlu0 %455
      %459 = vset.pattern.permute.xlu0 0
      %460 = vperm.xlu0 %459, %v450
      %v461 = vpop.permute.xlu0 %460
      %464 = vset.pattern.permute.xlu0 0
      %465 = vperm.xlu0 %464, %v451
      %v466 = vpop.permute.xlu0 %465
      %469 = vset.pattern.permute.xlu0 0
      %470 = vperm.xlu0 %469, %v452
      %v471 = vpop.permute.xlu0 %470
      %v473 = vadd.f32 %v441, %v456
      %v474 = vadd.f32 %v442, %v456
      %v475 = vadd.f32 %v443, %v461
      %v476 = vadd.f32 %v444, %v461
      %v477 = vadd.f32 %v445, %v466
      %v478 = vadd.f32 %v446, %v466
      %v479 = vadd.f32 %v447, %v471
      %v480 = vadd.f32 %v448, %v471
      %v481 = vmax.f32 %v473, 0.0
      %v482 = vmax.f32 %v474, 0.0
      %v483 = vmax.f32 %v475, 0.0
      %v484 = vmax.f32 %v476, 0.0
      %v485 = vmax.f32 %v477, 0.0
      %v486 = vmax.f32 %v478, 0.0
      %v487 = vmax.f32 %v479, 0.0
      %v488 = vmax.f32 %v480, 0.0
      %489 = vst [vmem:[%s283] sm:$0xff] %v481
      %490 = vst [vmem:[%s283 + $0x8] sm:$0xff] %v482
      %491 = vst [vmem:[%s283 + $0x10] sm:$0xff] %v483
      %492 = vst [vmem:[%s283 + $0x18] sm:$0xff] %v484
      %493 = vst [vmem:[%s283 + $0x20] sm:$0xff] %v485
      %494 = vst [vmem:[%s283 + $0x28] sm:$0xff] %v486
      %495 = vst [vmem:[%s283 + $0x30] sm:$0xff] %v487
      %496 = vst [vmem:[%s283 + $0x38] sm:$0xff] %v488
      %v497 = vadd.f32 %v481, %v482
      %v498 = vadd.f32 %v497, %v483
      %v499 = vadd.f32 %v498, %v484
      %v500 = vadd.f32 %v499, %v485
      %v501 = vadd.f32 %v500, %v486
      %v502 = vadd.f32 %v501, %v487
      %v503 = vadd.f32 %v502, %v488
      %504 = vadd.xlane.f32.xlu0 %v503
      %v505 = vpop.xlane.xlu0 %504
      %v506 = vrot.slane %v505, 4
      %v507 = vadd.f32 %v505, %v506
      %v508 = vrot.slane %v507, 2
      %v509 = vadd.f32 %v507, %v508
      %v510 = vrot.slane %v509, 1
      %v511 = vadd.f32 %v509, %v510
      %s512 = vtos %v511
      %v513 = vstv %s512
      %514 = vst [vmem:[%s290] sm:$0x1] %v513
      %v515 = vmul.f32 %v481, %v481
      %v516 = vmul.f32 %v482, %v482
      %v517 = vmul.f32 %v483, %v483
      %v518 = vmul.f32 %v484, %v484
      %v519 = vmul.f32 %v485, %v485
      %v520 = vmul.f32 %v486, %v486
      %v521 = vmul.f32 %v487, %v487
      %v522 = vmul.f32 %v488, %v488
      %v523 = vadd.f32 %v515, %v516
      %v524 = vadd.f32 %v523, %v517
      %v525 = vadd.f32 %v524, %v518
      %v526 = vadd.f32 %v525, %v519
      %v527 = vadd.f32 %v526, %v520
      %v528 = vadd.f32 %v527, %v521
      %v529 = vadd.f32 %v528, %v522
      %530 = vadd.xlane.f32.xlu0 %v529
      %v531 = vpop.xlane.xlu0 %530
      %v532 = vrot.slane %v531, 4
      %v533 = vadd.f32 %v531, %v532
      %v534 = vrot.slane %v533, 2
      %v535 = vadd.f32 %v533, %v534
      %v536 = vrot.slane %v535, 1
      %v537 = vadd.f32 %v535, %v536
      %s538 = vtos %v537
      %v539 = vstv %s538
      %540 = vst [vmem:[%s296] sm:$0x1] %v539
      %s541 = smul.u32 2, %s22
      %p542 = scmp.lt.s32.totalorder %s21, 1
      %s543 = scalar_select %p542, %s21, 1
      %p544 = scmp.lt.s32.totalorder %s541, 1
      %s545 = scalar_select %p544, %s541, 1
      %s546 = smul.addr %s543, 16
      %s547 = sadd.s32 %s545, %s546
      %s548 = smul.addr %s547, 8
      %s549 = scalar_lea.vmem %s3, %s548
      %p550 = scmp.lt.s32.totalorder %s21, 1
      %s551 = scalar_select %p550, %s21, 1
      %p552 = scmp.lt.s32.totalorder %s22, 0
      %s553 = scalar_select %p552, %s22, 0
      %s554 = sadd.s32 %s553, %s551
      %s555 = scalar_lea.vmem %s4, %s554
      %p556 = scmp.lt.s32.totalorder %s21, 1
      %s557 = scalar_select %p556, %s21, 1
      %p558 = scmp.lt.s32.totalorder %s22, 0
      %s559 = scalar_select %p558, %s22, 0
      %s560 = sadd.s32 %s559, %s557
      %s561 = scalar_lea.vmem %s5, %s560
      // Predicated region
      $region33: #{rcnn3d_combined_features_forward.4} parent=31 // pred_check
        %p562 = pneg %p119
      $region34: #{rcnn3d_combined_features_forward.4} parent=31 // pred_check_branch
        %564 = sbr.rel (%p562) target = $region36
      $region35: #{rcnn3d_combined_features_forward.4} parent=31 // pred_region
        %s565 = smul.u32 2, %s22
      $region36: #{rcnn3d_combined_features_forward.4} parent=31 // pred_fallthru
        _
      // Predicated region
      $region37: #{rcnn3d_combined_features_forward.4} parent=31 // pred_check
        %p566 = pneg %p147
      $region38: #{rcnn3d_combined_features_forward.4} parent=31 // pred_check_branch
        %568 = sbr.rel (%p566) target = $region40
      $region39: #{rcnn3d_combined_features_forward.4} parent=31 // pred_region
        _
      $region40: #{rcnn3d_combined_features_forward.4} parent=31 // pred_fallthru
        _
      // Predicated region
      $region41: #{rcnn3d_combined_features_forward.4} parent=31 // pred_check
        %p569 = pneg %p175
      $region42: #{rcnn3d_combined_features_forward.4} parent=31 // pred_check_branch
        %571 = sbr.rel (%p569) target = $region44
      $region43: #{rcnn3d_combined_features_forward.4} parent=31 // pred_region
        _
      $region44: #{rcnn3d_combined_features_forward.4} parent=31 // pred_fallthru
        _
    $region32: #{rcnn3d_combined_features_forward.4} parent=5 // pred_fallthru
      _
    %p572 = scmp.le.s32.totalorder 2, %s12
    // Predicated region
    $region45: #{rcnn3d_combined_features_forward.4} parent=5 // pred_check
      %p573 = pneg %p572
    $region46: #{rcnn3d_combined_features_forward.4} parent=5 // pred_check_branch
      %575 = sbr.rel (%p573) target = $region48
    $region47: #{rcnn3d_combined_features_forward.4} parent=5 // pred_region
      %s576 = ssub.s32 %s12, 2
      // Predicated region
      $region49: #{rcnn3d_combined_features_forward.4} parent=47 // pred_check
        %p577 = pneg %p125
      $region50: #{rcnn3d_combined_features_forward.4} parent=47 // pred_check_branch
        %579 = sbr.rel (%p577) target = $region52
      $region51: #{rcnn3d_combined_features_forward.4} parent=47 // pred_region
        %s580 = smul.u32 2, %s24
        %p581 = scmp.lt.s32.totalorder %s23, 1
        %s582 = scalar_select %p581, %s23, 1
        %p583 = scmp.lt.s32.totalorder %s580, 1
        %s584 = scalar_select %p583, %s580, 1
        %s585 = smul.addr %s582, 16
        %s586 = sadd.s32 %s584, %s585
        %s587 = smul.addr %s586, 8
        %s588 = scalar_lea.vmem %s3, %s587
      $region52: #{rcnn3d_combined_features_forward.4} parent=47 // pred_fallthru
        _
      // Predicated region
      $region53: #{rcnn3d_combined_features_forward.4} parent=47 // pred_check
        %p589 = pneg %p153
      $region54: #{rcnn3d_combined_features_forward.4} parent=47 // pred_check_branch
        %591 = sbr.rel (%p589) target = $region56
      $region55: #{rcnn3d_combined_features_forward.4} parent=47 // pred_region
        %p592 = scmp.lt.s32.totalorder %s23, 1
        %s593 = scalar_select %p592, %s23, 1
        %p594 = scmp.lt.s32.totalorder %s24, 0
        %s595 = scalar_select %p594, %s24, 0
        %s596 = sadd.s32 %s595, %s593
        %s597 = scalar_lea.vmem %s4, %s596
      $region56: #{rcnn3d_combined_features_forward.4} parent=47 // pred_fallthru
        _
      // Predicated region
      $region57: #{rcnn3d_combined_features_forward.4} parent=47 // pred_check
        %p598 = pneg %p181
      $region58: #{rcnn3d_combined_features_forward.4} parent=47 // pred_check_branch
        %600 = sbr.rel (%p598) target = $region60
      $region59: #{rcnn3d_combined_features_forward.4} parent=47 // pred_region
        %p601 = scmp.lt.s32.totalorder %s23, 1
        %s602 = scalar_select %p601, %s23, 1
        %p603 = scmp.lt.s32.totalorder %s24, 0
        %s604 = scalar_select %p603, %s24, 0
        %s605 = sadd.s32 %s604, %s602
        %s606 = scalar_lea.vmem %s5, %s605
      $region60: #{rcnn3d_combined_features_forward.4} parent=47 // pred_fallthru
        _
    $region48: #{rcnn3d_combined_features_forward.4} parent=5 // pred_fallthru
      _
  $region6: #{rcnn3d_combined_features_forward.4} parent=0 // loop_footer
    %s16 = sadd.s32 1, %s12
  $region7: #{rcnn3d_combined_features_forward.4} parent=0 // loop_footer_branch
    %11 = sbr.rel target = $region3
  $region8: #{rcnn3d_combined_features_forward.4} parent=0 // loop_exit
    _

// kernel: rcnn3d_combined_features_forward.7
$region0: #{rcnn3d_combined_features_forward.7}
  #allocation0 [shape = 'u32[]', space=smem, size = 0x4, offset = 0x4, fixed_abs, tag = 'smem constant byte address 0x4 - core index']
  #allocation1 [shape = 'u32[144,128]{1,0:T(1,128)}', space=vmem, size = 0x12000, scoped, tag = 'internal scratch']
  %s0 = inlined_call_operand.vmem [shape: f32[1,2], index: 0, kind: input, shape index: {}]
  %s1 = inlined_call_operand.vmem [shape: f32[2,32,256], index: 1, kind: input, shape index: {}]
  %s2 = inlined_call_operand.vmem [shape: f32[2,64,256], index: 2, kind: input, shape index: {}, may-alias: {2,3}]
  %s3 = inlined_call_operand.vmem [shape: f32[2,64,256], index: 3, kind: output, shape index: {}, may-alias: {2,3}]
  %s4 = sld [smem:[#allocation0]]
  $region45: #{rcnn3d_combined_features_forward.7} parent=0
    _
  %s6 = ssub.s32 1, %s4
  %s7 = scalar_select 0, %s6, %s4
  $region1: #{rcnn3d_combined_features_forward.7} parent=0
    #allocation2 [shape = 'u8[512]{0}', space=smem, size = 0x200, scoped, tag = 'input window, operand 0, single buffered']
    #allocation3 [shape = 's32[2]{0}', space=sflag, size = 0x8, scoped, tag = 'scoped memory for rcnn3d_combined_features_forward.7']
    %8 = vsyncpa [#allocation3], 0
    loop: start=0, step=1, limit=4
    $region2: #{rcnn3d_combined_features_forward.7} parent=1 // loop_pre_header
      _
    $region3: #{rcnn3d_combined_features_forward.7} parent=1 // loop_header
      %s10 = sphi 0, %s14
      %p11 = scmp.ge.s32.totalorder %s10, 4
      %s17 = sphi 0, %s29
      %s18 = sphi 0, %s25
      %s19 = sphi 0, %s17
      %s20 = sphi 0, %s18
      %s21 = sphi 0, %s19
      %s22 = sphi 0, %s20
      %s30 = sphi 0, %s30
      %s32 = sphi 0, %s30
      %s33 = sphi 0, %s32
      %s47 = sphi 0, %s33
      %s55 = sphi 0, %s57
      %s58 = sphi 0, %s55
      %s59 = sphi 0, %s58
      %s75 = sphi 0, %s59
      %s83 = sphi 0, %s85
      %s86 = sphi 0, %s83
      %s87 = sphi 0, %s86
      %s103 = sphi 0, %s87
    $region4: #{rcnn3d_combined_features_forward.7} parent=1 // loop_header_branch
      %13 = sbr.rel (%p11) target = $region8
    $region5: #{rcnn3d_combined_features_forward.7} parent=1 // loop_body
      %s15 = ssub.s32 %s10, 1
      %s16 = ssub.s32 %s10, 2
      %s23 = sadd.s32 1, %s18
      %p24 = scmp.ge.s32.totalorder %s23, 1
      %s25 = scalar_select %p24, 0, %s23
      %s26 = sadd.s32 1, %s17
      %s27 = scalar_select %p24, %s26, %s17
      %p28 = scmp.ge.s32.totalorder %s27, 2
      %s29 = scalar_select %p28, 0, %s27
      %s31 = sadd.s32 %s30, 1
      %p34 = scmp.eq.s32.totalorder %s10, 1
      %p35 = scmp.ne.s32.totalorder %s30, %s32
      %p36 = scmp.eq.s32.totalorder %s10, 0
      %p37 = por %p35, %p36
      %p38 = scmp.ne.s32.totalorder %s30, %s32
      %p39 = scmp.eq.s32.totalorder %s15, 1
      %p40 = por %p38, %p39
      %p41 = scmp.ne.s32.totalorder %s32, %s33
      %p42 = scmp.eq.s32.totalorder %s15, 0
      %p43 = por %p41, %p42
      %p44 = scmp.ne.s32.totalorder %s32, %s33
      %p45 = scmp.eq.s32.totalorder %s16, 1
      %p46 = por %p44, %p45
      %p48 = scmp.ne.s32.totalorder %s33, %s47
      %p49 = scmp.eq.s32.totalorder %s16, 0
      %p50 = por %p48, %p49
      %s51 = ssub.s32 %s17, %s29
      %s52 = ssub.s32 %s18, %s25
      %s53 = sor.u32 %s51, %s52
      %p54 = scmp.eq.s32.totalorder %s53, 0
      %s56 = sadd.s32 %s55, 1
      %s57 = scalar_select %p54, %s55, %s56
      %p60 = pneg %p54
      %p61 = scmp.eq.s32.totalorder %s10, 1
      %p62 = por %p60, %p61
      %p63 = scmp.ne.s32.totalorder %s55, %s58
      %p64 = scmp.eq.s32.totalorder %s10, 0
      %p65 = por %p63, %p64
      %p66 = scmp.ne.s32.totalorder %s55, %s58
      %p67 = scmp.eq.s32.totalorder %s15, 1
      %p68 = por %p66, %p67
      %p69 = scmp.ne.s32.totalorder %s58, %s59
      %p70 = scmp.eq.s32.totalorder %s15, 0
      %p71 = por %p69, %p70
      %p72 = scmp.ne.s32.totalorder %s58, %s59
      %p73 = scmp.eq.s32.totalorder %s16, 1
      %p74 = por %p72, %p73
      %p76 = scmp.ne.s32.totalorder %s59, %s75
      %p77 = scmp.eq.s32.totalorder %s16, 0
      %p78 = por %p76, %p77
      %s79 = ssub.s32 %s17, %s29
      %s80 = ssub.s32 %s18, %s25
      %s81 = sor.u32 %s79, %s80
      %p82 = scmp.eq.s32.totalorder %s81, 0
      %s84 = sadd.s32 %s83, 1
      %s85 = scalar_select %p82, %s83, %s84
      %p88 = pneg %p82
      %p89 = scmp.eq.s32.totalorder %s10, 1
      %p90 = por %p88, %p89
      %p91 = scmp.ne.s32.totalorder %s83, %s86
      %p92 = scmp.eq.s32.totalorder %s10, 0
      %p93 = por %p91, %p92
      %p94 = scmp.ne.s32.totalorder %s83, %s86
      %p95 = scmp.eq.s32.totalorder %s15, 1
      %p96 = por %p94, %p95
      %p97 = scmp.ne.s32.totalorder %s86, %s87
      %p98 = scmp.eq.s32.totalorder %s15, 0
      %p99 = por %p97, %p98
      %p100 = scmp.ne.s32.totalorder %s86, %s87
      %p101 = scmp.eq.s32.totalorder %s16, 1
      %p102 = por %p100, %p101
      %p104 = scmp.ne.s32.totalorder %s87, %s103
      %p105 = scmp.eq.s32.totalorder %s16, 0
      %p106 = por %p104, %p105
      %p107 = scmp.le.s32.totalorder 1, %s10
      %p108 = scmp.lt.s32.totalorder %s10, 3
      %p109 = pnand %p107, %p108
      %p110 = pneg %p109
      // Predicated region
      $region9: #{rcnn3d_combined_features_forward.7} parent=5 // pred_check
        _
      $region10: #{rcnn3d_combined_features_forward.7} parent=5 // pred_check_branch
        %112 = sbr.rel (%p109) target = $region12
      $region11: #{rcnn3d_combined_features_forward.7} parent=5 // pred_region
        %s113 = ssub.s32 %s10, 1
        // Predicated region
        $region13: #{rcnn3d_combined_features_forward.7} parent=11 // pred_check
          %p114 = pneg %p43
        $region14: #{rcnn3d_combined_features_forward.7} parent=11 // pred_check_branch
          %116 = sbr.rel (%p114) target = $region16
        $region15: #{rcnn3d_combined_features_forward.7} parent=11 // pred_region
          %s118 = ssub.s32 16, 16
          %119 = vsyncadd [#allocation3], %s118
          %s121 = sshll.u32 %s0, 4
          %s122 = int_to_ptr.vmem [resolvable:$true] %s121
          %124 = dma.vmem_to_smem %s122, 16, [#allocation2], [#allocation3]
        $region16: #{rcnn3d_combined_features_forward.7} parent=11 // pred_fallthru
          _
      $region12: #{rcnn3d_combined_features_forward.7} parent=5 // pred_fallthru
        _
      %p125 = scmp.lt.s32.totalorder %s10, 2
      // Predicated region
      $region17: #{rcnn3d_combined_features_forward.7} parent=5 // pred_check
        %p126 = pneg %p125
      $region18: #{rcnn3d_combined_features_forward.7} parent=5 // pred_check_branch
        %128 = sbr.rel (%p126) target = $region20
      $region19: #{rcnn3d_combined_features_forward.7} parent=5 // pred_region
        // Predicated region
        $region21: #{rcnn3d_combined_features_forward.7} parent=19 // pred_check
          %p129 = pneg %p65
        $region22: #{rcnn3d_combined_features_forward.7} parent=19 // pred_check_branch
          %131 = sbr.rel (%p129) target = $region24
        $region23: #{rcnn3d_combined_features_forward.7} parent=19 // pred_region
          %s132 = smul.u32 2, %s18
          %p133 = scmp.lt.s32.totalorder %s17, 1
          %s134 = scalar_select %p133, %s17, 1
          %p135 = scmp.lt.s32.totalorder %s132, 1
          %s136 = scalar_select %p135, %s132, 1
          %s137 = smul.addr %s134, 8
          %s138 = sadd.s32 %s136, %s137
          %s139 = smul.addr %s138, 8
          %s140 = scalar_lea.vmem %s1, %s139
          %s141 = smul.u32 2, %s18
        $region24: #{rcnn3d_combined_features_forward.7} parent=19 // pred_fallthru
          _
      $region20: #{rcnn3d_combined_features_forward.7} parent=5 // pred_fallthru
        _
      %p142 = scmp.le.s32.totalorder 1, %s10
      %p143 = scmp.lt.s32.totalorder %s10, 3
      %p144 = pnand %p142, %p143
      %p145 = pneg %p144
      // Predicated region
      $region25: #{rcnn3d_combined_features_forward.7} parent=5 // pred_check
        _
      $region26: #{rcnn3d_combined_features_forward.7} parent=5 // pred_check_branch
        %147 = sbr.rel (%p144) target = $region28
      $region27: #{rcnn3d_combined_features_forward.7} parent=5 // pred_region
        %s148 = ssub.s32 %s10, 1
        // Predicated region
        $region29: #{rcnn3d_combined_features_forward.7} parent=27 // pred_check
          %p149 = pneg %p43
        $region30: #{rcnn3d_combined_features_forward.7} parent=27 // pred_check_branch
          %151 = sbr.rel (%p149) target = $region32
        $region31: #{rcnn3d_combined_features_forward.7} parent=27 // pred_region
          %152 = dma.done [#allocation3], 16
        $region32: #{rcnn3d_combined_features_forward.7} parent=27 // pred_fallthru
          _
        %153 = sfence
        %p154 = pneg %p43
        %p155 = pneg %p40
        %s156 = smul.u32 2, %s20
        %p157 = scmp.lt.s32.totalorder %s19, 1
        %s158 = scalar_select %p157, %s19, 1
        %p159 = scmp.lt.s32.totalorder %s156, 1
        %s160 = scalar_select %p159, %s156, 1
        %s161 = smul.addr %s158, 8
        %s162 = sadd.s32 %s160, %s161
        %s163 = smul.addr %s162, 8
        %s164 = scalar_lea.vmem %s1, %s163
        %p165 = pneg %p71
        %p166 = pneg %p68
        %p167 = pneg %p99
        %p168 = pneg %p96
        %s169 = smul.u32 2, %s20
        %p170 = scmp.lt.s32.totalorder %s19, 1
        %s171 = scalar_select %p170, %s19, 1
        %p172 = scmp.lt.s32.totalorder %s169, 1
        %s173 = scalar_select %p172, %s169, 1
        %s174 = sadd.s32 %s173, 8
        %s175 = smul.addr %s171, 16
        %s176 = sadd.s32 %s174, %s175
        %s177 = smul.addr %s176, 8
        %s178 = scalar_lea.vmem %s3, %s177
        %s179 = smul.u32 2, %s20
        %p180 = scmp.lt.s32.totalorder %s19, 1
        %s181 = scalar_select %p180, %s19, 1
        %p182 = scmp.lt.s32.totalorder %s179, 1
        %s183 = scalar_select %p182, %s179, 1
        %s184 = smul.addr %s181, 8
        %s185 = sadd.s32 %s183, %s184
        %s186 = smul.addr %s185, 8
        %s187 = scalar_lea.vmem %s1, %s186
        %s188 = smul.u32 2, %s20
        %s189 = smul.u32 2, %s20
        %p190 = scmp.lt.s32.totalorder %s19, 1
        %s191 = scalar_select %p190, %s19, 1
        %p192 = scmp.lt.s32.totalorder %s189, 1
        %s193 = scalar_select %p192, %s189, 1
        %s194 = sadd.s32 %s193, 8
        %s195 = smul.addr %s191, 16
        %s196 = sadd.s32 %s194, %s195
        %s197 = smul.addr %s196, 8
        %s198 = scalar_lea.vmem %s3, %s197
        %s199 = smul.u32 2, %s20
        %v200 = vld [vmem:[%s187] sm:$0xff]
        %v201 = vld [vmem:[%s187 + $0x8] sm:$0xff]
        %v202 = vld [vmem:[%s187 + $0x10] sm:$0xff]
        %v203 = vld [vmem:[%s187 + $0x18] sm:$0xff]
        %v204 = vld [vmem:[%s187 + $0x20] sm:$0xff]
        %v205 = vld [vmem:[%s187 + $0x28] sm:$0xff]
        %v206 = vld [vmem:[%s187 + $0x30] sm:$0xff]
        %v207 = vld [vmem:[%s187 + $0x38] sm:$0xff]
        %s208 = sld [smem:[#allocation2]]
        %v209 = vstv %s208
        %v210 = vmul.f32 %v200, %v209
        %v211 = vmul.f32 %v201, %v209
        %v212 = vmul.f32 %v202, %v209
        %v213 = vmul.f32 %v203, %v209
        %v214 = vmul.f32 %v204, %v209
        %v215 = vmul.f32 %v205, %v209
        %v216 = vmul.f32 %v206, %v209
        %v217 = vmul.f32 %v207, %v209
        %s218 = sld [smem:[#allocation2 + $0x1]]
        %v219 = vstv %s218
        %v220 = vadd.f32 %v210, %v219
        %v221 = vadd.f32 %v211, %v219
        %v222 = vadd.f32 %v212, %v219
        %v223 = vadd.f32 %v213, %v219
        %v224 = vadd.f32 %v214, %v219
        %v225 = vadd.f32 %v215, %v219
        %v226 = vadd.f32 %v216, %v219
        %v227 = vadd.f32 %v217, %v219
        %228 = vst [vmem:[%s198] sm:$0xff] %v220
        %229 = vst [vmem:[%s198 + $0x8] sm:$0xff] %v221
        %230 = vst [vmem:[%s198 + $0x10] sm:$0xff] %v222
        %231 = vst [vmem:[%s198 + $0x18] sm:$0xff] %v223
        %232 = vst [vmem:[%s198 + $0x20] sm:$0xff] %v224
        %233 = vst [vmem:[%s198 + $0x28] sm:$0xff] %v225
        %234 = vst [vmem:[%s198 + $0x30] sm:$0xff] %v226
        %235 = vst [vmem:[%s198 + $0x38] sm:$0xff] %v227
        %s236 = smul.u32 2, %s20
        %p237 = scmp.lt.s32.totalorder %s19, 1
        %s238 = scalar_select %p237, %s19, 1
        %p239 = scmp.lt.s32.totalorder %s236, 1
        %s240 = scalar_select %p239, %s236, 1
        %s241 = sadd.s32 %s240, 8
        %s242 = smul.addr %s238, 16
        %s243 = sadd.s32 %s241, %s242
        %s244 = smul.addr %s243, 8
        %s245 = scalar_lea.vmem %s3, %s244
        // Predicated region
        $region33: #{rcnn3d_combined_features_forward.7} parent=27 // pred_check
          %p246 = pneg %p96
        $region34: #{rcnn3d_combined_features_forward.7} parent=27 // pred_check_branch
          %248 = sbr.rel (%p246) target = $region36
        $region35: #{rcnn3d_combined_features_forward.7} parent=27 // pred_region
          %s249 = smul.u32 2, %s20
        $region36: #{rcnn3d_combined_features_forward.7} parent=27 // pred_fallthru
          _
      $region28: #{rcnn3d_combined_features_forward.7} parent=5 // pred_fallthru
        _
      %p250 = scmp.le.s32.totalorder 2, %s10
      // Predicated region
      $region37: #{rcnn3d_combined_features_forward.7} parent=5 // pred_check
        %p251 = pneg %p250
      $region38: #{rcnn3d_combined_features_forward.7} parent=5 // pred_check_branch
        %253 = sbr.rel (%p251) target = $region40
      $region39: #{rcnn3d_combined_features_forward.7} parent=5 // pred_region
        %s254 = ssub.s32 %s10, 2
        // Predicated region
        $region41: #{rcnn3d_combined_features_forward.7} parent=39 // pred_check
          %p255 = pneg %p102
        $region42: #{rcnn3d_combined_features_forward.7} parent=39 // pred_check_branch
          %257 = sbr.rel (%p255) target = $region44
        $region43: #{rcnn3d_combined_features_forward.7} parent=39 // pred_region
          %s258 = smul.u32 2, %s22
          %p259 = scmp.lt.s32.totalorder %s21, 1
          %s260 = scalar_select %p259, %s21, 1
          %p261 = scmp.lt.s32.totalorder %s258, 1
          %s262 = scalar_select %p261, %s258, 1
          %s263 = sadd.s32 %s262, 8
          %s264 = smul.addr %s260, 16
          %s265 = sadd.s32 %s263, %s264
          %s266 = smul.addr %s265, 8
          %s267 = scalar_lea.vmem %s3, %s266
        $region44: #{rcnn3d_combined_features_forward.7} parent=39 // pred_fallthru
          _
      $region40: #{rcnn3d_combined_features_forward.7} parent=5 // pred_fallthru
        _
    $region6: #{rcnn3d_combined_features_forward.7} parent=1 // loop_footer
      %s14 = sadd.s32 1, %s10
    $region7: #{rcnn3d_combined_features_forward.7} parent=1 // loop_footer_branch
      %9 = sbr.rel target = $region3
    $region8: #{rcnn3d_combined_features_forward.7} parent=1 // loop_exit
      _
    %268 = vsyncpa [#allocation3], 1
    %s269 = scalar_lea.sflag [#allocation3], 1
    %270 = vsyncpa %s269, 1

// kernel: rcnn3d_combined_features_forward.6
$region0: #{rcnn3d_combined_features_forward.6}
  #allocation0 [shape = 'u32[]', space=smem, size = 0x4, offset = 0x4, fixed_abs, tag = 'smem constant byte address 0x4 - core index']
  #allocation1 [shape = 'u32[144,128]{1,0:T(1,128)}', space=vmem, size = 0x12000, scoped, tag = 'internal scratch']
  %s0 = inlined_call_operand.vmem [shape: bf16[16,8], index: 0, kind: input, shape index: {}]
  %s1 = inlined_call_operand.vmem [shape: bf16[8,16], index: 1, kind: input, shape index: {}]
  %s2 = inlined_call_operand.vmem [shape: f32[64,8,8], index: 2, kind: input, shape index: {}]
  %s3 = inlined_call_operand.vmem [shape: f32[64,16,16], index: 3, kind: output, shape index: {0}]
  %s4 = inlined_call_operand.vmem [shape: f32[8,1,1,128], index: 4, kind: output, shape index: {1}]
  %s5 = inlined_call_operand.vmem [shape: f32[8,1,1,128], index: 5, kind: output, shape index: {2}]
  %6 = xla_tuple %s3, %s4, %s5
  %s7 = sld [smem:[#allocation0]]
  $region61: #{rcnn3d_combined_features_forward.6} parent=0
    _
  %s9 = ssub.s32 1, %s7
  %s10 = scalar_select 0, %s9, %s7
  loop: start=0, step=1, limit=10
  $region2: #{rcnn3d_combined_features_forward.6} parent=0 // loop_pre_header
    _
  $region3: #{rcnn3d_combined_features_forward.6} parent=0 // loop_header
    %s12 = sphi 0, %s16
    %p13 = scmp.ge.s32.totalorder %s12, 10
    %s19 = sphi 0, %s31
    %s20 = sphi 0, %s27
    %s21 = sphi 0, %s19
    %s22 = sphi 0, %s20
    %s23 = sphi 0, %s21
    %s24 = sphi 0, %s22
    %s34 = sphi 0, %s36
    %s37 = sphi 0, %s34
    %s38 = sphi 0, %s37
    %s54 = sphi 0, %s38
    %s58 = sphi 0, %s58
    %s60 = sphi 0, %s58
    %s61 = sphi 0, %s60
    %s75 = sphi 0, %s61
    %s81 = sphi 0, %s83
    %s84 = sphi 0, %s81
    %s85 = sphi 0, %s84
    %s101 = sphi 0, %s85
    %s109 = sphi 0, %s111
    %s112 = sphi 0, %s109
    %s113 = sphi 0, %s112
    %s129 = sphi 0, %s113
    %s137 = sphi 0, %s139
    %s140 = sphi 0, %s137
    %s141 = sphi 0, %s140
    %s157 = sphi 0, %s141
    %s165 = sphi 0, %s167
    %s168 = sphi 0, %s165
    %s169 = sphi 0, %s168
    %s185 = sphi 0, %s169
  $region4: #{rcnn3d_combined_features_forward.6} parent=0 // loop_header_branch
    %15 = sbr.rel (%p13) target = $region8
  $region5: #{rcnn3d_combined_features_forward.6} parent=0 // loop_body
    %s17 = ssub.s32 %s12, 1
    %s18 = ssub.s32 %s12, 2
    %s25 = sadd.s32 1, %s20
    %p26 = scmp.ge.s32.totalorder %s25, 1
    %s27 = scalar_select %p26, 0, %s25
    %s28 = sadd.s32 1, %s19
    %s29 = scalar_select %p26, %s28, %s19
    %p30 = scmp.ge.s32.totalorder %s29, 8
    %s31 = scalar_select %p30, 0, %s29
    %s32 = ssub.s32 %s20, %s27
    %p33 = scmp.eq.s32.totalorder %s32, 0
    %s35 = sadd.s32 %s34, 1
    %s36 = scalar_select %p33, %s34, %s35
    %p39 = pneg %p33
    %p40 = scmp.eq.s32.totalorder %s12, 7
    %p41 = por %p39, %p40
    %p42 = scmp.ne.s32.totalorder %s34, %s37
    %p43 = scmp.eq.s32.totalorder %s12, 0
    %p44 = por %p42, %p43
    %p45 = scmp.ne.s32.totalorder %s34, %s37
    %p46 = scmp.eq.s32.totalorder %s17, 7
    %p47 = por %p45, %p46
    %p48 = scmp.ne.s32.totalorder %s37, %s38
    %p49 = scmp.eq.s32.totalorder %s17, 0
    %p50 = por %p48, %p49
    %p51 = scmp.ne.s32.totalorder %s37, %s38
    %p52 = scmp.eq.s32.totalorder %s18, 7
    %p53 = por %p51, %p52
    %p55 = scmp.ne.s32.totalorder %s38, %s54
    %p56 = scmp.eq.s32.totalorder %s18, 0
    %p57 = por %p55, %p56
    %s59 = sadd.s32 %s58, 1
    %p62 = scmp.eq.s32.totalorder %s12, 7
    %p63 = scmp.ne.s32.totalorder %s58, %s60
    %p64 = scmp.eq.s32.totalorder %s12, 0
    %p65 = por %p63, %p64
    %p66 = scmp.ne.s32.totalorder %s58, %s60
    %p67 = scmp.eq.s32.totalorder %s17, 7
    %p68 = por %p66, %p67
    %p69 = scmp.ne.s32.totalorder %s60, %s61
    %p70 = scmp.eq.s32.totalorder %s17, 0
    %p71 = por %p69, %p70
    %p72 = scmp.ne.s32.totalorder %s60, %s61
    %p73 = scmp.eq.s32.totalorder %s18, 7
    %p74 = por %p72, %p73
    %p76 = scmp.ne.s32.totalorder %s61, %s75
    %p77 = scmp.eq.s32.totalorder %s18, 0
    %p78 = por %p76, %p77
    %s79 = ssub.s32 %s19, %s31
    %p80 = scmp.eq.s32.totalorder %s79, 0
    %s82 = sadd.s32 %s81, 1
    %s83 = scalar_select %p80, %s81, %s82
    %p86 = pneg %p80
    %p87 = scmp.eq.s32.totalorder %s12, 7
    %p88 = por %p86, %p87
    %p89 = scmp.ne.s32.totalorder %s81, %s84
    %p90 = scmp.eq.s32.totalorder %s12, 0
    %p91 = por %p89, %p90
    %p92 = scmp.ne.s32.totalorder %s81, %s84
    %p93 = scmp.eq.s32.totalorder %s17, 7
    %p94 = por %p92, %p93
    %p95 = scmp.ne.s32.totalorder %s84, %s85
    %p96 = scmp.eq.s32.totalorder %s17, 0
    %p97 = por %p95, %p96
    %p98 = scmp.ne.s32.totalorder %s84, %s85
    %p99 = scmp.eq.s32.totalorder %s18, 7
    %p100 = por %p98, %p99
    %p102 = scmp.ne.s32.totalorder %s85, %s101
    %p103 = scmp.eq.s32.totalorder %s18, 0
    %p104 = por %p102, %p103
    %s105 = ssub.s32 %s19, %s31
    %s106 = ssub.s32 %s20, %s27
    %s107 = sor.u32 %s105, %s106
    %p108 = scmp.eq.s32.totalorder %s107, 0
    %s110 = sadd.s32 %s109, 1
    %s111 = scalar_select %p108, %s109, %s110
    %p114 = pneg %p108
    %p115 = scmp.eq.s32.totalorder %s12, 7
    %p116 = por %p114, %p115
    %p117 = scmp.ne.s32.totalorder %s109, %s112
    %p118 = scmp.eq.s32.totalorder %s12, 0
    %p119 = por %p117, %p118
    %p120 = scmp.ne.s32.totalorder %s109, %s112
    %p121 = scmp.eq.s32.totalorder %s17, 7
    %p122 = por %p120, %p121
    %p123 = scmp.ne.s32.totalorder %s112, %s113
    %p124 = scmp.eq.s32.totalorder %s17, 0
    %p125 = por %p123, %p124
    %p126 = scmp.ne.s32.totalorder %s112, %s113
    %p127 = scmp.eq.s32.totalorder %s18, 7
    %p128 = por %p126, %p127
    %p130 = scmp.ne.s32.totalorder %s113, %s129
    %p131 = scmp.eq.s32.totalorder %s18, 0
    %p132 = por %p130, %p131
    %s133 = ssub.s32 %s19, %s31
    %s134 = ssub.s32 %s20, %s27
    %s135 = sor.u32 %s133, %s134
    %p136 = scmp.eq.s32.totalorder %s135, 0
    %s138 = sadd.s32 %s137, 1
    %s139 = scalar_select %p136, %s137, %s138
    %p142 = pneg %p136
    %p143 = scmp.eq.s32.totalorder %s12, 7
    %p144 = por %p142, %p143
    %p145 = scmp.ne.s32.totalorder %s137, %s140
    %p146 = scmp.eq.s32.totalorder %s12, 0
    %p147 = por %p145, %p146
    %p148 = scmp.ne.s32.totalorder %s137, %s140
    %p149 = scmp.eq.s32.totalorder %s17, 7
    %p150 = por %p148, %p149
    %p151 = scmp.ne.s32.totalorder %s140, %s141
    %p152 = scmp.eq.s32.totalorder %s17, 0
    %p153 = por %p151, %p152
    %p154 = scmp.ne.s32.totalorder %s140, %s141
    %p155 = scmp.eq.s32.totalorder %s18, 7
    %p156 = por %p154, %p155
    %p158 = scmp.ne.s32.totalorder %s141, %s157
    %p159 = scmp.eq.s32.totalorder %s18, 0
    %p160 = por %p158, %p159
    %s161 = ssub.s32 %s19, %s31
    %s162 = ssub.s32 %s20, %s27
    %s163 = sor.u32 %s161, %s162
    %p164 = scmp.eq.s32.totalorder %s163, 0
    %s166 = sadd.s32 %s165, 1
    %s167 = scalar_select %p164, %s165, %s166
    %p170 = pneg %p164
    %p171 = scmp.eq.s32.totalorder %s12, 7
    %p172 = por %p170, %p171
    %p173 = scmp.ne.s32.totalorder %s165, %s168
    %p174 = scmp.eq.s32.totalorder %s12, 0
    %p175 = por %p173, %p174
    %p176 = scmp.ne.s32.totalorder %s165, %s168
    %p177 = scmp.eq.s32.totalorder %s17, 7
    %p178 = por %p176, %p177
    %p179 = scmp.ne.s32.totalorder %s168, %s169
    %p180 = scmp.eq.s32.totalorder %s17, 0
    %p181 = por %p179, %p180
    %p182 = scmp.ne.s32.totalorder %s168, %s169
    %p183 = scmp.eq.s32.totalorder %s18, 7
    %p184 = por %p182, %p183
    %p186 = scmp.ne.s32.totalorder %s169, %s185
    %p187 = scmp.eq.s32.totalorder %s18, 0
    %p188 = por %p186, %p187
    %p189 = scmp.le.s32.totalorder 1, %s12
    %p190 = scmp.lt.s32.totalorder %s12, 9
    %p191 = pnand %p189, %p190
    %p192 = pneg %p191
    // Predicated region
    $region9: #{rcnn3d_combined_features_forward.6} parent=5 // pred_check
      _
    $region10: #{rcnn3d_combined_features_forward.6} parent=5 // pred_check_branch
      %194 = sbr.rel (%p191) target = $region12
    $region11: #{rcnn3d_combined_features_forward.6} parent=5 // pred_region
      %s195 = ssub.s32 %s12, 1
      // Predicated region
      $region13: #{rcnn3d_combined_features_forward.6} parent=11 // pred_check
        %p196 = pneg %p50
      $region14: #{rcnn3d_combined_features_forward.6} parent=11 // pred_check_branch
        %198 = sbr.rel (%p196) target = $region16
      $region15: #{rcnn3d_combined_features_forward.6} parent=11 // pred_region
        %s199 = smul.u32 2, %s22
        %p200 = scmp.lt.s32.totalorder %s199, 1
        %s201 = scalar_select %p200, %s199, 1
        %s202 = smul.addr %s201, 4
        %s203 = scalar_lea.vmem %s0, %s202
        %s204 = smul.u32 2, %s22
      $region16: #{rcnn3d_combined_features_forward.6} parent=11 // pred_fallthru
        _
      // Predicated region
      $region17: #{rcnn3d_combined_features_forward.6} parent=11 // pred_check
        %p205 = pneg %p71
      $region18: #{rcnn3d_combined_features_forward.6} parent=11 // pred_check_branch
        %207 = sbr.rel (%p205) target = $region20
      $region19: #{rcnn3d_combined_features_forward.6} parent=11 // pred_region
        _
      $region20: #{rcnn3d_combined_features_forward.6} parent=11 // pred_fallthru
        _
    $region12: #{rcnn3d_combined_features_forward.6} parent=5 // pred_fallthru
      _
    %p208 = scmp.lt.s32.totalorder %s12, 8
    // Predicated region
    $region21: #{rcnn3d_combined_features_forward.6} parent=5 // pred_check
      %p209 = pneg %p208
    $region22: #{rcnn3d_combined_features_forward.6} parent=5 // pred_check_branch
      %211 = sbr.rel (%p209) target = $region24
    $region23: #{rcnn3d_combined_features_forward.6} parent=5 // pred_region
      // Predicated region
      $region25: #{rcnn3d_combined_features_forward.6} parent=23 // pred_check
        %p212 = pneg %p91
      $region26: #{rcnn3d_combined_features_forward.6} parent=23 // pred_check_branch
        %214 = sbr.rel (%p212) target = $region28
      $region27: #{rcnn3d_combined_features_forward.6} parent=23 // pred_region
        %s215 = smul.u32 8, %s19
        %p216 = scmp.lt.s32.totalorder %s215, 63
        %s217 = scalar_select %p216, %s215, 63
        %s218 = smul.addr %s217, 8
        %s219 = scalar_lea.vmem %s2, %s218
        %s220 = smul.u32 8, %s19
      $region28: #{rcnn3d_combined_features_forward.6} parent=23 // pred_fallthru
        _
    $region24: #{rcnn3d_combined_features_forward.6} parent=5 // pred_fallthru
      _
    %p221 = scmp.le.s32.totalorder 1, %s12
    %p222 = scmp.lt.s32.totalorder %s12, 9
    %p223 = pnand %p221, %p222
    %p224 = pneg %p223
    // Predicated region
    $region29: #{rcnn3d_combined_features_forward.6} parent=5 // pred_check
      _
    $region30: #{rcnn3d_combined_features_forward.6} parent=5 // pred_check_branch
      %226 = sbr.rel (%p223) target = $region32
    $region31: #{rcnn3d_combined_features_forward.6} parent=5 // pred_region
      %s227 = ssub.s32 %s12, 1
      %s228 = smul.u32 2, %s22
      %p229 = scmp.lt.s32.totalorder %s228, 1
      %s230 = scalar_select %p229, %s228, 1
      %s231 = smul.addr %s230, 4
      %s232 = scalar_lea.vmem %s0, %s231
      %p233 = pneg %p50
      %p234 = pneg %p47
      %p235 = pneg %p71
      %p236 = pneg %p68
      %s237 = smul.u32 8, %s21
      %p238 = scmp.lt.s32.totalorder %s237, 63
      %s239 = scalar_select %p238, %s237, 63
      %s240 = smul.addr %s239, 8
      %s241 = scalar_lea.vmem %s2, %s240
      %p242 = pneg %p97
      %p243 = pneg %p94
      %p244 = pneg %p125
      %p245 = pneg %p122
      %s246 = smul.u32 8, %s21
      %s247 = smul.u32 2, %s22
      %p248 = scmp.lt.s32.totalorder %s246, 63
      %s249 = scalar_select %p248, %s246, 63
      %p250 = scmp.lt.s32.totalorder %s247, 1
      %s251 = scalar_select %p250, %s247, 1
      %s252 = smul.addr %s249, 2
      %s253 = sadd.s32 %s251, %s252
      %s254 = smul.addr %s253, 8
      %s255 = scalar_lea.vmem %s3, %s254
      %p256 = pneg %p153
      %p257 = pneg %p150
      %p258 = scmp.lt.s32.totalorder %s21, 7
      %s259 = scalar_select %p258, %s21, 7
      %p260 = scmp.lt.s32.totalorder %s22, 0
      %s261 = scalar_select %p260, %s22, 0
      %s262 = sadd.s32 %s261, %s259
      %s263 = scalar_lea.vmem %s4, %s262
      %p264 = pneg %p181
      %p265 = pneg %p178
      %p266 = scmp.lt.s32.totalorder %s21, 7
      %s267 = scalar_select %p266, %s21, 7
      %p268 = scmp.lt.s32.totalorder %s22, 0
      %s269 = scalar_select %p268, %s22, 0
      %s270 = sadd.s32 %s269, %s267
      %s271 = scalar_lea.vmem %s5, %s270
      %s272 = smul.u32 2, %s22
      %p273 = scmp.lt.s32.totalorder %s272, 1
      %s274 = scalar_select %p273, %s272, 1
      %s275 = smul.addr %s274, 4
      %s276 = scalar_lea.vmem %s0, %s275
      %s277 = smul.u32 2, %s22
      %s278 = smul.u32 8, %s21
      %p279 = scmp.lt.s32.totalorder %s278, 63
      %s280 = scalar_select %p279, %s278, 63
      %s281 = smul.addr %s280, 8
      %s282 = scalar_lea.vmem %s2, %s281
      %s283 = smul.u32 8, %s21
      %s284 = smul.u32 8, %s21
      %s285 = smul.u32 2, %s22
      %p286 = scmp.lt.s32.totalorder %s284, 63
      %s287 = scalar_select %p286, %s284, 63
      %p288 = scmp.lt.s32.totalorder %s285, 1
      %s289 = scalar_select %p288, %s285, 1
      %s290 = smul.addr %s287, 2
      %s291 = sadd.s32 %s289, %s290
      %s292 = smul.addr %s291, 8
      %s293 = scalar_lea.vmem %s3, %s292
      %s294 = smul.u32 8, %s21
      %s295 = smul.u32 2, %s22
      %p296 = scmp.lt.s32.totalorder %s21, 7
      %s297 = scalar_select %p296, %s21, 7
      %p298 = scmp.lt.s32.totalorder %s22, 0
      %s299 = scalar_select %p298, %s22, 0
      %s300 = sadd.s32 %s299, %s297
      %s301 = scalar_lea.vmem %s4, %s300
      %p302 = scmp.lt.s32.totalorder %s21, 7
      %s303 = scalar_select %p302, %s21, 7
      %p304 = scmp.lt.s32.totalorder %s22, 0
      %s305 = scalar_select %p304, %s22, 0
      %s306 = sadd.s32 %s305, %s303
      %s307 = scalar_lea.vmem %s5, %s306
      %v309 = vld [vmem:[%s276] sm:$0xf]
      %v310 = vld [vmem:[%s276 + $0x4] sm:$0xf]
      %v311 = vld [vmem:[%s1] sm:$0xf]
      %v312 = vld [vmem:[%s282] sm:$0xff]
      %v313 = vld [vmem:[%s282 + $0x8] sm:$0xff]
      %v314 = vld [vmem:[%s282 + $0x10] sm:$0xff]
      %v315 = vld [vmem:[%s282 + $0x18] sm:$0xff]
      %v316 = vld [vmem:[%s282 + $0x20] sm:$0xff]
      %v317 = vld [vmem:[%s282 + $0x28] sm:$0xff]
      %v318 = vld [vmem:[%s282 + $0x30] sm:$0xff]
      %v319 = vld [vmem:[%s282 + $0x38] sm:$0xff]
      %v320 = vpack.c.bf16 %v313, %v312
      %v321 = vpack.c.bf16 %v315, %v314
      %v322 = vpack.c.bf16 %v317, %v316
      %v323 = vpack.c.bf16 %v319, %v318
      %vm324 = vcmask 64512
      %v326 = vsel %vm324, %v320, 0
      %v329 = vsel %vm324, %v321, 0
      %v332 = vsel %vm324, %v322, 0
      %v335 = vsel %vm324, %v323, 0
      %vm337 = vcmask 1043456
      %v339 = vsel %vm337, %v311, 0
      %341 = vmatprep.subr.bf16.mxu0 0
      %342 = vmatpush1.bf16.msra.mxu0 %v339
      %343 = vmatprep.subr.bf16.mxu0 0
      %344 = vmatpush1.bf16.msra.mxu0 0
      %345 = vmatprep.subr.bf16.mxu0 0
      %346 = vmatpush1.bf16.msra.mxu0 0
      %347 = vmatprep.subr.bf16.mxu0 0
      %348 = vmatpush1.bf16.msra.mxu0 0
      %349 = vmatprep.subr.bf16.mxu0 0
      %350 = vmatpush1.bf16.msra.mxu0 0
      %351 = vmatprep.subr.bf16.mxu0 0
      %352 = vmatpush1.bf16.msra.mxu0 0
      %353 = vmatprep.subr.bf16.mxu0 0
      %354 = vmatpush1.bf16.msra.mxu0 0
      %355 = vmatprep.subr.bf16.mxu0 0
      %356 = vmatpush1.bf16.msra.mxu0 0
      %357 = vmatprep.subr.bf16.mxu0 0
      %358 = vmatpush1.bf16.msra.mxu0 0
      %359 = vmatprep.subr.bf16.mxu0 0
      %360 = vmatpush1.bf16.msra.mxu0 0
      %361 = vmatprep.subr.bf16.mxu0 0
      %362 = vmatpush1.bf16.msra.mxu0 0
      %363 = vmatprep.subr.bf16.mxu0 0
      %364 = vmatpush1.bf16.msra.mxu0 0
      %365 = vmatprep.subr.bf16.mxu0 0
      %366 = vmatpush1.bf16.msra.mxu0 0
      %367 = vmatprep.subr.bf16.mxu0 0
      %368 = vmatpush1.bf16.msra.mxu0 0
      %369 = vmatprep.subr.bf16.mxu0 0
      %370 = vmatpush1.bf16.msra.mxu0 0
      %371 = vmatprep.subr.bf16.mxu0 0
      %372 = vmatpush1.bf16.msra.mxu0 0
      %373 = vmatprep.mubr.bf16.mxu0 0
      %374 = vmatmul.mubr.bf16.gmra.mrb[0].mxu0 %v326
      %v375 = vpop.f32.mrb[0].mxu0
      %v376 = vadd.f32 0.0, %v375
      %v377 = vpop.f32.mrb[0].mxu0
      %v378 = vpop.f32.mrb[0].mxu0
      %v379 = vadd.f32 0.0, %v378
      %v380 = vpop.f32.mrb[0].mxu0
      %381 = vmatprep.mubr.bf16.mxu0 0
      %382 = vmatmul.mubr.bf16.gmra.mrb[0].mxu0 %v329
      %v383 = vpop.f32.mrb[0].mxu0
      %v384 = vadd.f32 0.0, %v383
      %v385 = vpop.f32.mrb[0].mxu0
      %v386 = vpop.f32.mrb[0].mxu0
      %v387 = vadd.f32 0.0, %v386
      %v388 = vpop.f32.mrb[0].mxu0
      %389 = vmatprep.mubr.bf16.mxu0 0
      %390 = vmatmul.mubr.bf16.gmra.mrb[0].mxu0 %v332
      %v391 = vpop.f32.mrb[0].mxu0
      %v392 = vadd.f32 0.0, %v391
      %v393 = vpop.f32.mrb[0].mxu0
      %v394 = vpop.f32.mrb[0].mxu0
      %v395 = vadd.f32 0.0, %v394
      %v396 = vpop.f32.mrb[0].mxu0
      %397 = vmatprep.mubr.bf16.mxu0 0
      %398 = vmatmul.mubr.bf16.gmra.mrb[0].mxu0 %v335
      %v399 = vpop.f32.mrb[0].mxu0
      %v400 = vadd.f32 0.0, %v399
      %v401 = vpop.f32.mrb[0].mxu0
      %v402 = vpop.f32.mrb[0].mxu0
      %v403 = vadd.f32 0.0, %v402
      %v404 = vpop.f32.mrb[0].mxu0
      %405 = vdwg.mxu0
      %v406 = vpack.c.bf16 %v376, %v376
      %v409 = vunpack.c.l.b16 %v309
      %v410 = vunpack.c.l.b16 %v310
      %v411 = vpack.c.b16 %v410, %v409
      %v413 = vsel %vm324, %v411, 0
      %v416 = vsel %vm337, %v406, 0
      %418 = vmatprep.subr.bf16.mxu0 0
      %419 = vmatpush1.bf16.msra.mxu0 %v416
      %420 = vmatprep.subr.bf16.mxu0 0
      %421 = vmatpush1.bf16.msra.mxu0 0
      %422 = vmatprep.subr.bf16.mxu0 0
      %423 = vmatpush1.bf16.msra.mxu0 0
      %424 = vmatprep.subr.bf16.mxu0 0
      %425 = vmatpush1.bf16.msra.mxu0 0
      %426 = vmatprep.subr.bf16.mxu0 0
      %427 = vmatpush1.bf16.msra.mxu0 0
      %428 = vmatprep.subr.bf16.mxu0 0
      %429 = vmatpush1.bf16.msra.mxu0 0
      %430 = vmatprep.subr.bf16.mxu0 0
      %431 = vmatpush1.bf16.msra.mxu0 0
      %432 = vmatprep.subr.bf16.mxu0 0
      %433 = vmatpush1.bf16.msra.mxu0 0
      %434 = vmatprep.subr.bf16.mxu0 0
      %435 = vmatpush1.bf16.msra.mxu0 0
      %436 = vmatprep.subr.bf16.mxu0 0
      %437 = vmatpush1.bf16.msra.mxu0 0
      %438 = vmatprep.subr.bf16.mxu0 0
      %439 = vmatpush1.bf16.msra.mxu0 0
      %440 = vmatprep.subr.bf16.mxu0 0
      %441 = vmatpush1.bf16.msra.mxu0 0
      %442 = vmatprep.subr.bf16.mxu0 0
      %443 = vmatpush1.bf16.msra.mxu0 0
      %444 = vmatprep.subr.bf16.mxu0 0
      %445 = vmatpush1.bf16.msra.mxu0 0
      %446 = vmatprep.subr.bf16.mxu0 0
      %447 = vmatpush1.bf16.msra.mxu0 0
      %448 = vmatprep.subr.bf16.mxu0 0
      %449 = vmatpush1.bf16.msra.mxu0 0
      %450 = vmatprep.mubr.bf16.mxu0 0
      %451 = vmatmul.mubr.bf16.gmra.mrb[0].mxu0 %v413
      %v452 = vpop.f32.mrb[0].mxu0
      %v453 = vadd.f32 0.0, %v452
      %v454 = vpop.f32.mrb[0].mxu0
      %v455 = vpop.f32.mrb[0].mxu0
      %v456 = vadd.f32 0.0, %v455
      %v457 = vpop.f32.mrb[0].mxu0
      %458 = vdwg.mxu0
      %vm459 = vcmask 130048
      %460 = vst.msk [vmem:[%s293] sm:$0xff] %vm459, %v453
      %461 = vst.msk [vmem:[%s293 + $0x8] sm:$0xff] %vm459, %v456
      %v462 = vsel %vm459, %v453, 0.0
      %v463 = vsel %vm459, %v456, 0.0
      %v464 = vadd.f32 %v462, %v463
      %465 = vadd.xlane.f32.xlu0 %v464
      %v466 = vpop.xlane.xlu0 %465
      %v467 = vrot.slane %v466, 4
      %v468 = vadd.f32 %v466, %v467
      %v469 = vrot.slane %v468, 2
      %v470 = vadd.f32 %v468, %v469
      %v471 = vrot.slane %v470, 1
      %v472 = vadd.f32 %v470, %v471
      %s473 = vtos %v472
      %s474 = sadd.f32 %s473, 0.0
      %v475 = vmul.f32 %v453, %v453
      %v476 = vmul.f32 %v456, %v456
      %v477 = vsel %vm459, %v475, 0.0
      %v478 = vsel %vm459, %v476, 0.0
      %v479 = vadd.f32 %v477, %v478
      %480 = vadd.xlane.f32.xlu0 %v479
      %v481 = vpop.xlane.xlu0 %480
      %v482 = vrot.slane %v481, 4
      %v483 = vadd.f32 %v481, %v482
      %v484 = vrot.slane %v483, 2
      %v485 = vadd.f32 %v483, %v484
      %v486 = vrot.slane %v485, 1
      %v487 = vadd.f32 %v485, %v486
      %s488 = vtos %v487
      %s489 = sadd.f32 %s488, 0.0
      %v490 = vpack.c.bf16 %v379, %v379
      %v492 = vsel %vm337, %v490, 0
      %494 = vmatprep.subr.bf16.mxu0 0
      %495 = vmatpush1.bf16.msra.mxu0 %v492
      %496 = vmatprep.subr.bf16.mxu0 0
      %497 = vmatpush1.bf16.msra.mxu0 0
      %498 = vmatprep.subr.bf16.mxu0 0
      %499 = vmatpush1.bf16.msra.mxu0 0
      %500 = vmatprep.subr.bf16.mxu0 0
      %501 = vmatpush1.bf16.msra.mxu0 0
      %502 = vmatprep.subr.bf16.mxu0 0
      %503 = vmatpush1.bf16.msra.mxu0 0
      %504 = vmatprep.subr.bf16.mxu0 0
      %505 = vmatpush1.bf16.msra.mxu0 0
      %506 = vmatprep.subr.bf16.mxu0 0
      %507 = vmatpush1.bf16.msra.mxu0 0
      %508 = vmatprep.subr.bf16.mxu0 0
      %509 = vmatpush1.bf16.msra.mxu0 0
      %510 = vmatprep.subr.bf16.mxu0 0
      %511 = vmatpush1.bf16.msra.mxu0 0
      %512 = vmatprep.subr.bf16.mxu0 0
      %513 = vmatpush1.bf16.msra.mxu0 0
      %514 = vmatprep.subr.bf16.mxu0 0
      %515 = vmatpush1.bf16.msra.mxu0 0
      %516 = vmatprep.subr.bf16.mxu0 0
      %517 = vmatpush1.bf16.msra.mxu0 0
      %518 = vmatprep.subr.bf16.mxu0 0
      %519 = vmatpush1.bf16.msra.mxu0 0
      %520 = vmatprep.subr.bf16.mxu0 0
      %521 = vmatpush1.bf16.msra.mxu0 0
      %522 = vmatprep.subr.bf16.mxu0 0
      %523 = vmatpush1.bf16.msra.mxu0 0
      %524 = vmatprep.subr.bf16.mxu0 0
      %525 = vmatpush1.bf16.msra.mxu0 0
      %526 = vmatprep.mubr.bf16.mxu0 0
      %527 = vmatmul.mubr.bf16.gmra.mrb[0].mxu0 %v413
      %v528 = vpop.f32.mrb[0].mxu0
      %v529 = vadd.f32 0.0, %v528
      %v530 = vpop.f32.mrb[0].mxu0
      %v531 = vpop.f32.mrb[0].mxu0
      %v532 = vadd.f32 0.0, %v531
      %v533 = vpop.f32.mrb[0].mxu0
      %534 = vdwg.mxu0
      %s535 = scalar_lea.vmem %s293, 16
      %536 = vst.msk [vmem:[%s535] sm:$0xff] %vm459, %v529
      %537 = vst.msk [vmem:[%s535 + $0x8] sm:$0xff] %vm459, %v532
      %v538 = vsel %vm459, %v529, 0.0
      %v539 = vsel %vm459, %v532, 0.0
      %v540 = vadd.f32 %v538, %v539
      %541 = vadd.xlane.f32.xlu0 %v540
      %v542 = vpop.xlane.xlu0 %541
      %v543 = vrot.slane %v542, 4
      %v544 = vadd.f32 %v542, %v543
      %v545 = vrot.slane %v544, 2
      %v546 = vadd.f32 %v544, %v545
      %v547 = vrot.slane %v546, 1
      %v548 = vadd.f32 %v546, %v547
      %s549 = vtos %v548
      %s550 = sadd.f32 %s474, %s549
      %v551 = vmul.f32 %v529, %v529
      %v552 = vmul.f32 %v532, %v532
      %v553 = vsel %vm459, %v551, 0.0
      %v554 = vsel %vm459, %v552, 0.0
      %v555 = vadd.f32 %v553, %v554
      %556 = vadd.xlane.f32.xlu0 %v555
      %v557 = vpop.xlane.xlu0 %556
      %v558 = vrot.slane %v557, 4
      %v559 = vadd.f32 %v557, %v558
      %v560 = vrot.slane %v559, 2
      %v561 = vadd.f32 %v559, %v560
      %v562 = vrot.slane %v561, 1
      %v563 = vadd.f32 %v561, %v562
      %s564 = vtos %v563
      %s565 = sadd.f32 %s489, %s564
      %v566 = vpack.c.bf16 %v384, %v384
      %v568 = vsel %vm337, %v566, 0
      %570 = vmatprep.subr.bf16.mxu0 0
      %571 = vmatpush1.bf16.msra.mxu0 %v568
      %572 = vmatprep.subr.bf16.mxu0 0
      %573 = vmatpush1.bf16.msra.mxu0 0
      %574 = vmatprep.subr.bf16.mxu0 0
      %575 = vmatpush1.bf16.msra.mxu0 0
      %576 = vmatprep.subr.bf16.mxu0 0
      %577 = vmatpush1.bf16.msra.mxu0 0
      %578 = vmatprep.subr.bf16.mxu0 0
      %579 = vmatpush1.bf16.msra.mxu0 0
      %580 = vmatprep.subr.bf16.mxu0 0
      %581 = vmatpush1.bf16.msra.mxu0 0
      %582 = vmatprep.subr.bf16.mxu0 0
      %583 = vmatpush1.bf16.msra.mxu0 0
      %584 = vmatprep.subr.bf16.mxu0 0
      %585 = vmatpush1.bf16.msra.mxu0 0
      %586 = vmatprep.subr.bf16.mxu0 0
      %587 = vmatpush1.bf16.msra.mxu0 0
      %588 = vmatprep.subr.bf16.mxu0 0
      %589 = vmatpush1.bf16.msra.mxu0 0
      %590 = vmatprep.subr.bf16.mxu0 0
      %591 = vmatpush1.bf16.msra.mxu0 0
      %592 = vmatprep.subr.bf16.mxu0 0
      %593 = vmatpush1.bf16.msra.mxu0 0
      %594 = vmatprep.subr.bf16.mxu0 0
      %595 = vmatpush1.bf16.msra.mxu0 0
      %596 = vmatprep.subr.bf16.mxu0 0
      %597 = vmatpush1.bf16.msra.mxu0 0
      %598 = vmatprep.subr.bf16.mxu0 0
      %599 = vmatpush1.bf16.msra.mxu0 0
      %600 = vmatprep.subr.bf16.mxu0 0
      %601 = vmatpush1.bf16.msra.mxu0 0
      %602 = vmatprep.mubr.bf16.mxu0 0
      %603 = vmatmul.mubr.bf16.gmra.mrb[0].mxu0 %v413
      %v604 = vpop.f32.mrb[0].mxu0
      %v605 = vadd.f32 0.0, %v604
      %v606 = vpop.f32.mrb[0].mxu0
      %v607 = vpop.f32.mrb[0].mxu0
      %v608 = vadd.f32 0.0, %v607
      %v609 = vpop.f32.mrb[0].mxu0
      %610 = vdwg.mxu0
      %s611 = scalar_lea.vmem %s293, 32
      %612 = vst.msk [vmem:[%s611] sm:$0xff] %vm459, %v605
      %613 = vst.msk [vmem:[%s611 + $0x8] sm:$0xff] %vm459, %v608
      %v614 = vsel %vm459, %v605, 0.0
      %v615 = vsel %vm459, %v608, 0.0
      %v616 = vadd.f32 %v614, %v615
      %617 = vadd.xlane.f32.xlu0 %v616
      %v618 = vpop.xlane.xlu0 %617
      %v619 = vrot.slane %v618, 4
      %v620 = vadd.f32 %v618, %v619
      %v621 = vrot.slane %v620, 2
      %v622 = vadd.f32 %v620, %v621
      %v623 = vrot.slane %v622, 1
      %v624 = vadd.f32 %v622, %v623
      %s625 = vtos %v624
      %s626 = sadd.f32 %s550, %s625
      %v627 = vmul.f32 %v605, %v605
      %v628 = vmul.f32 %v608, %v608
      %v629 = vsel %vm459, %v627, 0.0
      %v630 = vsel %vm459, %v628, 0.0
      %v631 = vadd.f32 %v629, %v630
      %632 = vadd.xlane.f32.xlu0 %v631
      %v633 = vpop.xlane.xlu0 %632
      %v634 = vrot.slane %v633, 4
      %v635 = vadd.f32 %v633, %v634
      %v636 = vrot.slane %v635, 2
      %v637 = vadd.f32 %v635, %v636
      %v638 = vrot.slane %v637, 1
      %v639 = vadd.f32 %v637, %v638
      %s640 = vtos %v639
      %s641 = sadd.f32 %s565, %s640
      %v642 = vpack.c.bf16 %v387, %v387
      %v644 = vsel %vm337, %v642, 0
      %646 = vmatprep.subr.bf16.mxu0 0
      %647 = vmatpush1.bf16.msra.mxu0 %v644
      %648 = vmatprep.subr.bf16.mxu0 0
      %649 = vmatpush1.bf16.msra.mxu0 0
      %650 = vmatprep.subr.bf16.mxu0 0
      %651 = vmatpush1.bf16.msra.mxu0 0
      %652 = vmatprep.subr.bf16.mxu0 0
      %653 = vmatpush1.bf16.msra.mxu0 0
      %654 = vmatprep.subr.bf16.mxu0 0
      %655 = vmatpush1.bf16.msra.mxu0 0
      %656 = vmatprep.subr.bf16.mxu0 0
      %657 = vmatpush1.bf16.msra.mxu0 0
      %658 = vmatprep.subr.bf16.mxu0 0
      %659 = vmatpush1.bf16.msra.mxu0 0
      %660 = vmatprep.subr.bf16.mxu0 0
      %661 = vmatpush1.bf16.msra.mxu0 0
      %662 = vmatprep.subr.bf16.mxu0 0
      %663 = vmatpush1.bf16.msra.mxu0 0
      %664 = vmatprep.subr.bf16.mxu0 0
      %665 = vmatpush1.bf16.msra.mxu0 0
      %666 = vmatprep.subr.bf16.mxu0 0
      %667 = vmatpush1.bf16.msra.mxu0 0
      %668 = vmatprep.subr.bf16.mxu0 0
      %669 = vmatpush1.bf16.msra.mxu0 0
      %670 = vmatprep.subr.bf16.mxu0 0
      %671 = vmatpush1.bf16.msra.mxu0 0
      %672 = vmatprep.subr.bf16.mxu0 0
      %673 = vmatpush1.bf16.msra.mxu0 0
      %674 = vmatprep.subr.bf16.mxu0 0
      %675 = vmatpush1.bf16.msra.mxu0 0
      %676 = vmatprep.subr.bf16.mxu0 0
      %677 = vmatpush1.bf16.msra.mxu0 0
      %678 = vmatprep.mubr.bf16.mxu0 0
      %679 = vmatmul.mubr.bf16.gmra.mrb[0].mxu0 %v413
      %v680 = vpop.f32.mrb[0].mxu0
      %v681 = vadd.f32 0.0, %v680
      %v682 = vpop.f32.mrb[0].mxu0
      %v683 = vpop.f32.mrb[0].mxu0
      %v684 = vadd.f32 0.0, %v683
      %v685 = vpop.f32.mrb[0].mxu0
      %686 = vdwg.mxu0
      %s687 = scalar_lea.vmem %s293, 48
      %688 = vst.msk [vmem:[%s687] sm:$0xff] %vm459, %v681
      %689 = vst.msk [vmem:[%s687 + $0x8] sm:$0xff] %vm459, %v684
      %v690 = vsel %vm459, %v681, 0.0
      %v691 = vsel %vm459, %v684, 0.0
      %v692 = vadd.f32 %v690, %v691
      %693 = vadd.xlane.f32.xlu0 %v692
      %v694 = vpop.xlane.xlu0 %693
      %v695 = vrot.slane %v694, 4
      %v696 = vadd.f32 %v694, %v695
      %v697 = vrot.slane %v696, 2
      %v698 = vadd.f32 %v696, %v697
      %v699 = vrot.slane %v698, 1
      %v700 = vadd.f32 %v698, %v699
      %s701 = vtos %v700
      %s702 = sadd.f32 %s626, %s701
      %v703 = vmul.f32 %v681, %v681
      %v704 = vmul.f32 %v684, %v684
      %v705 = vsel %vm459, %v703, 0.0
      %v706 = vsel %vm459, %v704, 0.0
      %v707 = vadd.f32 %v705, %v706
      %708 = vadd.xlane.f32.xlu0 %v707
      %v709 = vpop.xlane.xlu0 %708
      %v710 = vrot.slane %v709, 4
      %v711 = vadd.f32 %v709, %v710
      %v712 = vrot.slane %v711, 2
      %v713 = vadd.f32 %v711, %v712
      %v714 = vrot.slane %v713, 1
      %v715 = vadd.f32 %v713, %v714
      %s716 = vtos %v715
      %s717 = sadd.f32 %s641, %s716
      %v718 = vpack.c.bf16 %v392, %v392
      %v720 = vsel %vm337, %v718, 0
      %722 = vmatprep.subr.bf16.mxu0 0
      %723 = vmatpush1.bf16.msra.mxu0 %v720
      %724 = vmatprep.subr.bf16.mxu0 0
      %725 = vmatpush1.bf16.msra.mxu0 0
      %726 = vmatprep.subr.bf16.mxu0 0
      %727 = vmatpush1.bf16.msra.mxu0 0
      %728 = vmatprep.subr.bf16.mxu0 0
      %729 = vmatpush1.bf16.msra.mxu0 0
      %730 = vmatprep.subr.bf16.mxu0 0
      %731 = vmatpush1.bf16.msra.mxu0 0
      %732 = vmatprep.subr.bf16.mxu0 0
      %733 = vmatpush1.bf16.msra.mxu0 0
      %734 = vmatprep.subr.bf16.mxu0 0
      %735 = vmatpush1.bf16.msra.mxu0 0
      %736 = vmatprep.subr.bf16.mxu0 0
      %737 = vmatpush1.bf16.msra.mxu0 0
      %738 = vmatprep.subr.bf16.mxu0 0
      %739 = vmatpush1.bf16.msra.mxu0 0
      %740 = vmatprep.subr.bf16.mxu0 0
      %741 = vmatpush1.bf16.msra.mxu0 0
      %742 = vmatprep.subr.bf16.mxu0 0
      %743 = vmatpush1.bf16.msra.mxu0 0
      %744 = vmatprep.subr.bf16.mxu0 0
      %745 = vmatpush1.bf16.msra.mxu0 0
      %746 = vmatprep.subr.bf16.mxu0 0
      %747 = vmatpush1.bf16.msra.mxu0 0
      %748 = vmatprep.subr.bf16.mxu0 0
      %749 = vmatpush1.bf16.msra.mxu0 0
      %750 = vmatprep.subr.bf16.mxu0 0
      %751 = vmatpush1.bf16.msra.mxu0 0
      %752 = vmatprep.subr.bf16.mxu0 0
      %753 = vmatpush1.bf16.msra.mxu0 0
      %754 = vmatprep.mubr.bf16.mxu0 0
      %755 = vmatmul.mubr.bf16.gmra.mrb[0].mxu0 %v413
      %v756 = vpop.f32.mrb[0].mxu0
      %v757 = vadd.f32 0.0, %v756
      %v758 = vpop.f32.mrb[0].mxu0
      %v759 = vpop.f32.mrb[0].mxu0
      %v760 = vadd.f32 0.0, %v759
      %v761 = vpop.f32.mrb[0].mxu0
      %762 = vdwg.mxu0
      %s763 = scalar_lea.vmem %s293, 64
      %764 = vst.msk [vmem:[%s763] sm:$0xff] %vm459, %v757
      %765 = vst.msk [vmem:[%s763 + $0x8] sm:$0xff] %vm459, %v760
      %v766 = vsel %vm459, %v757, 0.0
      %v767 = vsel %vm459, %v760, 0.0
      %v768 = vadd.f32 %v766, %v767
      %769 = vadd.xlane.f32.xlu0 %v768
      %v770 = vpop.xlane.xlu0 %769
      %v771 = vrot.slane %v770, 4
      %v772 = vadd.f32 %v770, %v771
      %v773 = vrot.slane %v772, 2
      %v774 = vadd.f32 %v772, %v773
      %v775 = vrot.slane %v774, 1
      %v776 = vadd.f32 %v774, %v775
      %s777 = vtos %v776
      %s778 = sadd.f32 %s702, %s777
      %v779 = vmul.f32 %v757, %v757
      %v780 = vmul.f32 %v760, %v760
      %v781 = vsel %vm459, %v779, 0.0
      %v782 = vsel %vm459, %v780, 0.0
      %v783 = vadd.f32 %v781, %v782
      %784 = vadd.xlane.f32.xlu0 %v783
      %v785 = vpop.xlane.xlu0 %784
      %v786 = vrot.slane %v785, 4
      %v787 = vadd.f32 %v785, %v786
      %v788 = vrot.slane %v787, 2
      %v789 = vadd.f32 %v787, %v788
      %v790 = vrot.slane %v789, 1
      %v791 = vadd.f32 %v789, %v790
      %s792 = vtos %v791
      %s793 = sadd.f32 %s717, %s792
      %v794 = vpack.c.bf16 %v395, %v395
      %v796 = vsel %vm337, %v794, 0
      %798 = vmatprep.subr.bf16.mxu0 0
      %799 = vmatpush1.bf16.msra.mxu0 %v796
      %800 = vmatprep.subr.bf16.mxu0 0
      %801 = vmatpush1.bf16.msra.mxu0 0
      %802 = vmatprep.subr.bf16.mxu0 0
      %803 = vmatpush1.bf16.msra.mxu0 0
      %804 = vmatprep.subr.bf16.mxu0 0
      %805 = vmatpush1.bf16.msra.mxu0 0
      %806 = vmatprep.subr.bf16.mxu0 0
      %807 = vmatpush1.bf16.msra.mxu0 0
      %808 = vmatprep.subr.bf16.mxu0 0
      %809 = vmatpush1.bf16.msra.mxu0 0
      %810 = vmatprep.subr.bf16.mxu0 0
      %811 = vmatpush1.bf16.msra.mxu0 0
      %812 = vmatprep.subr.bf16.mxu0 0
      %813 = vmatpush1.bf16.msra.mxu0 0
      %814 = vmatprep.subr.bf16.mxu0 0
      %815 = vmatpush1.bf16.msra.mxu0 0
      %816 = vmatprep.subr.bf16.mxu0 0
      %817 = vmatpush1.bf16.msra.mxu0 0
      %818 = vmatprep.subr.bf16.mxu0 0
      %819 = vmatpush1.bf16.msra.mxu0 0
      %820 = vmatprep.subr.bf16.mxu0 0
      %821 = vmatpush1.bf16.msra.mxu0 0
      %822 = vmatprep.subr.bf16.mxu0 0
      %823 = vmatpush1.bf16.msra.mxu0 0
      %824 = vmatprep.subr.bf16.mxu0 0
      %825 = vmatpush1.bf16.msra.mxu0 0
      %826 = vmatprep.subr.bf16.mxu0 0
      %827 = vmatpush1.bf16.msra.mxu0 0
      %828 = vmatprep.subr.bf16.mxu0 0
      %829 = vmatpush1.bf16.msra.mxu0 0
      %830 = vmatprep.mubr.bf16.mxu0 0
      %831 = vmatmul.mubr.bf16.gmra.mrb[0].mxu0 %v413
      %v832 = vpop.f32.mrb[0].mxu0
      %v833 = vadd.f32 0.0, %v832
      %v834 = vpop.f32.mrb[0].mxu0
      %v835 = vpop.f32.mrb[0].mxu0
      %v836 = vadd.f32 0.0, %v835
      %v837 = vpop.f32.mrb[0].mxu0
      %838 = vdwg.mxu0
      %s839 = scalar_lea.vmem %s293, 80
      %840 = vst.msk [vmem:[%s839] sm:$0xff] %vm459, %v833
      %841 = vst.msk [vmem:[%s839 + $0x8] sm:$0xff] %vm459, %v836
      %v842 = vsel %vm459, %v833, 0.0
      %v843 = vsel %vm459, %v836, 0.0
      %v844 = vadd.f32 %v842, %v843
      %845 = vadd.xlane.f32.xlu0 %v844
      %v846 = vpop.xlane.xlu0 %845
      %v847 = vrot.slane %v846, 4
      %v848 = vadd.f32 %v846, %v847
      %v849 = vrot.slane %v848, 2
      %v850 = vadd.f32 %v848, %v849
      %v851 = vrot.slane %v850, 1
      %v852 = vadd.f32 %v850, %v851
      %s853 = vtos %v852
      %s854 = sadd.f32 %s778, %s853
      %v855 = vmul.f32 %v833, %v833
      %v856 = vmul.f32 %v836, %v836
      %v857 = vsel %vm459, %v855, 0.0
      %v858 = vsel %vm459, %v856, 0.0
      %v859 = vadd.f32 %v857, %v858
      %860 = vadd.xlane.f32.xlu0 %v859
      %v861 = vpop.xlane.xlu0 %860
      %v862 = vrot.slane %v861, 4
      %v863 = vadd.f32 %v861, %v862
      %v864 = vrot.slane %v863, 2
      %v865 = vadd.f32 %v863, %v864
      %v866 = vrot.slane %v865, 1
      %v867 = vadd.f32 %v865, %v866
      %s868 = vtos %v867
      %s869 = sadd.f32 %s793, %s868
      %v870 = vpack.c.bf16 %v400, %v400
      %v872 = vsel %vm337, %v870, 0
      %874 = vmatprep.subr.bf16.mxu0 0
      %875 = vmatpush1.bf16.msra.mxu0 %v872
      %876 = vmatprep.subr.bf16.mxu0 0
      %877 = vmatpush1.bf16.msra.mxu0 0
      %878 = vmatprep.subr.bf16.mxu0 0
      %879 = vmatpush1.bf16.msra.mxu0 0
      %880 = vmatprep.subr.bf16.mxu0 0
      %881 = vmatpush1.bf16.msra.mxu0 0
      %882 = vmatprep.subr.bf16.mxu0 0
      %883 = vmatpush1.bf16.msra.mxu0 0
      %884 = vmatprep.subr.bf16.mxu0 0
      %885 = vmatpush1.bf16.msra.mxu0 0
      %886 = vmatprep.subr.bf16.mxu0 0
      %887 = vmatpush1.bf16.msra.mxu0 0
      %888 = vmatprep.subr.bf16.mxu0 0
      %889 = vmatpush1.bf16.msra.mxu0 0
      %890 = vmatprep.subr.bf16.mxu0 0
      %891 = vmatpush1.bf16.msra.mxu0 0
      %892 = vmatprep.subr.bf16.mxu0 0
      %893 = vmatpush1.bf16.msra.mxu0 0
      %894 = vmatprep.subr.bf16.mxu0 0
      %895 = vmatpush1.bf16.msra.mxu0 0
      %896 = vmatprep.subr.bf16.mxu0 0
      %897 = vmatpush1.bf16.msra.mxu0 0
      %898 = vmatprep.subr.bf16.mxu0 0
      %899 = vmatpush1.bf16.msra.mxu0 0
      %900 = vmatprep.subr.bf16.mxu0 0
      %901 = vmatpush1.bf16.msra.mxu0 0
      %902 = vmatprep.subr.bf16.mxu0 0
      %903 = vmatpush1.bf16.msra.mxu0 0
      %904 = vmatprep.subr.bf16.mxu0 0
      %905 = vmatpush1.bf16.msra.mxu0 0
      %906 = vmatprep.mubr.bf16.mxu0 0
      %907 = vmatmul.mubr.bf16.gmra.mrb[0].mxu0 %v413
      %v908 = vpop.f32.mrb[0].mxu0
      %v909 = vadd.f32 0.0, %v908
      %v910 = vpop.f32.mrb[0].mxu0
      %v911 = vpop.f32.mrb[0].mxu0
      %v912 = vadd.f32 0.0, %v911
      %v913 = vpop.f32.mrb[0].mxu0
      %914 = vdwg.mxu0
      %s915 = scalar_lea.vmem %s293, 96
      %916 = vst.msk [vmem:[%s915] sm:$0xff] %vm459, %v909
      %917 = vst.msk [vmem:[%s915 + $0x8] sm:$0xff] %vm459, %v912
      %v918 = vsel %vm459, %v909, 0.0
      %v919 = vsel %vm459, %v912, 0.0
      %v920 = vadd.f32 %v918, %v919
      %921 = vadd.xlane.f32.xlu0 %v920
      %v922 = vpop.xlane.xlu0 %921
      %v923 = vrot.slane %v922, 4
      %v924 = vadd.f32 %v922, %v923
      %v925 = vrot.slane %v924, 2
      %v926 = vadd.f32 %v924, %v925
      %v927 = vrot.slane %v926, 1
      %v928 = vadd.f32 %v926, %v927
      %s929 = vtos %v928
      %s930 = sadd.f32 %s854, %s929
      %v931 = vmul.f32 %v909, %v909
      %v932 = vmul.f32 %v912, %v912
      %v933 = vsel %vm459, %v931, 0.0
      %v934 = vsel %vm459, %v932, 0.0
      %v935 = vadd.f32 %v933, %v934
      %936 = vadd.xlane.f32.xlu0 %v935
      %v937 = vpop.xlane.xlu0 %936
      %v938 = vrot.slane %v937, 4
      %v939 = vadd.f32 %v937, %v938
      %v940 = vrot.slane %v939, 2
      %v941 = vadd.f32 %v939, %v940
      %v942 = vrot.slane %v941, 1
      %v943 = vadd.f32 %v941, %v942
      %s944 = vtos %v943
      %s945 = sadd.f32 %s869, %s944
      %v946 = vpack.c.bf16 %v403, %v403
      %v948 = vsel %vm337, %v946, 0
      %950 = vmatprep.subr.bf16.mxu0 0
      %951 = vmatpush1.bf16.msra.mxu0 %v948
      %952 = vmatprep.subr.bf16.mxu0 0
      %953 = vmatpush1.bf16.msra.mxu0 0
      %954 = vmatprep.subr.bf16.mxu0 0
      %955 = vmatpush1.bf16.msra.mxu0 0
      %956 = vmatprep.subr.bf16.mxu0 0
      %957 = vmatpush1.bf16.msra.mxu0 0
      %958 = vmatprep.subr.bf16.mxu0 0
      %959 = vmatpush1.bf16.msra.mxu0 0
      %960 = vmatprep.subr.bf16.mxu0 0
      %961 = vmatpush1.bf16.msra.mxu0 0
      %962 = vmatprep.subr.bf16.mxu0 0
      %963 = vmatpush1.bf16.msra.mxu0 0
      %964 = vmatprep.subr.bf16.mxu0 0
      %965 = vmatpush1.bf16.msra.mxu0 0
      %966 = vmatprep.subr.bf16.mxu0 0
      %967 = vmatpush1.bf16.msra.mxu0 0
      %968 = vmatprep.subr.bf16.mxu0 0
      %969 = vmatpush1.bf16.msra.mxu0 0
      %970 = vmatprep.subr.bf16.mxu0 0
      %971 = vmatpush1.bf16.msra.mxu0 0
      %972 = vmatprep.subr.bf16.mxu0 0
      %973 = vmatpush1.bf16.msra.mxu0 0
      %974 = vmatprep.subr.bf16.mxu0 0
      %975 = vmatpush1.bf16.msra.mxu0 0
      %976 = vmatprep.subr.bf16.mxu0 0
      %977 = vmatpush1.bf16.msra.mxu0 0
      %978 = vmatprep.subr.bf16.mxu0 0
      %979 = vmatpush1.bf16.msra.mxu0 0
      %980 = vmatprep.subr.bf16.mxu0 0
      %981 = vmatpush1.bf16.msra.mxu0 0
      %982 = vmatprep.mubr.bf16.mxu0 0
      %983 = vmatmul.mubr.bf16.gmra.mrb[0].mxu0 %v413
      %v984 = vpop.f32.mrb[0].mxu0
      %v985 = vadd.f32 0.0, %v984
      %v986 = vpop.f32.mrb[0].mxu0
      %v987 = vpop.f32.mrb[0].mxu0
      %v988 = vadd.f32 0.0, %v987
      %v989 = vpop.f32.mrb[0].mxu0
      %990 = vdwg.mxu0
      %s991 = scalar_lea.vmem %s293, 112
      %992 = vst.msk [vmem:[%s991] sm:$0xff] %vm459, %v985
      %993 = vst.msk [vmem:[%s991 + $0x8] sm:$0xff] %vm459, %v988
      %v994 = vsel %vm459, %v985, 0.0
      %v995 = vsel %vm459, %v988, 0.0
      %v996 = vadd.f32 %v994, %v995
      %997 = vadd.xlane.f32.xlu0 %v996
      %v998 = vpop.xlane.xlu0 %997
      %v999 = vrot.slane %v998, 4
      %v1000 = vadd.f32 %v998, %v999
      %v1001 = vrot.slane %v1000, 2
      %v1002 = vadd.f32 %v1000, %v1001
      %v1003 = vrot.slane %v1002, 1
      %v1004 = vadd.f32 %v1002, %v1003
      %s1005 = vtos %v1004
      %s1006 = sadd.f32 %s930, %s1005
      %v1007 = vmul.f32 %v985, %v985
      %v1008 = vmul.f32 %v988, %v988
      %v1009 = vsel %vm459, %v1007, 0.0
      %v1010 = vsel %vm459, %v1008, 0.0
      %v1011 = vadd.f32 %v1009, %v1010
      %1012 = vadd.xlane.f32.xlu0 %v1011
      %v1013 = vpop.xlane.xlu0 %1012
      %v1014 = vrot.slane %v1013, 4
      %v1015 = vadd.f32 %v1013, %v1014
      %v1016 = vrot.slane %v1015, 2
      %v1017 = vadd.f32 %v1015, %v1016
      %v1018 = vrot.slane %v1017, 1
      %v1019 = vadd.f32 %v1017, %v1018
      %s1020 = vtos %v1019
      %s1021 = sadd.f32 %s945, %s1020
      %v1022 = vstv %s1006
      %1023 = vst [vmem:[%s301] sm:$0x1] %v1022
      %v1024 = vstv %s1021
      %1025 = vst [vmem:[%s307] sm:$0x1] %v1024
      %s1026 = smul.u32 8, %s21
      %s1027 = smul.u32 2, %s22
      %p1028 = scmp.lt.s32.totalorder %s1026, 63
      %s1029 = scalar_select %p1028, %s1026, 63
      %p1030 = scmp.lt.s32.totalorder %s1027, 1
      %s1031 = scalar_select %p1030, %s1027, 1
      %s1032 = smul.addr %s1029, 2
      %s1033 = sadd.s32 %s1031, %s1032
      %s1034 = smul.addr %s1033, 8
      %s1035 = scalar_lea.vmem %s3, %s1034
      %p1036 = scmp.lt.s32.totalorder %s21, 7
      %s1037 = scalar_select %p1036, %s21, 7
      %p1038 = scmp.lt.s32.totalorder %s22, 0
      %s1039 = scalar_select %p1038, %s22, 0
      %s1040 = sadd.s32 %s1039, %s1037
      %s1041 = scalar_lea.vmem %s4, %s1040
      %p1042 = scmp.lt.s32.totalorder %s21, 7
      %s1043 = scalar_select %p1042, %s21, 7
      %p1044 = scmp.lt.s32.totalorder %s22, 0
      %s1045 = scalar_select %p1044, %s22, 0
      %s1046 = sadd.s32 %s1045, %s1043
      %s1047 = scalar_lea.vmem %s5, %s1046
      // Predicated region
      $region33: #{rcnn3d_combined_features_forward.6} parent=31 // pred_check
        %p1048 = pneg %p122
      $region34: #{rcnn3d_combined_features_forward.6} parent=31 // pred_check_branch
        %1050 = sbr.rel (%p1048) target = $region36
      $region35: #{rcnn3d_combined_features_forward.6} parent=31 // pred_region
        %s1051 = smul.u32 8, %s21
        %s1052 = smul.u32 2, %s22
      $region36: #{rcnn3d_combined_features_forward.6} parent=31 // pred_fallthru
        _
      // Predicated region
      $region37: #{rcnn3d_combined_features_forward.6} parent=31 // pred_check
        %p1053 = pneg %p150
      $region38: #{rcnn3d_combined_features_forward.6} parent=31 // pred_check_branch
        %1055 = sbr.rel (%p1053) target = $region40
      $region39: #{rcnn3d_combined_features_forward.6} parent=31 // pred_region
        _
      $region40: #{rcnn3d_combined_features_forward.6} parent=31 // pred_fallthru
        _
      // Predicated region
      $region41: #{rcnn3d_combined_features_forward.6} parent=31 // pred_check
        %p1056 = pneg %p178
      $region42: #{rcnn3d_combined_features_forward.6} parent=31 // pred_check_branch
        %1058 = sbr.rel (%p1056) target = $region44
      $region43: #{rcnn3d_combined_features_forward.6} parent=31 // pred_region
        _
      $region44: #{rcnn3d_combined_features_forward.6} parent=31 // pred_fallthru
        _
    $region32: #{rcnn3d_combined_features_forward.6} parent=5 // pred_fallthru
      _
    %p1059 = scmp.le.s32.totalorder 2, %s12
    // Predicated region
    $region45: #{rcnn3d_combined_features_forward.6} parent=5 // pred_check
      %p1060 = pneg %p1059
    $region46: #{rcnn3d_combined_features_forward.6} parent=5 // pred_check_branch
      %1062 = sbr.rel (%p1060) target = $region48
    $region47: #{rcnn3d_combined_features_forward.6} parent=5 // pred_region
      %s1063 = ssub.s32 %s12, 2
      // Predicated region
      $region49: #{rcnn3d_combined_features_forward.6} parent=47 // pred_check
        %p1064 = pneg %p128
      $region50: #{rcnn3d_combined_features_forward.6} parent=47 // pred_check_branch
        %1066 = sbr.rel (%p1064) target = $region52
      $region51: #{rcnn3d_combined_features_forward.6} parent=47 // pred_region
        %s1067 = smul.u32 8, %s23
        %s1068 = smul.u32 2, %s24
        %p1069 = scmp.lt.s32.totalorder %s1067, 63
        %s1070 = scalar_select %p1069, %s1067, 63
        %p1071 = scmp.lt.s32.totalorder %s1068, 1
        %s1072 = scalar_select %p1071, %s1068, 1
        %s1073 = smul.addr %s1070, 2
        %s1074 = sadd.s32 %s1072, %s1073
        %s1075 = smul.addr %s1074, 8
        %s1076 = scalar_lea.vmem %s3, %s1075
      $region52: #{rcnn3d_combined_features_forward.6} parent=47 // pred_fallthru
        _
      // Predicated region
      $region53: #{rcnn3d_combined_features_forward.6} parent=47 // pred_check
        %p1077 = pneg %p156
      $region54: #{rcnn3d_combined_features_forward.6} parent=47 // pred_check_branch
        %1079 = sbr.rel (%p1077) target = $region56
      $region55: #{rcnn3d_combined_features_forward.6} parent=47 // pred_region
        %p1080 = scmp.lt.s32.totalorder %s23, 7
        %s1081 = scalar_select %p1080, %s23, 7
        %p1082 = scmp.lt.s32.totalorder %s24, 0
        %s1083 = scalar_select %p1082, %s24, 0
        %s1084 = sadd.s32 %s1083, %s1081
        %s1085 = scalar_lea.vmem %s4, %s1084
      $region56: #{rcnn3d_combined_features_forward.6} parent=47 // pred_fallthru
        _
      // Predicated region
      $region57: #{rcnn3d_combined_features_forward.6} parent=47 // pred_check
        %p1086 = pneg %p184
      $region58: #{rcnn3d_combined_features_forward.6} parent=47 // pred_check_branch
        %1088 = sbr.rel (%p1086) target = $region60
      $region59: #{rcnn3d_combined_features_forward.6} parent=47 // pred_region
        %p1089 = scmp.lt.s32.totalorder %s23, 7
        %s1090 = scalar_select %p1089, %s23, 7
        %p1091 = scmp.lt.s32.totalorder %s24, 0
        %s1092 = scalar_select %p1091, %s24, 0
        %s1093 = sadd.s32 %s1092, %s1090
        %s1094 = scalar_lea.vmem %s5, %s1093
      $region60: #{rcnn3d_combined_features_forward.6} parent=47 // pred_fallthru
        _
    $region48: #{rcnn3d_combined_features_forward.6} parent=5 // pred_fallthru
      _
  $region6: #{rcnn3d_combined_features_forward.6} parent=0 // loop_footer
    %s16 = sadd.s32 1, %s12
  $region7: #{rcnn3d_combined_features_forward.6} parent=0 // loop_footer_branch
    %11 = sbr.rel target = $region3
  $region8: #{rcnn3d_combined_features_forward.6} parent=0 // loop_exit
    _

</llo_original>
